<compile_context>
chip_gen: v6e
topology: v6e:2x2x1
jax: 0.10.0
libtpu: 0.0.40
codegen_flags: <defaults>
</compile_context>

<pallas_src>
import functools
import math

import jax
import jax.numpy as jnp
from jax.experimental import pallas as pl
from jax.experimental.pallas import tpu as pltpu

# ------------------------- mini-RoBERTa config -------------------------------
VOCAB = 64
PAD_ID = 1
HIDDEN = 128
N_HEADS = 4
HEAD_DIM = HIDDEN // N_HEADS
INTERMEDIATE = 256
N_LAYERS = 2
MAX_POS = 64
LN_EPS = 1e-5
FC_HIDDEN = 64      # head: Linear(HIDDEN, 64) -> ReLU -> Linear(64, 1)
FC_PAD = 128        # lane-dense padded width of the head's hidden layer
OUT_PAD = 128       # lane-dense padded width for the final (B, 1) logits

_VMEM = pl.BlockSpec(memory_space=pltpu.MemorySpace.VMEM)


# ------------------------------ fused kernel ----------------------------------
def _fused_forward_kernel(
    ids_ref, pos_ref, bias_ref,              # token ids, position ids, (M,M) mask
    wemb_ref, pemb_ref, temb_ref,            # embedding tables (bf16, bf16, f32)
    eg_ref, eb_ref,                          # embedding LayerNorm
    wqkv_ref, bqkv_ref, wo_ref, bo_ref,      # attention weights (stacked layers)
    g1_ref, be1_ref,                         # post-attention LayerNorm
    w1_ref, b1_ref, w2_ref, b2_ref,          # FFN weights
    g2_ref, be2_ref,                         # post-FFN LayerNorm
    pw_ref, pb_ref,                          # pooler
    f1w_ref, f1b_ref, f2w_ref, f2b_ref,      # classification head (lane-padded)
    out_ref,                                 # (B, OUT_PAD) lane-dense output
    ctx_ref,                                 # (M, HIDDEN) f32 VMEM scratch
    *, batch, seq):

    m_rows = batch * seq

    def ln(x, g, b):
        mu = jnp.mean(x, axis=-1, keepdims=True)
        d = x - mu
        var = jnp.mean(d * d, axis=-1, keepdims=True)
        return d * jax.lax.rsqrt(var + LN_EPS) * g + b

    def mxu(x, w_bf16):
        # bf16 MXU inputs, f32 accumulation.
        return jnp.dot(x.astype(jnp.bfloat16), w_bf16,
                       preferred_element_type=jnp.float32)

    # ---- embeddings as one-hot MXU dots (word + position + type) ----
    word_oh = (ids_ref[...] ==
               jax.lax.broadcasted_iota(jnp.int32, (m_rows, VOCAB), 1)
               ).astype(jnp.bfloat16)                               # (M, V)
    pos_oh = (pos_ref[...] ==
              jax.lax.broadcasted_iota(jnp.int32, (m_rows, MAX_POS), 1)
              ).astype(jnp.bfloat16)                                # (M, P)
    emb = (jnp.dot(word_oh, wemb_ref[...], preferred_element_type=jnp.float32)
           + jnp.dot(pos_oh, pemb_ref[...], preferred_element_type=jnp.float32)
           + temb_ref[...])                                         # (M, H) f32
    h = ln(emb, eg_ref[...], eb_ref[...])

    bias = bias_ref[...]                                            # (M, M) f32

    # ---- transformer layers (weights resident in VMEM, static unroll) ----
    for l in range(N_LAYERS):
        # fused QKV projection (1/sqrt(dH) already folded into the Q columns)
        qkv = mxu(h, wqkv_ref[l]) + bqkv_ref[l]                     # (M, 3H) f32
        q = qkv[:, 0:HIDDEN].astype(jnp.bfloat16)
        k = qkv[:, HIDDEN:2 * HIDDEN].astype(jnp.bfloat16)
        v = qkv[:, 2 * HIDDEN:3 * HIDDEN].astype(jnp.bfloat16)

        # multi-head attention over the flattened M rows; cross-batch and
        # padded-key positions are masked by the additive (M, M) bias.
        for hh in range(N_HEADS):
            cs = slice(hh * HEAD_DIM, (hh + 1) * HEAD_DIM)
            qh, kh, vh = q[:, cs], k[:, cs], v[:, cs]               # (M, dH) bf16
            s = jax.lax.dot_general(
                qh, kh, (((1,), (1,)), ((), ())),
                preferred_element_type=jnp.float32) + bias          # (M, M) f32
            m = jnp.max(s, axis=-1, keepdims=True)
            p = jnp.exp(s - m)
            p = p * pl.reciprocal(jnp.sum(p, axis=-1, keepdims=True),
                                  approx=True)
            ctx_ref[:, cs] = jnp.dot(p.astype(jnp.bfloat16), vh,
                                     preferred_element_type=jnp.float32)

        # output projection + residual + LayerNorm
        attn_out = mxu(ctx_ref[...], wo_ref[l]) + bo_ref[l]
        h = ln(attn_out + h, g1_ref[l], be1_ref[l])

        # FFN
        ff = mxu(h, w1_ref[l]) + b1_ref[l]                          # (M, I)
        # TODO(synk): HF RoBERTa uses exact erf-GELU; tanh approximation here.
        c = math.sqrt(2.0 / math.pi)
        ff = 0.5 * ff * (1.0 + jnp.tanh(c * (ff + 0.044715 * ff * ff * ff)))
        ff = mxu(ff, w2_ref[l]) + b2_ref[l]                         # (M, H)
        h = ln(ff + h, g2_ref[l], be2_ref[l])

    # ---- pooler (CLS token) + classification head, fully fused ----
    ctx_ref[...] = h                                                # reuse scratch
    cls = ctx_ref[pl.ds(0, batch, stride=seq), :]                   # (B, H) CLS rows
    pooled = jnp.tanh(mxu(cls, pw_ref[...]) + pb_ref[...])
    x = jnp.maximum(mxu(pooled, f1w_ref[...]) + f1b_ref[...], 0.0)  # (B, FC_PAD)
    out_ref[...] = mxu(x, f2w_ref[...]) + f2b_ref[...]              # (B, OUT_PAD)


# ----------------------------- parameters -------------------------------------
def init_params(key):
    def nrm(k, shape, std=0.02):
        return std * jax.random.normal(k, shape, jnp.float32)

    keys = iter(jax.random.split(key, 64))
    bf16 = jnp.bfloat16
    scale = 1.0 / math.sqrt(HEAD_DIM)

    # fused QKV with the attention scale folded into the Q third
    wqkv = nrm(next(keys), (N_LAYERS, HIDDEN, 3 * HIDDEN))
    wqkv = wqkv.at[:, :, :HIDDEN].multiply(scale)
    bqkv = jnp.zeros((N_LAYERS, 1, 3 * HIDDEN), jnp.float32)
    bqkv = bqkv.at[:, :, :HIDDEN].multiply(scale)

    # classification head, zero-padded to lane-dense widths:
    #   fc1: (H, 64) -> (H, 128); fc2: (64, 1) -> (128, 128) with the real
    #   logit in column 0.  Zero pads contribute exactly zero through ReLU.
    fc1_w = jnp.zeros((HIDDEN, FC_PAD), jnp.float32)
    fc1_w = fc1_w.at[:, :FC_HIDDEN].set(nrm(next(keys), (HIDDEN, FC_HIDDEN)))
    fc2_w = jnp.zeros((FC_PAD, OUT_PAD), jnp.float32)
    fc2_w = fc2_w.at[:FC_HIDDEN, :1].set(nrm(next(keys), (FC_HIDDEN, 1)))

    p = {
        # embedding tables (used by in-kernel one-hot matmuls)
        "word_emb": nrm(next(keys), (VOCAB, HIDDEN)).astype(bf16),
        "pos_emb": nrm(next(keys), (MAX_POS, HIDDEN)).astype(bf16),
        "type_emb": nrm(next(keys), (1, HIDDEN)),
        "emb_ln_g": jnp.ones((1, HIDDEN), jnp.float32),
        "emb_ln_b": jnp.zeros((1, HIDDEN), jnp.float32),
        # transformer layers, stacked on a leading N_LAYERS axis
        "wqkv": wqkv.astype(bf16),
        "bqkv": bqkv,
        "wo": nrm(next(keys), (N_LAYERS, HIDDEN, HIDDEN)).astype(bf16),
        "bo": jnp.zeros((N_LAYERS, 1, HIDDEN), jnp.float32),
        "ln1_g": jnp.ones((N_LAYERS, 1, HIDDEN), jnp.float32),
        "ln1_b": jnp.zeros((N_LAYERS, 1, HIDDEN), jnp.float32),
        "w1": nrm(next(keys), (N_LAYERS, HIDDEN, INTERMEDIATE)).astype(bf16),
        "b1": jnp.zeros((N_LAYERS, 1, INTERMEDIATE), jnp.float32),
        "w2": nrm(next(keys), (N_LAYERS, INTERMEDIATE, HIDDEN)).astype(bf16),
        "b2": jnp.zeros((N_LAYERS, 1, HIDDEN), jnp.float32),
        "ln2_g": jnp.ones((N_LAYERS, 1, HIDDEN), jnp.float32),
        "ln2_b": jnp.zeros((N_LAYERS, 1, HIDDEN), jnp.float32),
        # pooler
        "pool_w": nrm(next(keys), (HIDDEN, HIDDEN)).astype(bf16),
        "pool_b": jnp.zeros((1, HIDDEN), jnp.float32),
        # classification head (self.fc): weight ~ N(0, 0.02), bias = 0
        "fc1_w": fc1_w.astype(bf16),
        "fc1_b": jnp.zeros((1, FC_PAD), jnp.float32),
        "fc2_w": fc2_w.astype(bf16),
        "fc2_b": jnp.zeros((1, OUT_PAD), jnp.float32),
    }
    return p


# ------------------------------ forward ----------------------------------------
def roberta_detector_forward(params, input_ids, attention_mask):
    B, S = input_ids.shape
    M = B * S

    # RoBERTa position ids: cumsum of non-pad tokens, offset by pad_token_id.
    pad_mask = (input_ids != PAD_ID).astype(jnp.int32)
    position_ids = jnp.cumsum(pad_mask, axis=1) * pad_mask + PAD_ID

    ids_flat = input_ids.reshape(M, 1).astype(jnp.int32)
    pos_flat = position_ids.reshape(M, 1).astype(jnp.int32)

    # (M, M) additive attention bias over flattened rows:
    #   0 where the key is a valid token of the SAME batch element, -1e9 else.
    key_valid = attention_mask.reshape(1, M) > 0
    batch_idx = jnp.repeat(jnp.arange(B, dtype=jnp.int32), S)
    same_batch = batch_idx[:, None] == batch_idx[None, :]
    att_bias = jnp.where(same_batch & key_valid, 0.0, -1e9).astype(jnp.float32)

    out_pad = pl.pallas_call(
        functools.partial(_fused_forward_kernel, batch=B, seq=S),
        out_shape=jax.ShapeDtypeStruct((B, OUT_PAD), jnp.float32),
        in_specs=[_VMEM] * 26,
        out_specs=_VMEM,
        scratch_shapes=[pltpu.VMEM((M, HIDDEN), jnp.float32)],
    )(ids_flat, pos_flat, att_bias,
      params["word_emb"], params["pos_emb"], params["type_emb"],
      params["emb_ln_g"], params["emb_ln_b"],
      params["wqkv"], params["bqkv"], params["wo"], params["bo"],
      params["ln1_g"], params["ln1_b"],
      params["w1"], params["b1"], params["w2"], params["b2"],
      params["ln2_g"], params["ln2_b"],
      params["pool_w"], params["pool_b"],
      params["fc1_w"], params["fc1_b"], params["fc2_w"], params["fc2_b"])

    return out_pad[:, :1]                                             # (B, 1)


# -------------------------------- main ------------------------------------------
if __name__ == "__main__":
    key = jax.random.PRNGKey(0)
    pkey, dkey = jax.random.split(key)
    params = init_params(pkey)

    B, S = 2, 16
    lengths = jnp.array([16, 12], jnp.int32)
    pos = jnp.arange(S)[None, :]
    attention_mask = (pos < lengths[:, None]).astype(jnp.int32)   # (B, S)
    rand_ids = jax.random.randint(dkey, (B, S), 3, VOCAB)
    input_ids = jnp.where(attention_mask == 1, rand_ids, PAD_ID).astype(jnp.int32)

    fwd = jax.jit(roberta_detector_forward)
    out = fwd(params, input_ids, attention_mask)
    jax.block_until_ready(out)
    assert out.shape == (B, 1) and out.dtype == jnp.float32
    print("KERNEL_OK")
</pallas_src>

<mosaic_0001>
module attributes {stable_mosaic.version = 11 : i64} {
  func.func @_fused_forward_kernel(%arg0: memref<32x1xi32, #tpu.memory_space<vmem>>, %arg1: memref<32x1xi32, #tpu.memory_space<vmem>>, %arg2: memref<32x32xf32, #tpu.memory_space<vmem>>, %arg3: memref<64x128xbf16, #tpu.memory_space<vmem>>, %arg4: memref<64x128xbf16, #tpu.memory_space<vmem>>, %arg5: memref<1x128xf32, #tpu.memory_space<vmem>>, %arg6: memref<1x128xf32, #tpu.memory_space<vmem>>, %arg7: memref<1x128xf32, #tpu.memory_space<vmem>>, %arg8: memref<2x128x384xbf16, #tpu.memory_space<vmem>>, %arg9: memref<2x1x384xf32, #tpu.memory_space<vmem>>, %arg10: memref<2x128x128xbf16, #tpu.memory_space<vmem>>, %arg11: memref<2x1x128xf32, #tpu.memory_space<vmem>>, %arg12: memref<2x1x128xf32, #tpu.memory_space<vmem>>, %arg13: memref<2x1x128xf32, #tpu.memory_space<vmem>>, %arg14: memref<2x128x256xbf16, #tpu.memory_space<vmem>>, %arg15: memref<2x1x256xf32, #tpu.memory_space<vmem>>, %arg16: memref<2x256x128xbf16, #tpu.memory_space<vmem>>, %arg17: memref<2x1x128xf32, #tpu.memory_space<vmem>>, %arg18: memref<2x1x128xf32, #tpu.memory_space<vmem>>, %arg19: memref<2x1x128xf32, #tpu.memory_space<vmem>>, %arg20: memref<128x128xbf16, #tpu.memory_space<vmem>>, %arg21: memref<1x128xf32, #tpu.memory_space<vmem>>, %arg22: memref<128x128xbf16, #tpu.memory_space<vmem>>, %arg23: memref<1x128xf32, #tpu.memory_space<vmem>>, %arg24: memref<128x128xbf16, #tpu.memory_space<vmem>>, %arg25: memref<1x128xf32, #tpu.memory_space<vmem>>, %arg26: memref<2x128xf32, #tpu.memory_space<vmem>>, %arg27: memref<32x128xf32, #tpu.memory_space<vmem>>) attributes {dimension_semantics = [], scalar_prefetch = 0 : i64, scratch_operands = 1 : i64, tpu.core_type = #tpu.core_type<tc>} {
    %c0 = arith.constant 0 : index
    %c0_0 = arith.constant 0 : index
    %0 = vector.load %arg0[%c0, %c0_0] : memref<32x1xi32, #tpu.memory_space<vmem>>, vector<32x1xi32>
    %1 = tpu.iota {dimensions = array<i32: 1>} : vector<32x64xi32>
    %2 = vector.broadcast %0 : vector<32x1xi32> to vector<32x64xi32>
    %3 = arith.cmpi eq, %2, %1 : vector<32x64xi32>
    %4 = arith.extui %3 : vector<32x64xi1> to vector<32x64xi32>
    %5 = arith.sitofp %4 : vector<32x64xi32> to vector<32x64xf32>
    %6 = arith.truncf %5 : vector<32x64xf32> to vector<32x64xbf16>
    %c0_1 = arith.constant 0 : index
    %c0_2 = arith.constant 0 : index
    %7 = vector.load %arg1[%c0_1, %c0_2] : memref<32x1xi32, #tpu.memory_space<vmem>>, vector<32x1xi32>
    %8 = tpu.iota {dimensions = array<i32: 1>} : vector<32x64xi32>
    %9 = vector.broadcast %7 : vector<32x1xi32> to vector<32x64xi32>
    %10 = arith.cmpi eq, %9, %8 : vector<32x64xi32>
    %11 = arith.extui %10 : vector<32x64xi1> to vector<32x64xi32>
    %12 = arith.sitofp %11 : vector<32x64xi32> to vector<32x64xf32>
    %13 = arith.truncf %12 : vector<32x64xf32> to vector<32x64xbf16>
    %c0_3 = arith.constant 0 : index
    %c0_4 = arith.constant 0 : index
    %14 = vector.load %arg3[%c0_3, %c0_4] : memref<64x128xbf16, #tpu.memory_space<vmem>>, vector<64x128xbf16>
    %cst = arith.constant dense<0.000000e+00> : vector<32x128xf32>
    %15 = tpu.matmul %6, %14, %cst {dimension_numbers = #tpu.dot_dimension_numbers<[1], [0], [0], [1], [0, 0, 1, 1], [], []>} : vector<32x64xbf16>, vector<64x128xbf16>, vector<32x128xf32> -> vector<32x128xf32>
    %c0_5 = arith.constant 0 : index
    %c0_6 = arith.constant 0 : index
    %16 = vector.load %arg4[%c0_5, %c0_6] : memref<64x128xbf16, #tpu.memory_space<vmem>>, vector<64x128xbf16>
    %cst_7 = arith.constant dense<0.000000e+00> : vector<32x128xf32>
    %17 = tpu.matmul %13, %16, %cst_7 {dimension_numbers = #tpu.dot_dimension_numbers<[1], [0], [0], [1], [0, 0, 1, 1], [], []>} : vector<32x64xbf16>, vector<64x128xbf16>, vector<32x128xf32> -> vector<32x128xf32>
    %18 = arith.addf %15, %17 : vector<32x128xf32>
    %c0_8 = arith.constant 0 : index
    %c0_9 = arith.constant 0 : index
    %19 = vector.load %arg5[%c0_8, %c0_9] : memref<1x128xf32, #tpu.memory_space<vmem>>, vector<1x128xf32>
    %20 = vector.broadcast %19 : vector<1x128xf32> to vector<32x128xf32>
    %21 = arith.addf %18, %20 : vector<32x128xf32>
    %c0_10 = arith.constant 0 : index
    %c0_11 = arith.constant 0 : index
    %22 = vector.load %arg6[%c0_10, %c0_11] : memref<1x128xf32, #tpu.memory_space<vmem>>, vector<1x128xf32>
    %c0_12 = arith.constant 0 : index
    %c0_13 = arith.constant 0 : index
    %23 = vector.load %arg7[%c0_12, %c0_13] : memref<1x128xf32, #tpu.memory_space<vmem>>, vector<1x128xf32>
    %cst_14 = arith.constant dense<0.000000e+00> : vector<32xf32>
    %24 = vector.multi_reduction <add>, %21, %cst_14 [1] : vector<32x128xf32> to vector<32xf32>
    %25 = vector.shape_cast %24 : vector<32xf32> to vector<32x1xf32>
    %cst_15 = arith.constant 1.280000e+02 : f32
    %26 = vector.broadcast %cst_15 : f32 to vector<32x1xf32>
    %27 = arith.divf %25, %26 : vector<32x1xf32>
    %28 = vector.broadcast %27 : vector<32x1xf32> to vector<32x128xf32>
    %29 = arith.subf %21, %28 : vector<32x128xf32>
    %30 = arith.mulf %29, %29 : vector<32x128xf32>
    %cst_16 = arith.constant dense<0.000000e+00> : vector<32xf32>
    %31 = vector.multi_reduction <add>, %30, %cst_16 [1] : vector<32x128xf32> to vector<32xf32>
    %32 = vector.shape_cast %31 : vector<32xf32> to vector<32x1xf32>
    %cst_17 = arith.constant 1.280000e+02 : f32
    %33 = vector.broadcast %cst_17 : f32 to vector<32x1xf32>
    %34 = arith.divf %32, %33 : vector<32x1xf32>
    %cst_18 = arith.constant 9.99999974E-6 : f32
    %35 = vector.broadcast %cst_18 : f32 to vector<32x1xf32>
    %36 = arith.addf %34, %35 : vector<32x1xf32>
    %37 = math.rsqrt %36 : vector<32x1xf32>
    %38 = vector.broadcast %37 : vector<32x1xf32> to vector<32x128xf32>
    %39 = arith.mulf %29, %38 : vector<32x128xf32>
    %40 = vector.broadcast %22 : vector<1x128xf32> to vector<32x128xf32>
    %41 = arith.mulf %39, %40 : vector<32x128xf32>
    %42 = vector.broadcast %23 : vector<1x128xf32> to vector<32x128xf32>
    %43 = arith.addf %41, %42 : vector<32x128xf32>
    %c0_19 = arith.constant 0 : index
    %c0_20 = arith.constant 0 : index
    %44 = vector.load %arg2[%c0_19, %c0_20] : memref<32x32xf32, #tpu.memory_space<vmem>>, vector<32x32xf32>
    %c0_21 = arith.constant 0 : index
    %c0_22 = arith.constant 0 : index
    %c0_23 = arith.constant 0 : index
    %45 = vector.load %arg8[%c0_21, %c0_22, %c0_23] : memref<2x128x384xbf16, #tpu.memory_space<vmem>>, vector<1x128x384xbf16>
    %46 = vector.shape_cast %45 : vector<1x128x384xbf16> to vector<128x384xbf16>
    %47 = arith.truncf %43 : vector<32x128xf32> to vector<32x128xbf16>
    %cst_24 = arith.constant dense<0.000000e+00> : vector<32x384xf32>
    %48 = tpu.matmul %47, %46, %cst_24 {dimension_numbers = #tpu.dot_dimension_numbers<[1], [0], [0], [1], [0, 0, 1, 1], [], []>} : vector<32x128xbf16>, vector<128x384xbf16>, vector<32x384xf32> -> vector<32x384xf32>
    %c0_25 = arith.constant 0 : index
    %c0_26 = arith.constant 0 : index
    %c0_27 = arith.constant 0 : index
    %49 = vector.load %arg9[%c0_25, %c0_26, %c0_27] : memref<2x1x384xf32, #tpu.memory_space<vmem>>, vector<1x1x384xf32>
    %50 = vector.shape_cast %49 : vector<1x1x384xf32> to vector<1x384xf32>
    %51 = vector.broadcast %50 : vector<1x384xf32> to vector<32x384xf32>
    %52 = arith.addf %48, %51 : vector<32x384xf32>
    %53 = vector.extract_strided_slice %52 {offsets = [0, 0], sizes = [32, 128], strides = [1, 1]} : vector<32x384xf32> to vector<32x128xf32>
    %54 = arith.truncf %53 : vector<32x128xf32> to vector<32x128xbf16>
    %55 = vector.extract_strided_slice %52 {offsets = [0, 128], sizes = [32, 128], strides = [1, 1]} : vector<32x384xf32> to vector<32x128xf32>
    %56 = arith.truncf %55 : vector<32x128xf32> to vector<32x128xbf16>
    %57 = vector.extract_strided_slice %52 {offsets = [0, 256], sizes = [32, 128], strides = [1, 1]} : vector<32x384xf32> to vector<32x128xf32>
    %58 = arith.truncf %57 : vector<32x128xf32> to vector<32x128xbf16>
    %59 = vector.extract_strided_slice %54 {offsets = [0, 0], sizes = [32, 32], strides = [1, 1]} : vector<32x128xbf16> to vector<32x32xbf16>
    %60 = vector.extract_strided_slice %56 {offsets = [0, 0], sizes = [32, 32], strides = [1, 1]} : vector<32x128xbf16> to vector<32x32xbf16>
    %61 = vector.extract_strided_slice %58 {offsets = [0, 0], sizes = [32, 32], strides = [1, 1]} : vector<32x128xbf16> to vector<32x32xbf16>
    %cst_28 = arith.constant dense<0.000000e+00> : vector<32x32xf32>
    %62 = tpu.matmul %59, %60, %cst_28 {dimension_numbers = #tpu.dot_dimension_numbers<[1], [1], [0], [0], [0, 0, 1, 0], [], []>} : vector<32x32xbf16>, vector<32x32xbf16>, vector<32x32xf32> -> vector<32x32xf32>
    %63 = arith.addf %62, %44 : vector<32x32xf32>
    %cst_29 = arith.constant dense<0xFF800000> : vector<32xf32>
    %64 = vector.multi_reduction <maximumf>, %63, %cst_29 [1] : vector<32x32xf32> to vector<32xf32>
    %65 = vector.shape_cast %64 : vector<32xf32> to vector<32x1xf32>
    %66 = vector.broadcast %65 : vector<32x1xf32> to vector<32x32xf32>
    %67 = arith.subf %63, %66 : vector<32x32xf32>
    %68 = math.exp %67 : vector<32x32xf32>
    %cst_30 = arith.constant dense<0.000000e+00> : vector<32xf32>
    %69 = vector.multi_reduction <add>, %68, %cst_30 [1] : vector<32x32xf32> to vector<32xf32>
    %70 = vector.shape_cast %69 : vector<32xf32> to vector<32x1xf32>
    %71 = tpu.reciprocal %70 {approx = true} : vector<32x1xf32> -> vector<32x1xf32>
    %72 = vector.broadcast %71 : vector<32x1xf32> to vector<32x32xf32>
    %73 = arith.mulf %68, %72 : vector<32x32xf32>
    %74 = arith.truncf %73 : vector<32x32xf32> to vector<32x32xbf16>
    %cst_31 = arith.constant dense<0.000000e+00> : vector<32x32xf32>
    %75 = tpu.matmul %74, %61, %cst_31 {dimension_numbers = #tpu.dot_dimension_numbers<[1], [0], [0], [1], [0, 0, 1, 1], [], []>} : vector<32x32xbf16>, vector<32x32xbf16>, vector<32x32xf32> -> vector<32x32xf32>
    %c0_32 = arith.constant 0 : index
    %c0_33 = arith.constant 0 : index
    %76 = vector.load %arg27[%c0_32, %c0_33] : memref<32x128xf32, #tpu.memory_space<vmem>>, vector<32x32xf32>
    tpu.vector_store %arg27[%c0_32, %c0_33], %75 {strides = array<i32>} : memref<32x128xf32, #tpu.memory_space<vmem>>, vector<32x32xf32>,
    %77 = vector.extract_strided_slice %54 {offsets = [0, 32], sizes = [32, 32], strides = [1, 1]} : vector<32x128xbf16> to vector<32x32xbf16>
    %78 = vector.extract_strided_slice %56 {offsets = [0, 32], sizes = [32, 32], strides = [1, 1]} : vector<32x128xbf16> to vector<32x32xbf16>
    %79 = vector.extract_strided_slice %58 {offsets = [0, 32], sizes = [32, 32], strides = [1, 1]} : vector<32x128xbf16> to vector<32x32xbf16>
    %cst_34 = arith.constant dense<0.000000e+00> : vector<32x32xf32>
    %80 = tpu.matmul %77, %78, %cst_34 {dimension_numbers = #tpu.dot_dimension_numbers<[1], [1], [0], [0], [0, 0, 1, 0], [], []>} : vector<32x32xbf16>, vector<32x32xbf16>, vector<32x32xf32> -> vector<32x32xf32>
    %81 = arith.addf %80, %44 : vector<32x32xf32>
    %cst_35 = arith.constant dense<0xFF800000> : vector<32xf32>
    %82 = vector.multi_reduction <maximumf>, %81, %cst_35 [1] : vector<32x32xf32> to vector<32xf32>
    %83 = vector.shape_cast %82 : vector<32xf32> to vector<32x1xf32>
    %84 = vector.broadcast %83 : vector<32x1xf32> to vector<32x32xf32>
    %85 = arith.subf %81, %84 : vector<32x32xf32>
    %86 = math.exp %85 : vector<32x32xf32>
    %cst_36 = arith.constant dense<0.000000e+00> : vector<32xf32>
    %87 = vector.multi_reduction <add>, %86, %cst_36 [1] : vector<32x32xf32> to vector<32xf32>
    %88 = vector.shape_cast %87 : vector<32xf32> to vector<32x1xf32>
    %89 = tpu.reciprocal %88 {approx = true} : vector<32x1xf32> -> vector<32x1xf32>
    %90 = vector.broadcast %89 : vector<32x1xf32> to vector<32x32xf32>
    %91 = arith.mulf %86, %90 : vector<32x32xf32>
    %92 = arith.truncf %91 : vector<32x32xf32> to vector<32x32xbf16>
    %cst_37 = arith.constant dense<0.000000e+00> : vector<32x32xf32>
    %93 = tpu.matmul %92, %79, %cst_37 {dimension_numbers = #tpu.dot_dimension_numbers<[1], [0], [0], [1], [0, 0, 1, 1], [], []>} : vector<32x32xbf16>, vector<32x32xbf16>, vector<32x32xf32> -> vector<32x32xf32>
    %c0_38 = arith.constant 0 : index
    %c32 = arith.constant 32 : index
    %94 = vector.load %arg27[%c0_38, %c32] : memref<32x128xf32, #tpu.memory_space<vmem>>, vector<32x32xf32>
    tpu.vector_store %arg27[%c0_38, %c32], %93 {strides = array<i32>} : memref<32x128xf32, #tpu.memory_space<vmem>>, vector<32x32xf32>,
    %95 = vector.extract_strided_slice %54 {offsets = [0, 64], sizes = [32, 32], strides = [1, 1]} : vector<32x128xbf16> to vector<32x32xbf16>
    %96 = vector.extract_strided_slice %56 {offsets = [0, 64], sizes = [32, 32], strides = [1, 1]} : vector<32x128xbf16> to vector<32x32xbf16>
    %97 = vector.extract_strided_slice %58 {offsets = [0, 64], sizes = [32, 32], strides = [1, 1]} : vector<32x128xbf16> to vector<32x32xbf16>
    %cst_39 = arith.constant dense<0.000000e+00> : vector<32x32xf32>
    %98 = tpu.matmul %95, %96, %cst_39 {dimension_numbers = #tpu.dot_dimension_numbers<[1], [1], [0], [0], [0, 0, 1, 0], [], []>} : vector<32x32xbf16>, vector<32x32xbf16>, vector<32x32xf32> -> vector<32x32xf32>
    %99 = arith.addf %98, %44 : vector<32x32xf32>
    %cst_40 = arith.constant dense<0xFF800000> : vector<32xf32>
    %100 = vector.multi_reduction <maximumf>, %99, %cst_40 [1] : vector<32x32xf32> to vector<32xf32>
    %101 = vector.shape_cast %100 : vector<32xf32> to vector<32x1xf32>
    %102 = vector.broadcast %101 : vector<32x1xf32> to vector<32x32xf32>
    %103 = arith.subf %99, %102 : vector<32x32xf32>
    %104 = math.exp %103 : vector<32x32xf32>
    %cst_41 = arith.constant dense<0.000000e+00> : vector<32xf32>
    %105 = vector.multi_reduction <add>, %104, %cst_41 [1] : vector<32x32xf32> to vector<32xf32>
    %106 = vector.shape_cast %105 : vector<32xf32> to vector<32x1xf32>
    %107 = tpu.reciprocal %106 {approx = true} : vector<32x1xf32> -> vector<32x1xf32>
    %108 = vector.broadcast %107 : vector<32x1xf32> to vector<32x32xf32>
    %109 = arith.mulf %104, %108 : vector<32x32xf32>
    %110 = arith.truncf %109 : vector<32x32xf32> to vector<32x32xbf16>
    %cst_42 = arith.constant dense<0.000000e+00> : vector<32x32xf32>
    %111 = tpu.matmul %110, %97, %cst_42 {dimension_numbers = #tpu.dot_dimension_numbers<[1], [0], [0], [1], [0, 0, 1, 1], [], []>} : vector<32x32xbf16>, vector<32x32xbf16>, vector<32x32xf32> -> vector<32x32xf32>
    %c0_43 = arith.constant 0 : index
    %c64 = arith.constant 64 : index
    %112 = vector.load %arg27[%c0_43, %c64] : memref<32x128xf32, #tpu.memory_space<vmem>>, vector<32x32xf32>
    tpu.vector_store %arg27[%c0_43, %c64], %111 {strides = array<i32>} : memref<32x128xf32, #tpu.memory_space<vmem>>, vector<32x32xf32>,
    %113 = vector.extract_strided_slice %54 {offsets = [0, 96], sizes = [32, 32], strides = [1, 1]} : vector<32x128xbf16> to vector<32x32xbf16>
    %114 = vector.extract_strided_slice %56 {offsets = [0, 96], sizes = [32, 32], strides = [1, 1]} : vector<32x128xbf16> to vector<32x32xbf16>
    %115 = vector.extract_strided_slice %58 {offsets = [0, 96], sizes = [32, 32], strides = [1, 1]} : vector<32x128xbf16> to vector<32x32xbf16>
    %cst_44 = arith.constant dense<0.000000e+00> : vector<32x32xf32>
    %116 = tpu.matmul %113, %114, %cst_44 {dimension_numbers = #tpu.dot_dimension_numbers<[1], [1], [0], [0], [0, 0, 1, 0], [], []>} : vector<32x32xbf16>, vector<32x32xbf16>, vector<32x32xf32> -> vector<32x32xf32>
    %117 = arith.addf %116, %44 : vector<32x32xf32>
    %cst_45 = arith.constant dense<0xFF800000> : vector<32xf32>
    %118 = vector.multi_reduction <maximumf>, %117, %cst_45 [1] : vector<32x32xf32> to vector<32xf32>
    %119 = vector.shape_cast %118 : vector<32xf32> to vector<32x1xf32>
    %120 = vector.broadcast %119 : vector<32x1xf32> to vector<32x32xf32>
    %121 = arith.subf %117, %120 : vector<32x32xf32>
    %122 = math.exp %121 : vector<32x32xf32>
    %cst_46 = arith.constant dense<0.000000e+00> : vector<32xf32>
    %123 = vector.multi_reduction <add>, %122, %cst_46 [1] : vector<32x32xf32> to vector<32xf32>
    %124 = vector.shape_cast %123 : vector<32xf32> to vector<32x1xf32>
    %125 = tpu.reciprocal %124 {approx = true} : vector<32x1xf32> -> vector<32x1xf32>
    %126 = vector.broadcast %125 : vector<32x1xf32> to vector<32x32xf32>
    %127 = arith.mulf %122, %126 : vector<32x32xf32>
    %128 = arith.truncf %127 : vector<32x32xf32> to vector<32x32xbf16>
    %cst_47 = arith.constant dense<0.000000e+00> : vector<32x32xf32>
    %129 = tpu.matmul %128, %115, %cst_47 {dimension_numbers = #tpu.dot_dimension_numbers<[1], [0], [0], [1], [0, 0, 1, 1], [], []>} : vector<32x32xbf16>, vector<32x32xbf16>, vector<32x32xf32> -> vector<32x32xf32>
    %c0_48 = arith.constant 0 : index
    %c96 = arith.constant 96 : index
    %130 = vector.load %arg27[%c0_48, %c96] : memref<32x128xf32, #tpu.memory_space<vmem>>, vector<32x32xf32>
    tpu.vector_store %arg27[%c0_48, %c96], %129 {strides = array<i32>} : memref<32x128xf32, #tpu.memory_space<vmem>>, vector<32x32xf32>,
    %c0_49 = arith.constant 0 : index
    %c0_50 = arith.constant 0 : index
    %131 = vector.load %arg27[%c0_49, %c0_50] : memref<32x128xf32, #tpu.memory_space<vmem>>, vector<32x128xf32>
    %c0_51 = arith.constant 0 : index
    %c0_52 = arith.constant 0 : index
    %c0_53 = arith.constant 0 : index
    %132 = vector.load %arg10[%c0_51, %c0_52, %c0_53] : memref<2x128x128xbf16, #tpu.memory_space<vmem>>, vector<1x128x128xbf16>
    %133 = vector.shape_cast %132 : vector<1x128x128xbf16> to vector<128x128xbf16>
    %134 = arith.truncf %131 : vector<32x128xf32> to vector<32x128xbf16>
    %cst_54 = arith.constant dense<0.000000e+00> : vector<32x128xf32>
    %135 = tpu.matmul %134, %133, %cst_54 {dimension_numbers = #tpu.dot_dimension_numbers<[1], [0], [0], [1], [0, 0, 1, 1], [], []>} : vector<32x128xbf16>, vector<128x128xbf16>, vector<32x128xf32> -> vector<32x128xf32>
    %c0_55 = arith.constant 0 : index
    %c0_56 = arith.constant 0 : index
    %c0_57 = arith.constant 0 : index
    %136 = vector.load %arg11[%c0_55, %c0_56, %c0_57] : memref<2x1x128xf32, #tpu.memory_space<vmem>>, vector<1x1x128xf32>
    %137 = vector.shape_cast %136 : vector<1x1x128xf32> to vector<1x128xf32>
    %138 = vector.broadcast %137 : vector<1x128xf32> to vector<32x128xf32>
    %139 = arith.addf %135, %138 : vector<32x128xf32>
    %140 = arith.addf %139, %43 : vector<32x128xf32>
    %c0_58 = arith.constant 0 : index
    %c0_59 = arith.constant 0 : index
    %c0_60 = arith.constant 0 : index
    %141 = vector.load %arg12[%c0_58, %c0_59, %c0_60] : memref<2x1x128xf32, #tpu.memory_space<vmem>>, vector<1x1x128xf32>
    %142 = vector.shape_cast %141 : vector<1x1x128xf32> to vector<1x128xf32>
    %c0_61 = arith.constant 0 : index
    %c0_62 = arith.constant 0 : index
    %c0_63 = arith.constant 0 : index
    %143 = vector.load %arg13[%c0_61, %c0_62, %c0_63] : memref<2x1x128xf32, #tpu.memory_space<vmem>>, vector<1x1x128xf32>
    %144 = vector.shape_cast %143 : vector<1x1x128xf32> to vector<1x128xf32>
    %cst_64 = arith.constant dense<0.000000e+00> : vector<32xf32>
    %145 = vector.multi_reduction <add>, %140, %cst_64 [1] : vector<32x128xf32> to vector<32xf32>
    %146 = vector.shape_cast %145 : vector<32xf32> to vector<32x1xf32>
    %cst_65 = arith.constant 1.280000e+02 : f32
    %147 = vector.broadcast %cst_65 : f32 to vector<32x1xf32>
    %148 = arith.divf %146, %147 : vector<32x1xf32>
    %149 = vector.broadcast %148 : vector<32x1xf32> to vector<32x128xf32>
    %150 = arith.subf %140, %149 : vector<32x128xf32>
    %151 = arith.mulf %150, %150 : vector<32x128xf32>
    %cst_66 = arith.constant dense<0.000000e+00> : vector<32xf32>
    %152 = vector.multi_reduction <add>, %151, %cst_66 [1] : vector<32x128xf32> to vector<32xf32>
    %153 = vector.shape_cast %152 : vector<32xf32> to vector<32x1xf32>
    %cst_67 = arith.constant 1.280000e+02 : f32
    %154 = vector.broadcast %cst_67 : f32 to vector<32x1xf32>
    %155 = arith.divf %153, %154 : vector<32x1xf32>
    %cst_68 = arith.constant 9.99999974E-6 : f32
    %156 = vector.broadcast %cst_68 : f32 to vector<32x1xf32>
    %157 = arith.addf %155, %156 : vector<32x1xf32>
    %158 = math.rsqrt %157 : vector<32x1xf32>
    %159 = vector.broadcast %158 : vector<32x1xf32> to vector<32x128xf32>
    %160 = arith.mulf %150, %159 : vector<32x128xf32>
    %161 = vector.broadcast %142 : vector<1x128xf32> to vector<32x128xf32>
    %162 = arith.mulf %160, %161 : vector<32x128xf32>
    %163 = vector.broadcast %144 : vector<1x128xf32> to vector<32x128xf32>
    %164 = arith.addf %162, %163 : vector<32x128xf32>
    %c0_69 = arith.constant 0 : index
    %c0_70 = arith.constant 0 : index
    %c0_71 = arith.constant 0 : index
    %165 = vector.load %arg14[%c0_69, %c0_70, %c0_71] : memref<2x128x256xbf16, #tpu.memory_space<vmem>>, vector<1x128x256xbf16>
    %166 = vector.shape_cast %165 : vector<1x128x256xbf16> to vector<128x256xbf16>
    %167 = arith.truncf %164 : vector<32x128xf32> to vector<32x128xbf16>
    %cst_72 = arith.constant dense<0.000000e+00> : vector<32x256xf32>
    %168 = tpu.matmul %167, %166, %cst_72 {dimension_numbers = #tpu.dot_dimension_numbers<[1], [0], [0], [1], [0, 0, 1, 1], [], []>} : vector<32x128xbf16>, vector<128x256xbf16>, vector<32x256xf32> -> vector<32x256xf32>
    %c0_73 = arith.constant 0 : index
    %c0_74 = arith.constant 0 : index
    %c0_75 = arith.constant 0 : index
    %169 = vector.load %arg15[%c0_73, %c0_74, %c0_75] : memref<2x1x256xf32, #tpu.memory_space<vmem>>, vector<1x1x256xf32>
    %170 = vector.shape_cast %169 : vector<1x1x256xf32> to vector<1x256xf32>
    %171 = vector.broadcast %170 : vector<1x256xf32> to vector<32x256xf32>
    %172 = arith.addf %168, %171 : vector<32x256xf32>
    %cst_76 = arith.constant 5.000000e-01 : f32
    %173 = vector.broadcast %cst_76 : f32 to vector<32x256xf32>
    %174 = arith.mulf %173, %172 : vector<32x256xf32>
    %cst_77 = arith.constant 4.471500e-02 : f32
    %175 = vector.broadcast %cst_77 : f32 to vector<32x256xf32>
    %176 = arith.mulf %175, %172 : vector<32x256xf32>
    %177 = arith.mulf %176, %172 : vector<32x256xf32>
    %178 = arith.mulf %177, %172 : vector<32x256xf32>
    %179 = arith.addf %172, %178 : vector<32x256xf32>
    %cst_78 = arith.constant 0.797884583 : f32
    %180 = vector.broadcast %cst_78 : f32 to vector<32x256xf32>
    %181 = arith.mulf %180, %179 : vector<32x256xf32>
    %182 = math.tanh %181 : vector<32x256xf32>
    %cst_79 = arith.constant 1.000000e+00 : f32
    %183 = vector.broadcast %cst_79 : f32 to vector<32x256xf32>
    %184 = arith.addf %183, %182 : vector<32x256xf32>
    %185 = arith.mulf %174, %184 : vector<32x256xf32>
    %c0_80 = arith.constant 0 : index
    %c0_81 = arith.constant 0 : index
    %c0_82 = arith.constant 0 : index
    %186 = vector.load %arg16[%c0_80, %c0_81, %c0_82] : memref<2x256x128xbf16, #tpu.memory_space<vmem>>, vector<1x256x128xbf16>
    %187 = vector.shape_cast %186 : vector<1x256x128xbf16> to vector<256x128xbf16>
    %188 = arith.truncf %185 : vector<32x256xf32> to vector<32x256xbf16>
    %cst_83 = arith.constant dense<0.000000e+00> : vector<32x128xf32>
    %189 = tpu.matmul %188, %187, %cst_83 {dimension_numbers = #tpu.dot_dimension_numbers<[1], [0], [0], [1], [0, 0, 1, 1], [], []>} : vector<32x256xbf16>, vector<256x128xbf16>, vector<32x128xf32> -> vector<32x128xf32>
    %c0_84 = arith.constant 0 : index
    %c0_85 = arith.constant 0 : index
    %c0_86 = arith.constant 0 : index
    %190 = vector.load %arg17[%c0_84, %c0_85, %c0_86] : memref<2x1x128xf32, #tpu.memory_space<vmem>>, vector<1x1x128xf32>
    %191 = vector.shape_cast %190 : vector<1x1x128xf32> to vector<1x128xf32>
    %192 = vector.broadcast %191 : vector<1x128xf32> to vector<32x128xf32>
    %193 = arith.addf %189, %192 : vector<32x128xf32>
    %194 = arith.addf %193, %164 : vector<32x128xf32>
    %c0_87 = arith.constant 0 : index
    %c0_88 = arith.constant 0 : index
    %c0_89 = arith.constant 0 : index
    %195 = vector.load %arg18[%c0_87, %c0_88, %c0_89] : memref<2x1x128xf32, #tpu.memory_space<vmem>>, vector<1x1x128xf32>
    %196 = vector.shape_cast %195 : vector<1x1x128xf32> to vector<1x128xf32>
    %c0_90 = arith.constant 0 : index
    %c0_91 = arith.constant 0 : index
    %c0_92 = arith.constant 0 : index
    %197 = vector.load %arg19[%c0_90, %c0_91, %c0_92] : memref<2x1x128xf32, #tpu.memory_space<vmem>>, vector<1x1x128xf32>
    %198 = vector.shape_cast %197 : vector<1x1x128xf32> to vector<1x128xf32>
    %cst_93 = arith.constant dense<0.000000e+00> : vector<32xf32>
    %199 = vector.multi_reduction <add>, %194, %cst_93 [1] : vector<32x128xf32> to vector<32xf32>
    %200 = vector.shape_cast %199 : vector<32xf32> to vector<32x1xf32>
    %cst_94 = arith.constant 1.280000e+02 : f32
    %201 = vector.broadcast %cst_94 : f32 to vector<32x1xf32>
    %202 = arith.divf %200, %201 : vector<32x1xf32>
    %203 = vector.broadcast %202 : vector<32x1xf32> to vector<32x128xf32>
    %204 = arith.subf %194, %203 : vector<32x128xf32>
    %205 = arith.mulf %204, %204 : vector<32x128xf32>
    %cst_95 = arith.constant dense<0.000000e+00> : vector<32xf32>
    %206 = vector.multi_reduction <add>, %205, %cst_95 [1] : vector<32x128xf32> to vector<32xf32>
    %207 = vector.shape_cast %206 : vector<32xf32> to vector<32x1xf32>
    %cst_96 = arith.constant 1.280000e+02 : f32
    %208 = vector.broadcast %cst_96 : f32 to vector<32x1xf32>
    %209 = arith.divf %207, %208 : vector<32x1xf32>
    %cst_97 = arith.constant 9.99999974E-6 : f32
    %210 = vector.broadcast %cst_97 : f32 to vector<32x1xf32>
    %211 = arith.addf %209, %210 : vector<32x1xf32>
    %212 = math.rsqrt %211 : vector<32x1xf32>
    %213 = vector.broadcast %212 : vector<32x1xf32> to vector<32x128xf32>
    %214 = arith.mulf %204, %213 : vector<32x128xf32>
    %215 = vector.broadcast %196 : vector<1x128xf32> to vector<32x128xf32>
    %216 = arith.mulf %214, %215 : vector<32x128xf32>
    %217 = vector.broadcast %198 : vector<1x128xf32> to vector<32x128xf32>
    %218 = arith.addf %216, %217 : vector<32x128xf32>
    %c1 = arith.constant 1 : index
    %c0_98 = arith.constant 0 : index
    %c0_99 = arith.constant 0 : index
    %219 = vector.load %arg8[%c1, %c0_98, %c0_99] : memref<2x128x384xbf16, #tpu.memory_space<vmem>>, vector<1x128x384xbf16>
    %220 = vector.shape_cast %219 : vector<1x128x384xbf16> to vector<128x384xbf16>
    %221 = arith.truncf %218 : vector<32x128xf32> to vector<32x128xbf16>
    %cst_100 = arith.constant dense<0.000000e+00> : vector<32x384xf32>
    %222 = tpu.matmul %221, %220, %cst_100 {dimension_numbers = #tpu.dot_dimension_numbers<[1], [0], [0], [1], [0, 0, 1, 1], [], []>} : vector<32x128xbf16>, vector<128x384xbf16>, vector<32x384xf32> -> vector<32x384xf32>
    %c1_101 = arith.constant 1 : index
    %c0_102 = arith.constant 0 : index
    %c0_103 = arith.constant 0 : index
    %223 = vector.load %arg9[%c1_101, %c0_102, %c0_103] : memref<2x1x384xf32, #tpu.memory_space<vmem>>, vector<1x1x384xf32>
    %224 = vector.shape_cast %223 : vector<1x1x384xf32> to vector<1x384xf32>
    %225 = vector.broadcast %224 : vector<1x384xf32> to vector<32x384xf32>
    %226 = arith.addf %222, %225 : vector<32x384xf32>
    %227 = vector.extract_strided_slice %226 {offsets = [0, 0], sizes = [32, 128], strides = [1, 1]} : vector<32x384xf32> to vector<32x128xf32>
    %228 = arith.truncf %227 : vector<32x128xf32> to vector<32x128xbf16>
    %229 = vector.extract_strided_slice %226 {offsets = [0, 128], sizes = [32, 128], strides = [1, 1]} : vector<32x384xf32> to vector<32x128xf32>
    %230 = arith.truncf %229 : vector<32x128xf32> to vector<32x128xbf16>
    %231 = vector.extract_strided_slice %226 {offsets = [0, 256], sizes = [32, 128], strides = [1, 1]} : vector<32x384xf32> to vector<32x128xf32>
    %232 = arith.truncf %231 : vector<32x128xf32> to vector<32x128xbf16>
    %233 = vector.extract_strided_slice %228 {offsets = [0, 0], sizes = [32, 32], strides = [1, 1]} : vector<32x128xbf16> to vector<32x32xbf16>
    %234 = vector.extract_strided_slice %230 {offsets = [0, 0], sizes = [32, 32], strides = [1, 1]} : vector<32x128xbf16> to vector<32x32xbf16>
    %235 = vector.extract_strided_slice %232 {offsets = [0, 0], sizes = [32, 32], strides = [1, 1]} : vector<32x128xbf16> to vector<32x32xbf16>
    %cst_104 = arith.constant dense<0.000000e+00> : vector<32x32xf32>
    %236 = tpu.matmul %233, %234, %cst_104 {dimension_numbers = #tpu.dot_dimension_numbers<[1], [1], [0], [0], [0, 0, 1, 0], [], []>} : vector<32x32xbf16>, vector<32x32xbf16>, vector<32x32xf32> -> vector<32x32xf32>
    %237 = arith.addf %236, %44 : vector<32x32xf32>
    %cst_105 = arith.constant dense<0xFF800000> : vector<32xf32>
    %238 = vector.multi_reduction <maximumf>, %237, %cst_105 [1] : vector<32x32xf32> to vector<32xf32>
    %239 = vector.shape_cast %238 : vector<32xf32> to vector<32x1xf32>
    %240 = vector.broadcast %239 : vector<32x1xf32> to vector<32x32xf32>
    %241 = arith.subf %237, %240 : vector<32x32xf32>
    %242 = math.exp %241 : vector<32x32xf32>
    %cst_106 = arith.constant dense<0.000000e+00> : vector<32xf32>
    %243 = vector.multi_reduction <add>, %242, %cst_106 [1] : vector<32x32xf32> to vector<32xf32>
    %244 = vector.shape_cast %243 : vector<32xf32> to vector<32x1xf32>
    %245 = tpu.reciprocal %244 {approx = true} : vector<32x1xf32> -> vector<32x1xf32>
    %246 = vector.broadcast %245 : vector<32x1xf32> to vector<32x32xf32>
    %247 = arith.mulf %242, %246 : vector<32x32xf32>
    %248 = arith.truncf %247 : vector<32x32xf32> to vector<32x32xbf16>
    %cst_107 = arith.constant dense<0.000000e+00> : vector<32x32xf32>
    %249 = tpu.matmul %248, %235, %cst_107 {dimension_numbers = #tpu.dot_dimension_numbers<[1], [0], [0], [1], [0, 0, 1, 1], [], []>} : vector<32x32xbf16>, vector<32x32xbf16>, vector<32x32xf32> -> vector<32x32xf32>
    %c0_108 = arith.constant 0 : index
    %c0_109 = arith.constant 0 : index
    %250 = vector.load %arg27[%c0_108, %c0_109] : memref<32x128xf32, #tpu.memory_space<vmem>>, vector<32x32xf32>
    tpu.vector_store %arg27[%c0_108, %c0_109], %249 {strides = array<i32>} : memref<32x128xf32, #tpu.memory_space<vmem>>, vector<32x32xf32>,
    %251 = vector.extract_strided_slice %228 {offsets = [0, 32], sizes = [32, 32], strides = [1, 1]} : vector<32x128xbf16> to vector<32x32xbf16>
    %252 = vector.extract_strided_slice %230 {offsets = [0, 32], sizes = [32, 32], strides = [1, 1]} : vector<32x128xbf16> to vector<32x32xbf16>
    %253 = vector.extract_strided_slice %232 {offsets = [0, 32], sizes = [32, 32], strides = [1, 1]} : vector<32x128xbf16> to vector<32x32xbf16>
    %cst_110 = arith.constant dense<0.000000e+00> : vector<32x32xf32>
    %254 = tpu.matmul %251, %252, %cst_110 {dimension_numbers = #tpu.dot_dimension_numbers<[1], [1], [0], [0], [0, 0, 1, 0], [], []>} : vector<32x32xbf16>, vector<32x32xbf16>, vector<32x32xf32> -> vector<32x32xf32>
    %255 = arith.addf %254, %44 : vector<32x32xf32>
    %cst_111 = arith.constant dense<0xFF800000> : vector<32xf32>
    %256 = vector.multi_reduction <maximumf>, %255, %cst_111 [1] : vector<32x32xf32> to vector<32xf32>
    %257 = vector.shape_cast %256 : vector<32xf32> to vector<32x1xf32>
    %258 = vector.broadcast %257 : vector<32x1xf32> to vector<32x32xf32>
    %259 = arith.subf %255, %258 : vector<32x32xf32>
    %260 = math.exp %259 : vector<32x32xf32>
    %cst_112 = arith.constant dense<0.000000e+00> : vector<32xf32>
    %261 = vector.multi_reduction <add>, %260, %cst_112 [1] : vector<32x32xf32> to vector<32xf32>
    %262 = vector.shape_cast %261 : vector<32xf32> to vector<32x1xf32>
    %263 = tpu.reciprocal %262 {approx = true} : vector<32x1xf32> -> vector<32x1xf32>
    %264 = vector.broadcast %263 : vector<32x1xf32> to vector<32x32xf32>
    %265 = arith.mulf %260, %264 : vector<32x32xf32>
    %266 = arith.truncf %265 : vector<32x32xf32> to vector<32x32xbf16>
    %cst_113 = arith.constant dense<0.000000e+00> : vector<32x32xf32>
    %267 = tpu.matmul %266, %253, %cst_113 {dimension_numbers = #tpu.dot_dimension_numbers<[1], [0], [0], [1], [0, 0, 1, 1], [], []>} : vector<32x32xbf16>, vector<32x32xbf16>, vector<32x32xf32> -> vector<32x32xf32>
    %c0_114 = arith.constant 0 : index
    %c32_115 = arith.constant 32 : index
    %268 = vector.load %arg27[%c0_114, %c32_115] : memref<32x128xf32, #tpu.memory_space<vmem>>, vector<32x32xf32>
    tpu.vector_store %arg27[%c0_114, %c32_115], %267 {strides = array<i32>} : memref<32x128xf32, #tpu.memory_space<vmem>>, vector<32x32xf32>,
    %269 = vector.extract_strided_slice %228 {offsets = [0, 64], sizes = [32, 32], strides = [1, 1]} : vector<32x128xbf16> to vector<32x32xbf16>
    %270 = vector.extract_strided_slice %230 {offsets = [0, 64], sizes = [32, 32], strides = [1, 1]} : vector<32x128xbf16> to vector<32x32xbf16>
    %271 = vector.extract_strided_slice %232 {offsets = [0, 64], sizes = [32, 32], strides = [1, 1]} : vector<32x128xbf16> to vector<32x32xbf16>
    %cst_116 = arith.constant dense<0.000000e+00> : vector<32x32xf32>
    %272 = tpu.matmul %269, %270, %cst_116 {dimension_numbers = #tpu.dot_dimension_numbers<[1], [1], [0], [0], [0, 0, 1, 0], [], []>} : vector<32x32xbf16>, vector<32x32xbf16>, vector<32x32xf32> -> vector<32x32xf32>
    %273 = arith.addf %272, %44 : vector<32x32xf32>
    %cst_117 = arith.constant dense<0xFF800000> : vector<32xf32>
    %274 = vector.multi_reduction <maximumf>, %273, %cst_117 [1] : vector<32x32xf32> to vector<32xf32>
    %275 = vector.shape_cast %274 : vector<32xf32> to vector<32x1xf32>
    %276 = vector.broadcast %275 : vector<32x1xf32> to vector<32x32xf32>
    %277 = arith.subf %273, %276 : vector<32x32xf32>
    %278 = math.exp %277 : vector<32x32xf32>
    %cst_118 = arith.constant dense<0.000000e+00> : vector<32xf32>
    %279 = vector.multi_reduction <add>, %278, %cst_118 [1] : vector<32x32xf32> to vector<32xf32>
    %280 = vector.shape_cast %279 : vector<32xf32> to vector<32x1xf32>
    %281 = tpu.reciprocal %280 {approx = true} : vector<32x1xf32> -> vector<32x1xf32>
    %282 = vector.broadcast %281 : vector<32x1xf32> to vector<32x32xf32>
    %283 = arith.mulf %278, %282 : vector<32x32xf32>
    %284 = arith.truncf %283 : vector<32x32xf32> to vector<32x32xbf16>
    %cst_119 = arith.constant dense<0.000000e+00> : vector<32x32xf32>
    %285 = tpu.matmul %284, %271, %cst_119 {dimension_numbers = #tpu.dot_dimension_numbers<[1], [0], [0], [1], [0, 0, 1, 1], [], []>} : vector<32x32xbf16>, vector<32x32xbf16>, vector<32x32xf32> -> vector<32x32xf32>
    %c0_120 = arith.constant 0 : index
    %c64_121 = arith.constant 64 : index
    %286 = vector.load %arg27[%c0_120, %c64_121] : memref<32x128xf32, #tpu.memory_space<vmem>>, vector<32x32xf32>
    tpu.vector_store %arg27[%c0_120, %c64_121], %285 {strides = array<i32>} : memref<32x128xf32, #tpu.memory_space<vmem>>, vector<32x32xf32>,
    %287 = vector.extract_strided_slice %228 {offsets = [0, 96], sizes = [32, 32], strides = [1, 1]} : vector<32x128xbf16> to vector<32x32xbf16>
    %288 = vector.extract_strided_slice %230 {offsets = [0, 96], sizes = [32, 32], strides = [1, 1]} : vector<32x128xbf16> to vector<32x32xbf16>
    %289 = vector.extract_strided_slice %232 {offsets = [0, 96], sizes = [32, 32], strides = [1, 1]} : vector<32x128xbf16> to vector<32x32xbf16>
    %cst_122 = arith.constant dense<0.000000e+00> : vector<32x32xf32>
    %290 = tpu.matmul %287, %288, %cst_122 {dimension_numbers = #tpu.dot_dimension_numbers<[1], [1], [0], [0], [0, 0, 1, 0], [], []>} : vector<32x32xbf16>, vector<32x32xbf16>, vector<32x32xf32> -> vector<32x32xf32>
    %291 = arith.addf %290, %44 : vector<32x32xf32>
    %cst_123 = arith.constant dense<0xFF800000> : vector<32xf32>
    %292 = vector.multi_reduction <maximumf>, %291, %cst_123 [1] : vector<32x32xf32> to vector<32xf32>
    %293 = vector.shape_cast %292 : vector<32xf32> to vector<32x1xf32>
    %294 = vector.broadcast %293 : vector<32x1xf32> to vector<32x32xf32>
    %295 = arith.subf %291, %294 : vector<32x32xf32>
    %296 = math.exp %295 : vector<32x32xf32>
    %cst_124 = arith.constant dense<0.000000e+00> : vector<32xf32>
    %297 = vector.multi_reduction <add>, %296, %cst_124 [1] : vector<32x32xf32> to vector<32xf32>
    %298 = vector.shape_cast %297 : vector<32xf32> to vector<32x1xf32>
    %299 = tpu.reciprocal %298 {approx = true} : vector<32x1xf32> -> vector<32x1xf32>
    %300 = vector.broadcast %299 : vector<32x1xf32> to vector<32x32xf32>
    %301 = arith.mulf %296, %300 : vector<32x32xf32>
    %302 = arith.truncf %301 : vector<32x32xf32> to vector<32x32xbf16>
    %cst_125 = arith.constant dense<0.000000e+00> : vector<32x32xf32>
    %303 = tpu.matmul %302, %289, %cst_125 {dimension_numbers = #tpu.dot_dimension_numbers<[1], [0], [0], [1], [0, 0, 1, 1], [], []>} : vector<32x32xbf16>, vector<32x32xbf16>, vector<32x32xf32> -> vector<32x32xf32>
    %c0_126 = arith.constant 0 : index
    %c96_127 = arith.constant 96 : index
    %304 = vector.load %arg27[%c0_126, %c96_127] : memref<32x128xf32, #tpu.memory_space<vmem>>, vector<32x32xf32>
    tpu.vector_store %arg27[%c0_126, %c96_127], %303 {strides = array<i32>} : memref<32x128xf32, #tpu.memory_space<vmem>>, vector<32x32xf32>,
    %c0_128 = arith.constant 0 : index
    %c0_129 = arith.constant 0 : index
    %305 = vector.load %arg27[%c0_128, %c0_129] : memref<32x128xf32, #tpu.memory_space<vmem>>, vector<32x128xf32>
    %c1_130 = arith.constant 1 : index
    %c0_131 = arith.constant 0 : index
    %c0_132 = arith.constant 0 : index
    %306 = vector.load %arg10[%c1_130, %c0_131, %c0_132] : memref<2x128x128xbf16, #tpu.memory_space<vmem>>, vector<1x128x128xbf16>
    %307 = vector.shape_cast %306 : vector<1x128x128xbf16> to vector<128x128xbf16>
    %308 = arith.truncf %305 : vector<32x128xf32> to vector<32x128xbf16>
    %cst_133 = arith.constant dense<0.000000e+00> : vector<32x128xf32>
    %309 = tpu.matmul %308, %307, %cst_133 {dimension_numbers = #tpu.dot_dimension_numbers<[1], [0], [0], [1], [0, 0, 1, 1], [], []>} : vector<32x128xbf16>, vector<128x128xbf16>, vector<32x128xf32> -> vector<32x128xf32>
    %c1_134 = arith.constant 1 : index
    %c0_135 = arith.constant 0 : index
    %c0_136 = arith.constant 0 : index
    %310 = vector.load %arg11[%c1_134, %c0_135, %c0_136] : memref<2x1x128xf32, #tpu.memory_space<vmem>>, vector<1x1x128xf32>
    %311 = vector.shape_cast %310 : vector<1x1x128xf32> to vector<1x128xf32>
    %312 = vector.broadcast %311 : vector<1x128xf32> to vector<32x128xf32>
    %313 = arith.addf %309, %312 : vector<32x128xf32>
    %314 = arith.addf %313, %218 : vector<32x128xf32>
    %c1_137 = arith.constant 1 : index
    %c0_138 = arith.constant 0 : index
    %c0_139 = arith.constant 0 : index
    %315 = vector.load %arg12[%c1_137, %c0_138, %c0_139] : memref<2x1x128xf32, #tpu.memory_space<vmem>>, vector<1x1x128xf32>
    %316 = vector.shape_cast %315 : vector<1x1x128xf32> to vector<1x128xf32>
    %c1_140 = arith.constant 1 : index
    %c0_141 = arith.constant 0 : index
    %c0_142 = arith.constant 0 : index
    %317 = vector.load %arg13[%c1_140, %c0_141, %c0_142] : memref<2x1x128xf32, #tpu.memory_space<vmem>>, vector<1x1x128xf32>
    %318 = vector.shape_cast %317 : vector<1x1x128xf32> to vector<1x128xf32>
    %cst_143 = arith.constant dense<0.000000e+00> : vector<32xf32>
    %319 = vector.multi_reduction <add>, %314, %cst_143 [1] : vector<32x128xf32> to vector<32xf32>
    %320 = vector.shape_cast %319 : vector<32xf32> to vector<32x1xf32>
    %cst_144 = arith.constant 1.280000e+02 : f32
    %321 = vector.broadcast %cst_144 : f32 to vector<32x1xf32>
    %322 = arith.divf %320, %321 : vector<32x1xf32>
    %323 = vector.broadcast %322 : vector<32x1xf32> to vector<32x128xf32>
    %324 = arith.subf %314, %323 : vector<32x128xf32>
    %325 = arith.mulf %324, %324 : vector<32x128xf32>
    %cst_145 = arith.constant dense<0.000000e+00> : vector<32xf32>
    %326 = vector.multi_reduction <add>, %325, %cst_145 [1] : vector<32x128xf32> to vector<32xf32>
    %327 = vector.shape_cast %326 : vector<32xf32> to vector<32x1xf32>
    %cst_146 = arith.constant 1.280000e+02 : f32
    %328 = vector.broadcast %cst_146 : f32 to vector<32x1xf32>
    %329 = arith.divf %327, %328 : vector<32x1xf32>
    %cst_147 = arith.constant 9.99999974E-6 : f32
    %330 = vector.broadcast %cst_147 : f32 to vector<32x1xf32>
    %331 = arith.addf %329, %330 : vector<32x1xf32>
    %332 = math.rsqrt %331 : vector<32x1xf32>
    %333 = vector.broadcast %332 : vector<32x1xf32> to vector<32x128xf32>
    %334 = arith.mulf %324, %333 : vector<32x128xf32>
    %335 = vector.broadcast %316 : vector<1x128xf32> to vector<32x128xf32>
    %336 = arith.mulf %334, %335 : vector<32x128xf32>
    %337 = vector.broadcast %318 : vector<1x128xf32> to vector<32x128xf32>
    %338 = arith.addf %336, %337 : vector<32x128xf32>
    %c1_148 = arith.constant 1 : index
    %c0_149 = arith.constant 0 : index
    %c0_150 = arith.constant 0 : index
    %339 = vector.load %arg14[%c1_148, %c0_149, %c0_150] : memref<2x128x256xbf16, #tpu.memory_space<vmem>>, vector<1x128x256xbf16>
    %340 = vector.shape_cast %339 : vector<1x128x256xbf16> to vector<128x256xbf16>
    %341 = arith.truncf %338 : vector<32x128xf32> to vector<32x128xbf16>
    %cst_151 = arith.constant dense<0.000000e+00> : vector<32x256xf32>
    %342 = tpu.matmul %341, %340, %cst_151 {dimension_numbers = #tpu.dot_dimension_numbers<[1], [0], [0], [1], [0, 0, 1, 1], [], []>} : vector<32x128xbf16>, vector<128x256xbf16>, vector<32x256xf32> -> vector<32x256xf32>
    %c1_152 = arith.constant 1 : index
    %c0_153 = arith.constant 0 : index
    %c0_154 = arith.constant 0 : index
    %343 = vector.load %arg15[%c1_152, %c0_153, %c0_154] : memref<2x1x256xf32, #tpu.memory_space<vmem>>, vector<1x1x256xf32>
    %344 = vector.shape_cast %343 : vector<1x1x256xf32> to vector<1x256xf32>
    %345 = vector.broadcast %344 : vector<1x256xf32> to vector<32x256xf32>
    %346 = arith.addf %342, %345 : vector<32x256xf32>
    %cst_155 = arith.constant 5.000000e-01 : f32
    %347 = vector.broadcast %cst_155 : f32 to vector<32x256xf32>
    %348 = arith.mulf %347, %346 : vector<32x256xf32>
    %cst_156 = arith.constant 4.471500e-02 : f32
    %349 = vector.broadcast %cst_156 : f32 to vector<32x256xf32>
    %350 = arith.mulf %349, %346 : vector<32x256xf32>
    %351 = arith.mulf %350, %346 : vector<32x256xf32>
    %352 = arith.mulf %351, %346 : vector<32x256xf32>
    %353 = arith.addf %346, %352 : vector<32x256xf32>
    %cst_157 = arith.constant 0.797884583 : f32
    %354 = vector.broadcast %cst_157 : f32 to vector<32x256xf32>
    %355 = arith.mulf %354, %353 : vector<32x256xf32>
    %356 = math.tanh %355 : vector<32x256xf32>
    %cst_158 = arith.constant 1.000000e+00 : f32
    %357 = vector.broadcast %cst_158 : f32 to vector<32x256xf32>
    %358 = arith.addf %357, %356 : vector<32x256xf32>
    %359 = arith.mulf %348, %358 : vector<32x256xf32>
    %c1_159 = arith.constant 1 : index
    %c0_160 = arith.constant 0 : index
    %c0_161 = arith.constant 0 : index
    %360 = vector.load %arg16[%c1_159, %c0_160, %c0_161] : memref<2x256x128xbf16, #tpu.memory_space<vmem>>, vector<1x256x128xbf16>
    %361 = vector.shape_cast %360 : vector<1x256x128xbf16> to vector<256x128xbf16>
    %362 = arith.truncf %359 : vector<32x256xf32> to vector<32x256xbf16>
    %cst_162 = arith.constant dense<0.000000e+00> : vector<32x128xf32>
    %363 = tpu.matmul %362, %361, %cst_162 {dimension_numbers = #tpu.dot_dimension_numbers<[1], [0], [0], [1], [0, 0, 1, 1], [], []>} : vector<32x256xbf16>, vector<256x128xbf16>, vector<32x128xf32> -> vector<32x128xf32>
    %c1_163 = arith.constant 1 : index
    %c0_164 = arith.constant 0 : index
    %c0_165 = arith.constant 0 : index
    %364 = vector.load %arg17[%c1_163, %c0_164, %c0_165] : memref<2x1x128xf32, #tpu.memory_space<vmem>>, vector<1x1x128xf32>
    %365 = vector.shape_cast %364 : vector<1x1x128xf32> to vector<1x128xf32>
    %366 = vector.broadcast %365 : vector<1x128xf32> to vector<32x128xf32>
    %367 = arith.addf %363, %366 : vector<32x128xf32>
    %368 = arith.addf %367, %338 : vector<32x128xf32>
    %c1_166 = arith.constant 1 : index
    %c0_167 = arith.constant 0 : index
    %c0_168 = arith.constant 0 : index
    %369 = vector.load %arg18[%c1_166, %c0_167, %c0_168] : memref<2x1x128xf32, #tpu.memory_space<vmem>>, vector<1x1x128xf32>
    %370 = vector.shape_cast %369 : vector<1x1x128xf32> to vector<1x128xf32>
    %c1_169 = arith.constant 1 : index
    %c0_170 = arith.constant 0 : index
    %c0_171 = arith.constant 0 : index
    %371 = vector.load %arg19[%c1_169, %c0_170, %c0_171] : memref<2x1x128xf32, #tpu.memory_space<vmem>>, vector<1x1x128xf32>
    %372 = vector.shape_cast %371 : vector<1x1x128xf32> to vector<1x128xf32>
    %cst_172 = arith.constant dense<0.000000e+00> : vector<32xf32>
    %373 = vector.multi_reduction <add>, %368, %cst_172 [1] : vector<32x128xf32> to vector<32xf32>
    %374 = vector.shape_cast %373 : vector<32xf32> to vector<32x1xf32>
    %cst_173 = arith.constant 1.280000e+02 : f32
    %375 = vector.broadcast %cst_173 : f32 to vector<32x1xf32>
    %376 = arith.divf %374, %375 : vector<32x1xf32>
    %377 = vector.broadcast %376 : vector<32x1xf32> to vector<32x128xf32>
    %378 = arith.subf %368, %377 : vector<32x128xf32>
    %379 = arith.mulf %378, %378 : vector<32x128xf32>
    %cst_174 = arith.constant dense<0.000000e+00> : vector<32xf32>
    %380 = vector.multi_reduction <add>, %379, %cst_174 [1] : vector<32x128xf32> to vector<32xf32>
    %381 = vector.shape_cast %380 : vector<32xf32> to vector<32x1xf32>
    %cst_175 = arith.constant 1.280000e+02 : f32
    %382 = vector.broadcast %cst_175 : f32 to vector<32x1xf32>
    %383 = arith.divf %381, %382 : vector<32x1xf32>
    %cst_176 = arith.constant 9.99999974E-6 : f32
    %384 = vector.broadcast %cst_176 : f32 to vector<32x1xf32>
    %385 = arith.addf %383, %384 : vector<32x1xf32>
    %386 = math.rsqrt %385 : vector<32x1xf32>
    %387 = vector.broadcast %386 : vector<32x1xf32> to vector<32x128xf32>
    %388 = arith.mulf %378, %387 : vector<32x128xf32>
    %389 = vector.broadcast %370 : vector<1x128xf32> to vector<32x128xf32>
    %390 = arith.mulf %388, %389 : vector<32x128xf32>
    %391 = vector.broadcast %372 : vector<1x128xf32> to vector<32x128xf32>
    %392 = arith.addf %390, %391 : vector<32x128xf32>
    %c0_177 = arith.constant 0 : index
    %c0_178 = arith.constant 0 : index
    %393 = vector.load %arg27[%c0_177, %c0_178] : memref<32x128xf32, #tpu.memory_space<vmem>>, vector<32x128xf32>
    tpu.vector_store %arg27[%c0_177, %c0_178], %392 {strides = array<i32>} : memref<32x128xf32, #tpu.memory_space<vmem>>, vector<32x128xf32>,
    %c0_179 = arith.constant 0 : index
    %c0_180 = arith.constant 0 : index
    %394 = tpu.strided_load %arg27[%c0_179, %c0_180] {strides = array<i32: 16, 1>} : memref<32x128xf32, #tpu.memory_space<vmem>>, vector<2x128xf32>
    %c0_181 = arith.constant 0 : index
    %c0_182 = arith.constant 0 : index
    %395 = vector.load %arg20[%c0_181, %c0_182] : memref<128x128xbf16, #tpu.memory_space<vmem>>, vector<128x128xbf16>
    %396 = arith.truncf %394 : vector<2x128xf32> to vector<2x128xbf16>
    %cst_183 = arith.constant dense<0.000000e+00> : vector<2x128xf32>
    %397 = tpu.matmul %396, %395, %cst_183 {dimension_numbers = #tpu.dot_dimension_numbers<[1], [0], [0], [1], [0, 0, 1, 1], [], []>} : vector<2x128xbf16>, vector<128x128xbf16>, vector<2x128xf32> -> vector<2x128xf32>
    %c0_184 = arith.constant 0 : index
    %c0_185 = arith.constant 0 : index
    %398 = vector.load %arg21[%c0_184, %c0_185] : memref<1x128xf32, #tpu.memory_space<vmem>>, vector<1x128xf32>
    %399 = vector.broadcast %398 : vector<1x128xf32> to vector<2x128xf32>
    %400 = arith.addf %397, %399 : vector<2x128xf32>
    %401 = math.tanh %400 : vector<2x128xf32>
    %c0_186 = arith.constant 0 : index
    %c0_187 = arith.constant 0 : index
    %402 = vector.load %arg22[%c0_186, %c0_187] : memref<128x128xbf16, #tpu.memory_space<vmem>>, vector<128x128xbf16>
    %403 = arith.truncf %401 : vector<2x128xf32> to vector<2x128xbf16>
    %cst_188 = arith.constant dense<0.000000e+00> : vector<2x128xf32>
    %404 = tpu.matmul %403, %402, %cst_188 {dimension_numbers = #tpu.dot_dimension_numbers<[1], [0], [0], [1], [0, 0, 1, 1], [], []>} : vector<2x128xbf16>, vector<128x128xbf16>, vector<2x128xf32> -> vector<2x128xf32>
    %c0_189 = arith.constant 0 : index
    %c0_190 = arith.constant 0 : index
    %405 = vector.load %arg23[%c0_189, %c0_190] : memref<1x128xf32, #tpu.memory_space<vmem>>, vector<1x128xf32>
    %406 = vector.broadcast %405 : vector<1x128xf32> to vector<2x128xf32>
    %407 = arith.addf %404, %406 : vector<2x128xf32>
    %cst_191 = arith.constant 0.000000e+00 : f32
    %408 = vector.broadcast %cst_191 : f32 to vector<2x128xf32>
    %409 = arith.maximumf %407, %408 : vector<2x128xf32>
    %c0_192 = arith.constant 0 : index
    %c0_193 = arith.constant 0 : index
    %410 = vector.load %arg24[%c0_192, %c0_193] : memref<128x128xbf16, #tpu.memory_space<vmem>>, vector<128x128xbf16>
    %411 = arith.truncf %409 : vector<2x128xf32> to vector<2x128xbf16>
    %cst_194 = arith.constant dense<0.000000e+00> : vector<2x128xf32>
    %412 = tpu.matmul %411, %410, %cst_194 {dimension_numbers = #tpu.dot_dimension_numbers<[1], [0], [0], [1], [0, 0, 1, 1], [], []>} : vector<2x128xbf16>, vector<128x128xbf16>, vector<2x128xf32> -> vector<2x128xf32>
    %c0_195 = arith.constant 0 : index
    %c0_196 = arith.constant 0 : index
    %413 = vector.load %arg25[%c0_195, %c0_196] : memref<1x128xf32, #tpu.memory_space<vmem>>, vector<1x128xf32>
    %414 = vector.broadcast %413 : vector<1x128xf32> to vector<2x128xf32>
    %415 = arith.addf %412, %414 : vector<2x128xf32>
    %c0_197 = arith.constant 0 : index
    %c0_198 = arith.constant 0 : index
    %416 = vector.load %arg26[%c0_197, %c0_198] : memref<2x128xf32, #tpu.memory_space<vmem>>, vector<2x128xf32>
    tpu.vector_store %arg26[%c0_197, %c0_198], %415 {strides = array<i32>} : memref<2x128xf32, #tpu.memory_space<vmem>>, vector<2x128xf32>,
    return
  }
}

</mosaic_0001>

<llo_original>
// kernel: eq.8
$region0: #{eq.8}
  %s0 = inlined_call_operand.vmem [shape: s32[2,16], index: 0, kind: input, shape index: {}]
  %s1 = inlined_call_operand.vmem [shape: s32[32], index: 1, kind: output, shape index: {}]
  $region1: #{eq.8} parent=0
    #allocation0 [shape = 'u8[4096]{0}', space=vmem, size = 0x1000, scoped, tag = 'scoped mem for output reshape']
    #allocation1 [shape = 'u8[4096]{0}', space=vmem, size = 0x1000, scoped, tag = 'scoped mem for input reshape']
    %s3 = sshll.u32 1, 2
    %s4 = ssub.s32 %s3, 1
    %v5 = vld [vmem:[%s0] sm:%s4]
    %6 = vst [vmem:[#allocation1] sm:%s4] %v5
    %v7 = vld [vmem:[#allocation1] sm:$0x1]
    %vm8 = vcmask 130048
    %9 = vst.msk [vmem:[#allocation0] sm:$0x1] %vm8, %v7
    %s10 = scalar_lea.vmem [#allocation1], 1
    %v11 = vld [vmem:[%s10] sm:$0x1]
    %12 = vrot.lane.b32.xlu0 %v11, 16
    %v13 = vpop.permute.xlu0 %12
    %vm14 = vcmask 261248
    %15 = vst.msk [vmem:[#allocation0] sm:$0x1] %vm14, %v13
    %s17 = sshll.u32 1, 1
    %s18 = ssub.s32 %s17, 1
    %v20 = vld [vmem:[#allocation0] sm:%s18]
    %s21 = sshll.u32 1, 1
    %s22 = ssub.s32 %s21, 1
    %23 = vst [vmem:[%s1] sm:%s22] %v20

// kernel: roberta_detector_forward.1
$region0: #{roberta_detector_forward.1}
  #allocation0 [shape = 'u32[]', space=smem, size = 0x4, offset = 0x4, fixed_abs, tag = 'smem constant byte address 0x4 - core index']
  #allocation1 [shape = 'u32[144,128]{1,0:T(1,128)}', space=vmem, size = 0x12000, scoped, tag = 'internal scratch']
  #allocation2 [shape = 'f32[32,128]{1,0:T(8,128)}', space=vmem, size = 0x4000, scoped, tag = 'scratch operand']
  %s0 = inlined_call_operand.vmem [shape: s32[32,1], index: 0, kind: input, shape index: {}]
  %s1 = inlined_call_operand.vmem [shape: s32[32,1], index: 1, kind: input, shape index: {}]
  %s2 = inlined_call_operand.vmem [shape: f32[32,32], index: 2, kind: input, shape index: {}]
  %s3 = inlined_call_operand.vmem [shape: bf16[64,128], index: 3, kind: input, shape index: {}]
  %s4 = inlined_call_operand.hbm [shape: bf16[64,128], index: 4, kind: input, shape index: {}]
  %s5 = inlined_call_operand.hbm [shape: f32[1,128], index: 5, kind: input, shape index: {}]
  %s6 = inlined_call_operand.hbm [shape: f32[1,128], index: 6, kind: input, shape index: {}]
  %s7 = inlined_call_operand.hbm [shape: f32[1,128], index: 7, kind: input, shape index: {}]
  %s8 = inlined_call_operand.hbm [shape: bf16[2,128,384], index: 8, kind: input, shape index: {}]
  %s9 = inlined_call_operand.hbm [shape: f32[2,1,384], index: 9, kind: input, shape index: {}]
  %s10 = inlined_call_operand.vmem [shape: bf16[2,128,128], index: 10, kind: input, shape index: {}]
  %s11 = inlined_call_operand.hbm [shape: f32[2,1,128], index: 11, kind: input, shape index: {}]
  %s12 = inlined_call_operand.hbm [shape: f32[2,1,128], index: 12, kind: input, shape index: {}]
  %s13 = inlined_call_operand.hbm [shape: f32[2,1,128], index: 13, kind: input, shape index: {}]
  %s14 = inlined_call_operand.hbm [shape: bf16[2,128,256], index: 14, kind: input, shape index: {}]
  %s15 = inlined_call_operand.vmem [shape: f32[2,1,256], index: 15, kind: input, shape index: {}]
  %s16 = inlined_call_operand.hbm [shape: bf16[2,256,128], index: 16, kind: input, shape index: {}]
  %s17 = inlined_call_operand.hbm [shape: f32[2,1,128], index: 17, kind: input, shape index: {}]
  %s18 = inlined_call_operand.hbm [shape: f32[2,1,128], index: 18, kind: input, shape index: {}]
  %s19 = inlined_call_operand.hbm [shape: f32[2,1,128], index: 19, kind: input, shape index: {}]
  %s20 = inlined_call_operand.hbm [shape: bf16[128,128], index: 20, kind: input, shape index: {}]
  %s21 = inlined_call_operand.hbm [shape: f32[1,128], index: 21, kind: input, shape index: {}]
  %s22 = inlined_call_operand.hbm [shape: bf16[128,128], index: 22, kind: input, shape index: {}]
  %s23 = inlined_call_operand.hbm [shape: f32[1,128], index: 23, kind: input, shape index: {}]
  %s24 = inlined_call_operand.hbm [shape: bf16[128,128], index: 24, kind: input, shape index: {}]
  %s25 = inlined_call_operand.hbm [shape: f32[1,128], index: 25, kind: input, shape index: {}]
  %s26 = inlined_call_operand.vmem [shape: f32[2,128], index: 26, kind: output, shape index: {}]
  %s27 = sld [smem:[#allocation0]]
  $region194: #{roberta_detector_forward.1} parent=0
    _
  %s29 = ssub.s32 1, %s27
  %s30 = scalar_select 0, %s29, %s27
  $region1: #{roberta_detector_forward.1} parent=0
    #allocation3 [shape = 'u8[16384]{0}', space=vmem, size = 0x4000, scoped, tag = 'input window, operand 4, single buffered']
    #allocation4 [shape = 's32[1]{0}', space=sflag, size = 0x4, scoped, tag = 'scoped memory for roberta_detector_forward.1']
    #allocation5 [shape = 'u8[512]{0}', space=vmem, size = 0x400, scoped, tag = 'input window, operand 5, single buffered']
    #allocation6 [shape = 's32[1]{0}', space=sflag, size = 0x4, scoped, tag = 'scoped memory for roberta_detector_forward.1']
    #allocation7 [shape = 'u8[512]{0}', space=vmem, size = 0x400, scoped, tag = 'input window, operand 6, single buffered']
    #allocation8 [shape = 'u8[512]{0}', space=vmem, size = 0x400, scoped, tag = 'input window, operand 7, single buffered']
    #allocation9 [shape = 's32[1]{0}', space=sflag, size = 0x4, scoped, tag = 'scoped memory for roberta_detector_forward.1']
    #allocation10 [shape = 'u8[196608]{0}', space=vmem, size = 0x30000, scoped, tag = 'input window, operand 8, single buffered']
    #allocation11 [shape = 'u8[3072]{0}', space=vmem, size = 0xc00, scoped, tag = 'input window, operand 9, single buffered']
    #allocation12 [shape = 's32[1]{0}', space=sflag, size = 0x4, scoped, tag = 'scoped memory for roberta_detector_forward.1']
    #allocation13 [shape = 'u8[1024]{0}', space=vmem, size = 0x400, scoped, tag = 'input window, operand 11, single buffered']
    #allocation14 [shape = 'u8[1024]{0}', space=vmem, size = 0x400, scoped, tag = 'input window, operand 12, single buffered']
    #allocation15 [shape = 's32[1]{0}', space=sflag, size = 0x4, scoped, tag = 'scoped memory for roberta_detector_forward.1']
    #allocation16 [shape = 'u8[1024]{0}', space=vmem, size = 0x400, scoped, tag = 'input window, operand 13, single buffered']
    #allocation17 [shape = 'u8[131072]{0}', space=vmem, size = 0x20000, scoped, tag = 'input window, operand 14, single buffered']
    #allocation18 [shape = 's32[1]{0}', space=sflag, size = 0x4, scoped, tag = 'scoped memory for roberta_detector_forward.1']
    #allocation19 [shape = 'u8[131072]{0}', space=vmem, size = 0x20000, scoped, tag = 'input window, operand 16, single buffered']
    #allocation20 [shape = 'u8[1024]{0}', space=vmem, size = 0x400, scoped, tag = 'input window, operand 17, single buffered']
    #allocation21 [shape = 's32[1]{0}', space=sflag, size = 0x4, scoped, tag = 'scoped memory for roberta_detector_forward.1']
    #allocation22 [shape = 'u8[1024]{0}', space=vmem, size = 0x400, scoped, tag = 'input window, operand 18, single buffered']
    #allocation23 [shape = 'u8[1024]{0}', space=vmem, size = 0x400, scoped, tag = 'input window, operand 19, single buffered']
    #allocation24 [shape = 's32[1]{0}', space=sflag, size = 0x4, scoped, tag = 'scoped memory for roberta_detector_forward.1']
    #allocation25 [shape = 'u8[32768]{0}', space=vmem, size = 0x8000, scoped, tag = 'input window, operand 20, single buffered']
    #allocation26 [shape = 'u8[512]{0}', space=vmem, size = 0x400, scoped, tag = 'input window, operand 21, single buffered']
    #allocation27 [shape = 's32[1]{0}', space=sflag, size = 0x4, scoped, tag = 'scoped memory for roberta_detector_forward.1']
    #allocation28 [shape = 'u8[32768]{0}', space=vmem, size = 0x8000, scoped, tag = 'input window, operand 22, single buffered']
    #allocation29 [shape = 'u8[512]{0}', space=vmem, size = 0x400, scoped, tag = 'input window, operand 23, single buffered']
    #allocation30 [shape = 's32[1]{0}', space=sflag, size = 0x4, scoped, tag = 'scoped memory for roberta_detector_forward.1']
    #allocation31 [shape = 'u8[32768]{0}', space=vmem, size = 0x8000, scoped, tag = 'input window, operand 24, single buffered']
    #allocation32 [shape = 'u8[512]{0}', space=vmem, size = 0x400, scoped, tag = 'input window, operand 25, single buffered']
    #allocation33 [shape = 's32[1]{0}', space=sflag, size = 0x4, scoped, tag = 'scoped memory for roberta_detector_forward.1']
    %31 = vsyncpa [#allocation4], 0
    %32 = vsyncpa [#allocation6], 0
    %33 = vsyncpa [#allocation9], 0
    %34 = vsyncpa [#allocation12], 0
    %35 = vsyncpa [#allocation15], 0
    %36 = vsyncpa [#allocation18], 0
    %37 = vsyncpa [#allocation21], 0
    %38 = vsyncpa [#allocation24], 0
    %39 = vsyncpa [#allocation27], 0
    %40 = vsyncpa [#allocation30], 0
    %41 = vsyncpa [#allocation33], 0
    // Predicated region
    $region2: #{roberta_detector_forward.1} parent=1 // pred_check
      _
    $region3: #{roberta_detector_forward.1} parent=1 // pred_check_branch
      %43 = sbr.rel (0) target = $region5
    $region4: #{roberta_detector_forward.1} parent=1 // pred_region
      _
    $region5: #{roberta_detector_forward.1} parent=1 // pred_fallthru
      _
    // Predicated region
    $region6: #{roberta_detector_forward.1} parent=1 // pred_check
      _
    $region7: #{roberta_detector_forward.1} parent=1 // pred_check_branch
      %45 = sbr.rel (0) target = $region9
    $region8: #{roberta_detector_forward.1} parent=1 // pred_region
      _
    $region9: #{roberta_detector_forward.1} parent=1 // pred_fallthru
      _
    // Predicated region
    $region10: #{roberta_detector_forward.1} parent=1 // pred_check
      _
    $region11: #{roberta_detector_forward.1} parent=1 // pred_check_branch
      %47 = sbr.rel (0) target = $region13
    $region12: #{roberta_detector_forward.1} parent=1 // pred_region
      _
    $region13: #{roberta_detector_forward.1} parent=1 // pred_fallthru
      _
    // Predicated region
    $region14: #{roberta_detector_forward.1} parent=1 // pred_check
      _
    $region15: #{roberta_detector_forward.1} parent=1 // pred_check_branch
      %49 = sbr.rel (0) target = $region17
    $region16: #{roberta_detector_forward.1} parent=1 // pred_region
      _
    $region17: #{roberta_detector_forward.1} parent=1 // pred_fallthru
      _
    // Predicated region
    $region18: #{roberta_detector_forward.1} parent=1 // pred_check
      _
    $region19: #{roberta_detector_forward.1} parent=1 // pred_check_branch
      %51 = sbr.rel (0) target = $region21
    $region20: #{roberta_detector_forward.1} parent=1 // pred_region
      %s53 = ssub.s32 512, 512
      %54 = vsyncadd [#allocation4], %s53
      %s55 = sshll.u32 [#allocation3], 4
      %s56 = int_to_ptr.vmem [resolvable:$true] %s55
      %61 = dma.hbm_to_vmem [thread:$0]  %s4, 512, %s56, [#allocation4], 64, 64, 4
    $region21: #{roberta_detector_forward.1} parent=1 // pred_fallthru
      _
    // Predicated region
    $region22: #{roberta_detector_forward.1} parent=1 // pred_check
      _
    $region23: #{roberta_detector_forward.1} parent=1 // pred_check_branch
      %63 = sbr.rel (0) target = $region25
    $region24: #{roberta_detector_forward.1} parent=1 // pred_region
      %s65 = ssub.s32 16, 16
      %66 = vsyncadd [#allocation6], %s65
      %s68 = sshll.u32 [#allocation5], 4
      %s69 = int_to_ptr.vmem [resolvable:$true] %s68
      %71 = dma.hbm_to_vmem [thread:$0]  %s5, 16, %s69, [#allocation6]
    $region25: #{roberta_detector_forward.1} parent=1 // pred_fallthru
      _
    // Predicated region
    $region26: #{roberta_detector_forward.1} parent=1 // pred_check
      _
    $region27: #{roberta_detector_forward.1} parent=1 // pred_check_branch
      %73 = sbr.rel (0) target = $region29
    $region28: #{roberta_detector_forward.1} parent=1 // pred_region
      %s75 = ssub.s32 16, 16
      %76 = vsyncadd [#allocation6], %s75
      %s78 = sshll.u32 [#allocation7], 4
      %s79 = int_to_ptr.vmem [resolvable:$true] %s78
      %81 = dma.hbm_to_vmem [thread:$0]  %s6, 16, %s79, [#allocation6]
    $region29: #{roberta_detector_forward.1} parent=1 // pred_fallthru
      _
    // Predicated region
    $region30: #{roberta_detector_forward.1} parent=1 // pred_check
      _
    $region31: #{roberta_detector_forward.1} parent=1 // pred_check_branch
      %83 = sbr.rel (0) target = $region33
    $region32: #{roberta_detector_forward.1} parent=1 // pred_region
      %s85 = ssub.s32 16, 16
      %86 = vsyncadd [#allocation9], %s85
      %s88 = sshll.u32 [#allocation8], 4
      %s89 = int_to_ptr.vmem [resolvable:$true] %s88
      %91 = dma.hbm_to_vmem [thread:$0]  %s7, 16, %s89, [#allocation9]
    $region33: #{roberta_detector_forward.1} parent=1 // pred_fallthru
      _
    // Predicated region
    $region34: #{roberta_detector_forward.1} parent=1 // pred_check
      _
    $region35: #{roberta_detector_forward.1} parent=1 // pred_check_branch
      %93 = sbr.rel (0) target = $region37
    $region36: #{roberta_detector_forward.1} parent=1 // pred_region
      %s95 = ssub.s32 6144, 6144
      %96 = vsyncadd [#allocation9], %s95
      %s97 = sshll.u32 [#allocation10], 4
      %s98 = int_to_ptr.vmem [resolvable:$true] %s97
      %103 = dma.hbm_to_vmem [thread:$0]  %s8, 6144, %s98, [#allocation9], 192, 192, 12
    $region37: #{roberta_detector_forward.1} parent=1 // pred_fallthru
      _
    // Predicated region
    $region38: #{roberta_detector_forward.1} parent=1 // pred_check
      _
    $region39: #{roberta_detector_forward.1} parent=1 // pred_check_branch
      %105 = sbr.rel (0) target = $region41
    $region40: #{roberta_detector_forward.1} parent=1 // pred_region
      %s107 = ssub.s32 96, 96
      %108 = vsyncadd [#allocation12], %s107
      %s109 = sshll.u32 [#allocation11], 4
      %s110 = int_to_ptr.vmem [resolvable:$true] %s109
      %115 = dma.hbm_to_vmem [thread:$0]  %s9, 96, %s110, [#allocation12], 48, 48, 3
    $region41: #{roberta_detector_forward.1} parent=1 // pred_fallthru
      _
    // Predicated region
    $region42: #{roberta_detector_forward.1} parent=1 // pred_check
      _
    $region43: #{roberta_detector_forward.1} parent=1 // pred_check_branch
      %117 = sbr.rel (0) target = $region45
    $region44: #{roberta_detector_forward.1} parent=1 // pred_region
      _
    $region45: #{roberta_detector_forward.1} parent=1 // pred_fallthru
      _
    // Predicated region
    $region46: #{roberta_detector_forward.1} parent=1 // pred_check
      _
    $region47: #{roberta_detector_forward.1} parent=1 // pred_check_branch
      %119 = sbr.rel (0) target = $region49
    $region48: #{roberta_detector_forward.1} parent=1 // pred_region
      %s121 = ssub.s32 32, 32
      %122 = vsyncadd [#allocation12], %s121
      %s123 = sshll.u32 [#allocation13], 4
      %s124 = int_to_ptr.vmem [resolvable:$true] %s123
      %129 = dma.hbm_to_vmem [thread:$0]  %s11, 32, %s124, [#allocation12], 16, 16, 1
    $region49: #{roberta_detector_forward.1} parent=1 // pred_fallthru
      _
    // Predicated region
    $region50: #{roberta_detector_forward.1} parent=1 // pred_check
      _
    $region51: #{roberta_detector_forward.1} parent=1 // pred_check_branch
      %131 = sbr.rel (0) target = $region53
    $region52: #{roberta_detector_forward.1} parent=1 // pred_region
      %s133 = ssub.s32 32, 32
      %134 = vsyncadd [#allocation15], %s133
      %s135 = sshll.u32 [#allocation14], 4
      %s136 = int_to_ptr.vmem [resolvable:$true] %s135
      %141 = dma.hbm_to_vmem [thread:$0]  %s12, 32, %s136, [#allocation15], 16, 16, 1
    $region53: #{roberta_detector_forward.1} parent=1 // pred_fallthru
      _
    // Predicated region
    $region54: #{roberta_detector_forward.1} parent=1 // pred_check
      _
    $region55: #{roberta_detector_forward.1} parent=1 // pred_check_branch
      %143 = sbr.rel (0) target = $region57
    $region56: #{roberta_detector_forward.1} parent=1 // pred_region
      %s145 = ssub.s32 32, 32
      %146 = vsyncadd [#allocation15], %s145
      %s147 = sshll.u32 [#allocation16], 4
      %s148 = int_to_ptr.vmem [resolvable:$true] %s147
      %153 = dma.hbm_to_vmem [thread:$0]  %s13, 32, %s148, [#allocation15], 16, 16, 1
    $region57: #{roberta_detector_forward.1} parent=1 // pred_fallthru
      _
    // Predicated region
    $region58: #{roberta_detector_forward.1} parent=1 // pred_check
      _
    $region59: #{roberta_detector_forward.1} parent=1 // pred_check_branch
      %155 = sbr.rel (0) target = $region61
    $region60: #{roberta_detector_forward.1} parent=1 // pred_region
      %s157 = ssub.s32 4096, 4096
      %158 = vsyncadd [#allocation18], %s157
      %s159 = sshll.u32 [#allocation17], 4
      %s160 = int_to_ptr.vmem [resolvable:$true] %s159
      %165 = dma.hbm_to_vmem [thread:$0]  %s14, 4096, %s160, [#allocation18], 128, 128, 8
    $region61: #{roberta_detector_forward.1} parent=1 // pred_fallthru
      _
    // Predicated region
    $region62: #{roberta_detector_forward.1} parent=1 // pred_check
      _
    $region63: #{roberta_detector_forward.1} parent=1 // pred_check_branch
      %167 = sbr.rel (0) target = $region65
    $region64: #{roberta_detector_forward.1} parent=1 // pred_region
      _
    $region65: #{roberta_detector_forward.1} parent=1 // pred_fallthru
      _
    // Predicated region
    $region66: #{roberta_detector_forward.1} parent=1 // pred_check
      _
    $region67: #{roberta_detector_forward.1} parent=1 // pred_check_branch
      %169 = sbr.rel (0) target = $region69
    $region68: #{roberta_detector_forward.1} parent=1 // pred_region
      %s171 = ssub.s32 4096, 4096
      %172 = vsyncadd [#allocation18], %s171
      %s173 = sshll.u32 [#allocation19], 4
      %s174 = int_to_ptr.vmem [resolvable:$true] %s173
      %179 = dma.hbm_to_vmem [thread:$0]  %s16, 4096, %s174, [#allocation18], 64, 64, 4
    $region69: #{roberta_detector_forward.1} parent=1 // pred_fallthru
      _
    // Predicated region
    $region70: #{roberta_detector_forward.1} parent=1 // pred_check
      _
    $region71: #{roberta_detector_forward.1} parent=1 // pred_check_branch
      %181 = sbr.rel (0) target = $region73
    $region72: #{roberta_detector_forward.1} parent=1 // pred_region
      %s183 = ssub.s32 32, 32
      %184 = vsyncadd [#allocation21], %s183
      %s185 = sshll.u32 [#allocation20], 4
      %s186 = int_to_ptr.vmem [resolvable:$true] %s185
      %191 = dma.hbm_to_vmem [thread:$0]  %s17, 32, %s186, [#allocation21], 16, 16, 1
    $region73: #{roberta_detector_forward.1} parent=1 // pred_fallthru
      _
    // Predicated region
    $region74: #{roberta_detector_forward.1} parent=1 // pred_check
      _
    $region75: #{roberta_detector_forward.1} parent=1 // pred_check_branch
      %193 = sbr.rel (0) target = $region77
    $region76: #{roberta_detector_forward.1} parent=1 // pred_region
      %s195 = ssub.s32 32, 32
      %196 = vsyncadd [#allocation21], %s195
      %s197 = sshll.u32 [#allocation22], 4
      %s198 = int_to_ptr.vmem [resolvable:$true] %s197
      %203 = dma.hbm_to_vmem [thread:$0]  %s18, 32, %s198, [#allocation21], 16, 16, 1
    $region77: #{roberta_detector_forward.1} parent=1 // pred_fallthru
      _
    // Predicated region
    $region78: #{roberta_detector_forward.1} parent=1 // pred_check
      _
    $region79: #{roberta_detector_forward.1} parent=1 // pred_check_branch
      %205 = sbr.rel (0) target = $region81
    $region80: #{roberta_detector_forward.1} parent=1 // pred_region
      %s207 = ssub.s32 32, 32
      %208 = vsyncadd [#allocation24], %s207
      %s209 = sshll.u32 [#allocation23], 4
      %s210 = int_to_ptr.vmem [resolvable:$true] %s209
      %215 = dma.hbm_to_vmem [thread:$0]  %s19, 32, %s210, [#allocation24], 16, 16, 1
    $region81: #{roberta_detector_forward.1} parent=1 // pred_fallthru
      _
    // Predicated region
    $region82: #{roberta_detector_forward.1} parent=1 // pred_check
      _
    $region83: #{roberta_detector_forward.1} parent=1 // pred_check_branch
      %217 = sbr.rel (0) target = $region85
    $region84: #{roberta_detector_forward.1} parent=1 // pred_region
      %s219 = ssub.s32 1024, 1024
      %220 = vsyncadd [#allocation24], %s219
      %s221 = sshll.u32 [#allocation25], 4
      %s222 = int_to_ptr.vmem [resolvable:$true] %s221
      %227 = dma.hbm_to_vmem [thread:$0]  %s20, 1024, %s222, [#allocation24], 64, 64, 4
    $region85: #{roberta_detector_forward.1} parent=1 // pred_fallthru
      _
    // Predicated region
    $region86: #{roberta_detector_forward.1} parent=1 // pred_check
      _
    $region87: #{roberta_detector_forward.1} parent=1 // pred_check_branch
      %229 = sbr.rel (0) target = $region89
    $region88: #{roberta_detector_forward.1} parent=1 // pred_region
      %s231 = ssub.s32 16, 16
      %232 = vsyncadd [#allocation27], %s231
      %s234 = sshll.u32 [#allocation26], 4
      %s235 = int_to_ptr.vmem [resolvable:$true] %s234
      %237 = dma.hbm_to_vmem [thread:$0]  %s21, 16, %s235, [#allocation27]
    $region89: #{roberta_detector_forward.1} parent=1 // pred_fallthru
      _
    // Predicated region
    $region90: #{roberta_detector_forward.1} parent=1 // pred_check
      _
    $region91: #{roberta_detector_forward.1} parent=1 // pred_check_branch
      %239 = sbr.rel (0) target = $region93
    $region92: #{roberta_detector_forward.1} parent=1 // pred_region
      %s241 = ssub.s32 1024, 1024
      %242 = vsyncadd [#allocation27], %s241
      %s243 = sshll.u32 [#allocation28], 4
      %s244 = int_to_ptr.vmem [resolvable:$true] %s243
      %249 = dma.hbm_to_vmem [thread:$0]  %s22, 1024, %s244, [#allocation27], 64, 64, 4
    $region93: #{roberta_detector_forward.1} parent=1 // pred_fallthru
      _
    // Predicated region
    $region94: #{roberta_detector_forward.1} parent=1 // pred_check
      _
    $region95: #{roberta_detector_forward.1} parent=1 // pred_check_branch
      %251 = sbr.rel (0) target = $region97
    $region96: #{roberta_detector_forward.1} parent=1 // pred_region
      %s253 = ssub.s32 16, 16
      %254 = vsyncadd [#allocation30], %s253
      %s256 = sshll.u32 [#allocation29], 4
      %s257 = int_to_ptr.vmem [resolvable:$true] %s256
      %259 = dma.hbm_to_vmem [thread:$0]  %s23, 16, %s257, [#allocation30]
    $region97: #{roberta_detector_forward.1} parent=1 // pred_fallthru
      _
    // Predicated region
    $region98: #{roberta_detector_forward.1} parent=1 // pred_check
      _
    $region99: #{roberta_detector_forward.1} parent=1 // pred_check_branch
      %261 = sbr.rel (0) target = $region101
    $region100: #{roberta_detector_forward.1} parent=1 // pred_region
      %s263 = ssub.s32 1024, 1024
      %264 = vsyncadd [#allocation30], %s263
      %s265 = sshll.u32 [#allocation31], 4
      %s266 = int_to_ptr.vmem [resolvable:$true] %s265
      %271 = dma.hbm_to_vmem [thread:$0]  %s24, 1024, %s266, [#allocation30], 64, 64, 4
    $region101: #{roberta_detector_forward.1} parent=1 // pred_fallthru
      _
    // Predicated region
    $region102: #{roberta_detector_forward.1} parent=1 // pred_check
      _
    $region103: #{roberta_detector_forward.1} parent=1 // pred_check_branch
      %273 = sbr.rel (0) target = $region105
    $region104: #{roberta_detector_forward.1} parent=1 // pred_region
      %s275 = ssub.s32 16, 16
      %276 = vsyncadd [#allocation33], %s275
      %s278 = sshll.u32 [#allocation32], 4
      %s279 = int_to_ptr.vmem [resolvable:$true] %s278
      %281 = dma.hbm_to_vmem [thread:$0]  %s25, 16, %s279, [#allocation33]
    $region105: #{roberta_detector_forward.1} parent=1 // pred_fallthru
      _
    // Predicated region
    $region106: #{roberta_detector_forward.1} parent=1 // pred_check
      _
    $region107: #{roberta_detector_forward.1} parent=1 // pred_check_branch
      %283 = sbr.rel (0) target = $region109
    $region108: #{roberta_detector_forward.1} parent=1 // pred_region
      %284 = dma.done [#allocation4], 512
    $region109: #{roberta_detector_forward.1} parent=1 // pred_fallthru
      _
    // Predicated region
    $region110: #{roberta_detector_forward.1} parent=1 // pred_check
      _
    $region111: #{roberta_detector_forward.1} parent=1 // pred_check_branch
      %286 = sbr.rel (0) target = $region113
    $region112: #{roberta_detector_forward.1} parent=1 // pred_region
      %287 = dma.done [#allocation6], 16
    $region113: #{roberta_detector_forward.1} parent=1 // pred_fallthru
      _
    // Predicated region
    $region114: #{roberta_detector_forward.1} parent=1 // pred_check
      _
    $region115: #{roberta_detector_forward.1} parent=1 // pred_check_branch
      %289 = sbr.rel (0) target = $region117
    $region116: #{roberta_detector_forward.1} parent=1 // pred_region
      %290 = dma.done [#allocation6], 16
    $region117: #{roberta_detector_forward.1} parent=1 // pred_fallthru
      _
    // Predicated region
    $region118: #{roberta_detector_forward.1} parent=1 // pred_check
      _
    $region119: #{roberta_detector_forward.1} parent=1 // pred_check_branch
      %292 = sbr.rel (0) target = $region121
    $region120: #{roberta_detector_forward.1} parent=1 // pred_region
      %293 = dma.done [#allocation9], 16
    $region121: #{roberta_detector_forward.1} parent=1 // pred_fallthru
      _
    // Predicated region
    $region122: #{roberta_detector_forward.1} parent=1 // pred_check
      _
    $region123: #{roberta_detector_forward.1} parent=1 // pred_check_branch
      %295 = sbr.rel (0) target = $region125
    $region124: #{roberta_detector_forward.1} parent=1 // pred_region
      %296 = dma.done [#allocation9], 6144
    $region125: #{roberta_detector_forward.1} parent=1 // pred_fallthru
      _
    // Predicated region
    $region126: #{roberta_detector_forward.1} parent=1 // pred_check
      _
    $region127: #{roberta_detector_forward.1} parent=1 // pred_check_branch
      %298 = sbr.rel (0) target = $region129
    $region128: #{roberta_detector_forward.1} parent=1 // pred_region
      %299 = dma.done [#allocation12], 96
    $region129: #{roberta_detector_forward.1} parent=1 // pred_fallthru
      _
    // Predicated region
    $region130: #{roberta_detector_forward.1} parent=1 // pred_check
      _
    $region131: #{roberta_detector_forward.1} parent=1 // pred_check_branch
      %301 = sbr.rel (0) target = $region133
    $region132: #{roberta_detector_forward.1} parent=1 // pred_region
      %302 = dma.done [#allocation12], 32
    $region133: #{roberta_detector_forward.1} parent=1 // pred_fallthru
      _
    // Predicated region
    $region134: #{roberta_detector_forward.1} parent=1 // pred_check
      _
    $region135: #{roberta_detector_forward.1} parent=1 // pred_check_branch
      %304 = sbr.rel (0) target = $region137
    $region136: #{roberta_detector_forward.1} parent=1 // pred_region
      %305 = dma.done [#allocation15], 32
    $region137: #{roberta_detector_forward.1} parent=1 // pred_fallthru
      _
    // Predicated region
    $region138: #{roberta_detector_forward.1} parent=1 // pred_check
      _
    $region139: #{roberta_detector_forward.1} parent=1 // pred_check_branch
      %307 = sbr.rel (0) target = $region141
    $region140: #{roberta_detector_forward.1} parent=1 // pred_region
      %308 = dma.done [#allocation15], 32
    $region141: #{roberta_detector_forward.1} parent=1 // pred_fallthru
      _
    // Predicated region
    $region142: #{roberta_detector_forward.1} parent=1 // pred_check
      _
    $region143: #{roberta_detector_forward.1} parent=1 // pred_check_branch
      %310 = sbr.rel (0) target = $region145
    $region144: #{roberta_detector_forward.1} parent=1 // pred_region
      %311 = dma.done [#allocation18], 4096
    $region145: #{roberta_detector_forward.1} parent=1 // pred_fallthru
      _
    // Predicated region
    $region146: #{roberta_detector_forward.1} parent=1 // pred_check
      _
    $region147: #{roberta_detector_forward.1} parent=1 // pred_check_branch
      %313 = sbr.rel (0) target = $region149
    $region148: #{roberta_detector_forward.1} parent=1 // pred_region
      %314 = dma.done [#allocation18], 4096
    $region149: #{roberta_detector_forward.1} parent=1 // pred_fallthru
      _
    // Predicated region
    $region150: #{roberta_detector_forward.1} parent=1 // pred_check
      _
    $region151: #{roberta_detector_forward.1} parent=1 // pred_check_branch
      %316 = sbr.rel (0) target = $region153
    $region152: #{roberta_detector_forward.1} parent=1 // pred_region
      %317 = dma.done [#allocation21], 32
    $region153: #{roberta_detector_forward.1} parent=1 // pred_fallthru
      _
    // Predicated region
    $region154: #{roberta_detector_forward.1} parent=1 // pred_check
      _
    $region155: #{roberta_detector_forward.1} parent=1 // pred_check_branch
      %319 = sbr.rel (0) target = $region157
    $region156: #{roberta_detector_forward.1} parent=1 // pred_region
      %320 = dma.done [#allocation21], 32
    $region157: #{roberta_detector_forward.1} parent=1 // pred_fallthru
      _
    // Predicated region
    $region158: #{roberta_detector_forward.1} parent=1 // pred_check
      _
    $region159: #{roberta_detector_forward.1} parent=1 // pred_check_branch
      %322 = sbr.rel (0) target = $region161
    $region160: #{roberta_detector_forward.1} parent=1 // pred_region
      %323 = dma.done [#allocation24], 32
    $region161: #{roberta_detector_forward.1} parent=1 // pred_fallthru
      _
    // Predicated region
    $region162: #{roberta_detector_forward.1} parent=1 // pred_check
      _
    $region163: #{roberta_detector_forward.1} parent=1 // pred_check_branch
      %325 = sbr.rel (0) target = $region165
    $region164: #{roberta_detector_forward.1} parent=1 // pred_region
      %326 = dma.done [#allocation24], 1024
    $region165: #{roberta_detector_forward.1} parent=1 // pred_fallthru
      _
    // Predicated region
    $region166: #{roberta_detector_forward.1} parent=1 // pred_check
      _
    $region167: #{roberta_detector_forward.1} parent=1 // pred_check_branch
      %328 = sbr.rel (0) target = $region169
    $region168: #{roberta_detector_forward.1} parent=1 // pred_region
      %329 = dma.done [#allocation27], 16
    $region169: #{roberta_detector_forward.1} parent=1 // pred_fallthru
      _
    // Predicated region
    $region170: #{roberta_detector_forward.1} parent=1 // pred_check
      _
    $region171: #{roberta_detector_forward.1} parent=1 // pred_check_branch
      %331 = sbr.rel (0) target = $region173
    $region172: #{roberta_detector_forward.1} parent=1 // pred_region
      %332 = dma.done [#allocation27], 1024
    $region173: #{roberta_detector_forward.1} parent=1 // pred_fallthru
      _
    // Predicated region
    $region174: #{roberta_detector_forward.1} parent=1 // pred_check
      _
    $region175: #{roberta_detector_forward.1} parent=1 // pred_check_branch
      %334 = sbr.rel (0) target = $region177
    $region176: #{roberta_detector_forward.1} parent=1 // pred_region
      %335 = dma.done [#allocation30], 16
    $region177: #{roberta_detector_forward.1} parent=1 // pred_fallthru
      _
    // Predicated region
    $region178: #{roberta_detector_forward.1} parent=1 // pred_check
      _
    $region179: #{roberta_detector_forward.1} parent=1 // pred_check_branch
      %337 = sbr.rel (0) target = $region181
    $region180: #{roberta_detector_forward.1} parent=1 // pred_region
      %338 = dma.done [#allocation30], 1024
    $region181: #{roberta_detector_forward.1} parent=1 // pred_fallthru
      _
    // Predicated region
    $region182: #{roberta_detector_forward.1} parent=1 // pred_check
      _
    $region183: #{roberta_detector_forward.1} parent=1 // pred_check_branch
      %340 = sbr.rel (0) target = $region185
    $region184: #{roberta_detector_forward.1} parent=1 // pred_region
      %341 = dma.done [#allocation33], 16
    $region185: #{roberta_detector_forward.1} parent=1 // pred_fallthru
      _
    %v343 = vld [vmem:[%s0] sm:$0xff]
    %v344 = vld [vmem:[%s0 + $0x8] sm:$0xff]
    %v345 = vld [vmem:[%s0 + $0x10] sm:$0xff]
    %v346 = vld [vmem:[%s0 + $0x18] sm:$0xff]
    %v347 = vlaneseq
    %v348 = vand.u32 %v347, 127
    %349 = vset.pattern.permute.xlu0 0
    %350 = vperm.xlu0 %349, %v343
    %v351 = vpop.permute.xlu0 %350
    %352 = vset.pattern.permute.xlu0 0
    %353 = vperm.xlu0 %352, %v344
    %v354 = vpop.permute.xlu0 %353
    %355 = vset.pattern.permute.xlu0 0
    %356 = vperm.xlu0 %355, %v345
    %v357 = vpop.permute.xlu0 %356
    %358 = vset.pattern.permute.xlu0 0
    %359 = vperm.xlu0 %358, %v346
    %v360 = vpop.permute.xlu0 %359
    %vm361 = vcmp.eq.s32.totalorder %v351, %v348
    %vm362 = vcmp.eq.s32.totalorder %v354, %v348
    %vm363 = vcmp.eq.s32.totalorder %v357, %v348
    %vm364 = vcmp.eq.s32.totalorder %v360, %v348
    %v365 = vsel %vm361, 1, 0
    %v366 = vsel %vm362, 1, 0
    %v367 = vsel %vm363, 1, 0
    %v368 = vsel %vm364, 1, 0
    %v369 = vcvt.s32.f32 %v365
    %v370 = vcvt.s32.f32 %v366
    %v371 = vcvt.s32.f32 %v367
    %v372 = vcvt.s32.f32 %v368
    %v373 = vpack.c.bf16 %v370, %v369
    %v374 = vpack.c.bf16 %v372, %v371
    %v375 = vld [vmem:[%s1] sm:$0xff]
    %v376 = vld [vmem:[%s1 + $0x8] sm:$0xff]
    %v377 = vld [vmem:[%s1 + $0x10] sm:$0xff]
    %v378 = vld [vmem:[%s1 + $0x18] sm:$0xff]
    %379 = vset.pattern.permute.xlu0 0
    %380 = vperm.xlu0 %379, %v375
    %v381 = vpop.permute.xlu0 %380
    %382 = vset.pattern.permute.xlu0 0
    %383 = vperm.xlu0 %382, %v376
    %v384 = vpop.permute.xlu0 %383
    %385 = vset.pattern.permute.xlu0 0
    %386 = vperm.xlu0 %385, %v377
    %v387 = vpop.permute.xlu0 %386
    %388 = vset.pattern.permute.xlu0 0
    %389 = vperm.xlu0 %388, %v378
    %v390 = vpop.permute.xlu0 %389
    %vm391 = vcmp.eq.s32.totalorder %v381, %v348
    %vm392 = vcmp.eq.s32.totalorder %v384, %v348
    %vm393 = vcmp.eq.s32.totalorder %v387, %v348
    %vm394 = vcmp.eq.s32.totalorder %v390, %v348
    %v395 = vsel %vm391, 1, 0
    %v396 = vsel %vm392, 1, 0
    %v397 = vsel %vm393, 1, 0
    %v398 = vsel %vm394, 1, 0
    %v399 = vcvt.s32.f32 %v395
    %v400 = vcvt.s32.f32 %v396
    %v401 = vcvt.s32.f32 %v397
    %v402 = vcvt.s32.f32 %v398
    %v403 = vpack.c.bf16 %v400, %v399
    %v404 = vpack.c.bf16 %v402, %v401
    %v405 = vld [vmem:[%s3] sm:$0xf]
    %v406 = vld [vmem:[%s3 + $0x4] sm:$0xf]
    %v407 = vld [vmem:[%s3 + $0x8] sm:$0xf]
    %v408 = vld [vmem:[%s3 + $0xc] sm:$0xf]
    %v409 = vld [vmem:[%s3 + $0x10] sm:$0xf]
    %v410 = vld [vmem:[%s3 + $0x14] sm:$0xf]
    %v411 = vld [vmem:[%s3 + $0x18] sm:$0xf]
    %v412 = vld [vmem:[%s3 + $0x1c] sm:$0xf]
    %v413 = vld [vmem:[#allocation3] sm:$0xf]
    %v414 = vld [vmem:[#allocation3 + $0x4] sm:$0xf]
    %v415 = vld [vmem:[#allocation3 + $0x8] sm:$0xf]
    %v416 = vld [vmem:[#allocation3 + $0xc] sm:$0xf]
    %v417 = vld [vmem:[#allocation3 + $0x10] sm:$0xf]
    %v418 = vld [vmem:[#allocation3 + $0x14] sm:$0xf]
    %v419 = vld [vmem:[#allocation3 + $0x18] sm:$0xf]
    %v420 = vld [vmem:[#allocation3 + $0x1c] sm:$0xf]
    %v429 = vunpack.c.l.b16 %v413
    %v430 = vunpack.c.l.b16 %v414
    %v431 = vunpack.c.l.b16 %v415
    %v432 = vunpack.c.l.b16 %v416
    %v433 = vunpack.c.l.b16 %v417
    %v434 = vunpack.c.l.b16 %v418
    %v435 = vunpack.c.l.b16 %v419
    %v436 = vunpack.c.l.b16 %v420
    %v437 = vpack.c.b16 %v430, %v429
    %v438 = vpack.c.b16 %v432, %v431
    %v439 = vpack.c.b16 %v434, %v433
    %v440 = vpack.c.b16 %v436, %v435
    %vm445 = vcmask 523264
    %v447 = vsel %vm445, %v403, 0
    %v450 = vsel %vm445, %v404, 0
    %452 = vmatprep.subr.bf16.mxu0 0
    %453 = vmatpush1.bf16.msra.mxu0 0
    %454 = vmatprep.subr.bf16.mxu0 0
    %455 = vmatpush1.bf16.msra.mxu0 0
    %456 = vmatprep.subr.bf16.mxu0 0
    %457 = vmatpush1.bf16.msra.mxu0 0
    %458 = vmatprep.subr.bf16.mxu0 0
    %459 = vmatpush1.bf16.msra.mxu0 0
    %460 = vmatprep.subr.bf16.mxu0 0
    %461 = vmatpush1.bf16.msra.mxu0 %v440
    %462 = vmatprep.subr.bf16.mxu0 0
    %463 = vmatpush1.bf16.msra.mxu0 %v439
    %464 = vmatprep.subr.bf16.mxu0 0
    %465 = vmatpush1.bf16.msra.mxu0 %v438
    %466 = vmatprep.subr.bf16.mxu0 0
    %467 = vmatpush1.bf16.msra.mxu0 %v437
    %468 = vmatprep.subr.bf16.mxu0 0
    %469 = vmatpush2.bf16.msra.mxu0 0
    %470 = vmatprep.subr.bf16.mxu0 0
    %471 = vmatpush2.bf16.msra.mxu0 0
    %472 = vmatprep.subr.bf16.mxu0 0
    %473 = vmatpush2.bf16.msra.mxu0 0
    %474 = vmatprep.subr.bf16.mxu0 0
    %475 = vmatpush2.bf16.msra.mxu0 0
    %476 = vmatprep.subr.bf16.mxu0 0
    %477 = vmatpush2.bf16.msra.mxu0 0
    %478 = vmatprep.subr.bf16.mxu0 0
    %479 = vmatpush2.bf16.msra.mxu0 0
    %480 = vmatprep.subr.bf16.mxu0 0
    %481 = vmatpush2.bf16.msra.mxu0 0
    %482 = vmatprep.subr.bf16.mxu0 0
    %483 = vmatpush2.bf16.msra.mxu0 0
    %484 = vmatprep.mubr.bf16.mxu0 0
    %485 = vmatmul.mubr.bf16.gmra.mxu0 %v447
    %v486 = vpop.f32.mrf.mxu0
    %v487 = vadd.f32 0.0, %v486
    %v488 = vpop.f32.mrf.mxu0
    %v489 = vpop.f32.mrf.mxu0
    %v490 = vadd.f32 0.0, %v489
    %v491 = vpop.f32.mrf.mxu0
    %492 = vmatprep.mubr.bf16.mxu0 0
    %493 = vmatmul.mubr.bf16.gmra.mxu0 %v450
    %v494 = vpop.f32.mrf.mxu0
    %v495 = vadd.f32 0.0, %v494
    %v496 = vpop.f32.mrf.mxu0
    %v497 = vpop.f32.mrf.mxu0
    %v498 = vadd.f32 0.0, %v497
    %v499 = vpop.f32.mrf.mxu0
    %500 = vdwg.mxu0
    %v509 = vunpack.c.l.b16 %v405
    %v510 = vunpack.c.l.b16 %v406
    %v511 = vunpack.c.l.b16 %v407
    %v512 = vunpack.c.l.b16 %v408
    %v513 = vunpack.c.l.b16 %v409
    %v514 = vunpack.c.l.b16 %v410
    %v515 = vunpack.c.l.b16 %v411
    %v516 = vunpack.c.l.b16 %v412
    %v517 = vpack.c.b16 %v510, %v509
    %v518 = vpack.c.b16 %v512, %v511
    %v519 = vpack.c.b16 %v514, %v513
    %v520 = vpack.c.b16 %v516, %v515
    %v526 = vsel %vm445, %v373, 0
    %v529 = vsel %vm445, %v374, 0
    %531 = vmatprep.subr.bf16.mxu0 0
    %532 = vmatpush1.bf16.msra.mxu0 0
    %533 = vmatprep.subr.bf16.mxu0 0
    %534 = vmatpush1.bf16.msra.mxu0 0
    %535 = vmatprep.subr.bf16.mxu0 0
    %536 = vmatpush1.bf16.msra.mxu0 0
    %537 = vmatprep.subr.bf16.mxu0 0
    %538 = vmatpush1.bf16.msra.mxu0 0
    %539 = vmatprep.subr.bf16.mxu0 0
    %540 = vmatpush1.bf16.msra.mxu0 %v520
    %541 = vmatprep.subr.bf16.mxu0 0
    %542 = vmatpush1.bf16.msra.mxu0 %v519
    %543 = vmatprep.subr.bf16.mxu0 0
    %544 = vmatpush1.bf16.msra.mxu0 %v518
    %545 = vmatprep.subr.bf16.mxu0 0
    %546 = vmatpush1.bf16.msra.mxu0 %v517
    %547 = vmatprep.subr.bf16.mxu0 0
    %548 = vmatpush2.bf16.msra.mxu0 0
    %549 = vmatprep.subr.bf16.mxu0 0
    %550 = vmatpush2.bf16.msra.mxu0 0
    %551 = vmatprep.subr.bf16.mxu0 0
    %552 = vmatpush2.bf16.msra.mxu0 0
    %553 = vmatprep.subr.bf16.mxu0 0
    %554 = vmatpush2.bf16.msra.mxu0 0
    %555 = vmatprep.subr.bf16.mxu0 0
    %556 = vmatpush2.bf16.msra.mxu0 0
    %557 = vmatprep.subr.bf16.mxu0 0
    %558 = vmatpush2.bf16.msra.mxu0 0
    %559 = vmatprep.subr.bf16.mxu0 0
    %560 = vmatpush2.bf16.msra.mxu0 0
    %561 = vmatprep.subr.bf16.mxu0 0
    %562 = vmatpush2.bf16.msra.mxu0 0
    %563 = vmatprep.mubr.bf16.mxu0 0
    %564 = vmatmul.mubr.bf16.gmra.mxu0 %v526
    %v565 = vpop.f32.mrf.mxu0
    %v566 = vadd.f32 %v487, %v565
    %v567 = vpop.f32.mrf.mxu0
    %v568 = vpop.f32.mrf.mxu0
    %v569 = vadd.f32 %v490, %v568
    %v570 = vpop.f32.mrf.mxu0
    %571 = vmatprep.mubr.bf16.mxu0 0
    %572 = vmatmul.mubr.bf16.gmra.mxu0 %v529
    %v573 = vpop.f32.mrf.mxu0
    %v574 = vadd.f32 %v495, %v573
    %v575 = vpop.f32.mrf.mxu0
    %v576 = vpop.f32.mrf.mxu0
    %v577 = vadd.f32 %v498, %v576
    %v578 = vpop.f32.mrf.mxu0
    %579 = vdwg.mxu0
    %v580 = vld [vmem:[#allocation5] sm:$0x1]
    %v582 = vlaneseq
    %v583 = vshrl.u32 %v582, 7
    %v584 = vsub.s32 0, %v583
    %v585 = vrot.slane %v580, %v584
    %v587 = vadd.f32 %v566, %v585
    %v588 = vadd.f32 %v569, %v585
    %v589 = vadd.f32 %v574, %v585
    %v590 = vadd.f32 %v577, %v585
    %v591 = vld [vmem:[#allocation7] sm:$0x1]
    %v592 = vld [vmem:[#allocation8] sm:$0x1]
    %593 = vadd.xlane.f32.xlu0 %v587
    %v594 = vpop.xlane.xlu0 %593
    %595 = vadd.xlane.f32.xlu0 %v588
    %v596 = vpop.xlane.xlu0 %595
    %597 = vadd.xlane.f32.xlu0 %v589
    %v598 = vpop.xlane.xlu0 %597
    %599 = vadd.xlane.f32.xlu0 %v590
    %v600 = vpop.xlane.xlu0 %599
    %v601 = vrcp.pop 128.0
    %v602 = vmul.f32 %v594, %v601
    %v603 = vmul.f32 %v596, %v601
    %v604 = vmul.f32 %v598, %v601
    %v605 = vmul.f32 %v600, %v601
    %v606 = vsub.f32 %v587, %v602
    %v607 = vsub.f32 %v588, %v603
    %v608 = vsub.f32 %v589, %v604
    %v609 = vsub.f32 %v590, %v605
    %v610 = vmul.f32 %v606, %v606
    %v611 = vmul.f32 %v607, %v607
    %v612 = vmul.f32 %v608, %v608
    %v613 = vmul.f32 %v609, %v609
    %614 = vadd.xlane.f32.xlu0 %v610
    %v615 = vpop.xlane.xlu0 %614
    %616 = vadd.xlane.f32.xlu0 %v611
    %v617 = vpop.xlane.xlu0 %616
    %618 = vadd.xlane.f32.xlu0 %v612
    %v619 = vpop.xlane.xlu0 %618
    %620 = vadd.xlane.f32.xlu0 %v613
    %v621 = vpop.xlane.xlu0 %620
    %v622 = vmul.f32 %v615, %v601
    %v623 = vmul.f32 %v617, %v601
    %v624 = vmul.f32 %v619, %v601
    %v625 = vmul.f32 %v621, %v601
    %v626 = vadd.f32 %v622, 1e-05
    %v627 = vadd.f32 %v623, 1e-05
    %v628 = vadd.f32 %v624, 1e-05
    %v629 = vadd.f32 %v625, 1e-05
    %v630 = vrsqrt.pop %v626
    %v631 = vrsqrt.pop %v627
    %v632 = vrsqrt.pop %v628
    %v633 = vrsqrt.pop %v629
    %v634 = vmul.f32 %v606, %v630
    %v635 = vmul.f32 %v607, %v631
    %v636 = vmul.f32 %v608, %v632
    %v637 = vmul.f32 %v609, %v633
    %v639 = vlaneseq
    %v640 = vshrl.u32 %v639, 7
    %v641 = vsub.s32 0, %v640
    %v642 = vrot.slane %v591, %v641
    %v644 = vmul.f32 %v634, %v642
    %v645 = vmul.f32 %v635, %v642
    %v646 = vmul.f32 %v636, %v642
    %v647 = vmul.f32 %v637, %v642
    %v649 = vlaneseq
    %v650 = vshrl.u32 %v649, 7
    %v651 = vsub.s32 0, %v650
    %v652 = vrot.slane %v592, %v651
    %v654 = vadd.f32 %v644, %v652
    %v655 = vadd.f32 %v645, %v652
    %v656 = vadd.f32 %v646, %v652
    %v657 = vadd.f32 %v647, %v652
    %v658 = vld [vmem:[%s2] sm:$0xff]
    %v659 = vld [vmem:[%s2 + $0x8] sm:$0xff]
    %v660 = vld [vmem:[%s2 + $0x10] sm:$0xff]
    %v661 = vld [vmem:[%s2 + $0x18] sm:$0xff]
    %v662 = vld [vmem:[#allocation10] sm:$0xff]
    %v663 = vld [vmem:[#allocation10 + $0x8] sm:$0xf]
    %v664 = vld [vmem:[#allocation10 + $0xc] sm:$0xff]
    %v665 = vld [vmem:[#allocation10 + $0x14] sm:$0xf]
    %v666 = vld [vmem:[#allocation10 + $0x18] sm:$0xff]
    %v667 = vld [vmem:[#allocation10 + $0x20] sm:$0xf]
    %v668 = vld [vmem:[#allocation10 + $0x24] sm:$0xff]
    %v669 = vld [vmem:[#allocation10 + $0x2c] sm:$0xf]
    %v670 = vld [vmem:[#allocation10 + $0x30] sm:$0xff]
    %v671 = vld [vmem:[#allocation10 + $0x38] sm:$0xf]
    %v672 = vld [vmem:[#allocation10 + $0x3c] sm:$0xff]
    %v673 = vld [vmem:[#allocation10 + $0x44] sm:$0xf]
    %v674 = vld [vmem:[#allocation10 + $0x48] sm:$0xff]
    %v675 = vld [vmem:[#allocation10 + $0x50] sm:$0xf]
    %v676 = vld [vmem:[#allocation10 + $0x54] sm:$0xff]
    %v677 = vld [vmem:[#allocation10 + $0x5c] sm:$0xf]
    %v678 = vld [vmem:[#allocation10 + $0x60] sm:$0xff]
    %v679 = vld [vmem:[#allocation10 + $0x68] sm:$0xf]
    %v680 = vld [vmem:[#allocation10 + $0x6c] sm:$0xff]
    %v681 = vld [vmem:[#allocation10 + $0x74] sm:$0xf]
    %v682 = vld [vmem:[#allocation10 + $0x78] sm:$0xff]
    %v683 = vld [vmem:[#allocation10 + $0x80] sm:$0xf]
    %v684 = vld [vmem:[#allocation10 + $0x84] sm:$0xff]
    %v685 = vld [vmem:[#allocation10 + $0x8c] sm:$0xf]
    %v686 = vld [vmem:[#allocation10 + $0x90] sm:$0xff]
    %v687 = vld [vmem:[#allocation10 + $0x98] sm:$0xf]
    %v688 = vld [vmem:[#allocation10 + $0x9c] sm:$0xff]
    %v689 = vld [vmem:[#allocation10 + $0xa4] sm:$0xf]
    %v690 = vld [vmem:[#allocation10 + $0xa8] sm:$0xff]
    %v691 = vld [vmem:[#allocation10 + $0xb0] sm:$0xf]
    %v692 = vld [vmem:[#allocation10 + $0xb4] sm:$0xff]
    %v693 = vld [vmem:[#allocation10 + $0xbc] sm:$0xf]
    %v694 = vpack.c.bf16 %v655, %v654
    %v695 = vpack.c.bf16 %v657, %v656
    %v696 = vld [vmem:[#allocation11] sm:$0x7]
    %v698 = vlaneseq
    %v699 = vshrl.u32 %v698, 7
    %v700 = vsub.s32 0, %v699
    %v701 = vrot.slane %v696, %v700
    %v702 = vlaneseq
    %v703 = vshrl.u32 %v702, 7
    %v704 = vsub.s32 1, %v703
    %v705 = vrot.slane %v696, %v704
    %v706 = vlaneseq
    %v707 = vshrl.u32 %v706, 7
    %v708 = vsub.s32 2, %v707
    %v709 = vrot.slane %v696, %v708
    %v745 = vunpack.c.l.b16 %v662
    %v746 = vunpack.c.h.b16 %v662
    %v747 = vunpack.c.l.b16 %v663
    %v748 = vunpack.c.l.b16 %v664
    %v749 = vunpack.c.h.b16 %v664
    %v750 = vunpack.c.l.b16 %v665
    %v751 = vunpack.c.l.b16 %v666
    %v752 = vunpack.c.h.b16 %v666
    %v753 = vunpack.c.l.b16 %v667
    %v754 = vunpack.c.l.b16 %v668
    %v755 = vunpack.c.h.b16 %v668
    %v756 = vunpack.c.l.b16 %v669
    %v757 = vunpack.c.l.b16 %v670
    %v758 = vunpack.c.h.b16 %v670
    %v759 = vunpack.c.l.b16 %v671
    %v760 = vunpack.c.l.b16 %v672
    %v761 = vunpack.c.h.b16 %v672
    %v762 = vunpack.c.l.b16 %v673
    %v763 = vunpack.c.l.b16 %v674
    %v764 = vunpack.c.h.b16 %v674
    %v765 = vunpack.c.l.b16 %v675
    %v766 = vunpack.c.l.b16 %v676
    %v767 = vunpack.c.h.b16 %v676
    %v768 = vunpack.c.l.b16 %v677
    %v769 = vunpack.c.l.b16 %v678
    %v770 = vunpack.c.h.b16 %v678
    %v771 = vunpack.c.l.b16 %v679
    %v772 = vunpack.c.l.b16 %v680
    %v773 = vunpack.c.h.b16 %v680
    %v774 = vunpack.c.l.b16 %v681
    %v775 = vunpack.c.l.b16 %v682
    %v776 = vunpack.c.h.b16 %v682
    %v777 = vunpack.c.l.b16 %v683
    %v778 = vunpack.c.l.b16 %v684
    %v779 = vunpack.c.h.b16 %v684
    %v780 = vunpack.c.l.b16 %v685
    %v781 = vunpack.c.l.b16 %v686
    %v782 = vunpack.c.h.b16 %v686
    %v783 = vunpack.c.l.b16 %v687
    %v784 = vunpack.c.l.b16 %v688
    %v785 = vunpack.c.h.b16 %v688
    %v786 = vunpack.c.l.b16 %v689
    %v787 = vunpack.c.l.b16 %v690
    %v788 = vunpack.c.h.b16 %v690
    %v789 = vunpack.c.l.b16 %v691
    %v790 = vunpack.c.l.b16 %v692
    %v791 = vunpack.c.h.b16 %v692
    %v792 = vunpack.c.l.b16 %v693
    %v793 = vpack.c.b16 %v748, %v745
    %v794 = vpack.c.b16 %v749, %v746
    %v795 = vpack.c.b16 %v750, %v747
    %v796 = vpack.c.b16 %v754, %v751
    %v797 = vpack.c.b16 %v755, %v752
    %v798 = vpack.c.b16 %v756, %v753
    %v799 = vpack.c.b16 %v760, %v757
    %v800 = vpack.c.b16 %v761, %v758
    %v801 = vpack.c.b16 %v762, %v759
    %v802 = vpack.c.b16 %v766, %v763
    %v803 = vpack.c.b16 %v767, %v764
    %v804 = vpack.c.b16 %v768, %v765
    %v805 = vpack.c.b16 %v772, %v769
    %v806 = vpack.c.b16 %v773, %v770
    %v807 = vpack.c.b16 %v774, %v771
    %v808 = vpack.c.b16 %v778, %v775
    %v809 = vpack.c.b16 %v779, %v776
    %v810 = vpack.c.b16 %v780, %v777
    %v811 = vpack.c.b16 %v784, %v781
    %v812 = vpack.c.b16 %v785, %v782
    %v813 = vpack.c.b16 %v786, %v783
    %v814 = vpack.c.b16 %v790, %v787
    %v815 = vpack.c.b16 %v791, %v788
    %v816 = vpack.c.b16 %v792, %v789
    %841 = vmatprep.subr.bf16.mxu0 %v815
    %842 = vmatpush1.bf16.msra.mxu0 %v814
    %843 = vmatprep.subr.bf16.mxu0 %v812
    %844 = vmatpush1.bf16.msra.mxu0 %v811
    %845 = vmatprep.subr.bf16.mxu0 %v809
    %846 = vmatpush1.bf16.msra.mxu0 %v808
    %847 = vmatprep.subr.bf16.mxu0 %v806
    %848 = vmatpush1.bf16.msra.mxu0 %v805
    %849 = vmatprep.subr.bf16.mxu0 %v803
    %850 = vmatpush1.bf16.msra.mxu0 %v802
    %851 = vmatprep.subr.bf16.mxu0 %v800
    %852 = vmatpush1.bf16.msra.mxu0 %v799
    %853 = vmatprep.subr.bf16.mxu0 %v797
    %854 = vmatpush1.bf16.msra.mxu0 %v796
    %855 = vmatprep.subr.bf16.mxu0 %v794
    %856 = vmatpush1.bf16.msra.mxu0 %v793
    %857 = vmatprep.subr.bf16.mxu0 0
    %858 = vmatpush2.bf16.msra.mxu0 0
    %859 = vmatprep.subr.bf16.mxu0 0
    %860 = vmatpush2.bf16.msra.mxu0 0
    %861 = vmatprep.subr.bf16.mxu0 0
    %862 = vmatpush2.bf16.msra.mxu0 0
    %863 = vmatprep.subr.bf16.mxu0 0
    %864 = vmatpush2.bf16.msra.mxu0 0
    %865 = vmatprep.subr.bf16.mxu0 0
    %866 = vmatpush2.bf16.msra.mxu0 0
    %867 = vmatprep.subr.bf16.mxu0 0
    %868 = vmatpush2.bf16.msra.mxu0 0
    %869 = vmatprep.subr.bf16.mxu0 0
    %870 = vmatpush2.bf16.msra.mxu0 0
    %871 = vmatprep.subr.bf16.mxu0 0
    %872 = vmatpush2.bf16.msra.mxu0 0
    %873 = vmatprep.mubr.bf16.mxu0 0
    %874 = vmatmul.mubr.bf16.gmra.mxu0 %v694
    %v875 = vpop.f32.mrf.mxu0
    %v876 = vadd.f32 %v701, %v875
    %v877 = vpop.f32.mrf.mxu0
    %v878 = vadd.f32 %v705, %v877
    %v879 = vpop.f32.mrf.mxu0
    %v880 = vadd.f32 %v701, %v879
    %v881 = vpop.f32.mrf.mxu0
    %v882 = vadd.f32 %v705, %v881
    %883 = vmatprep.mubr.bf16.mxu0 0
    %884 = vmatmul.mubr.bf16.gmra.mxu0 %v695
    %v885 = vpop.f32.mrf.mxu0
    %v886 = vadd.f32 %v701, %v885
    %v887 = vpop.f32.mrf.mxu0
    %v888 = vadd.f32 %v705, %v887
    %v889 = vpop.f32.mrf.mxu0
    %v890 = vadd.f32 %v701, %v889
    %v891 = vpop.f32.mrf.mxu0
    %v892 = vadd.f32 %v705, %v891
    %893 = vdwg.mxu0
    %894 = vmatprep.subr.bf16.mxu0 0
    %895 = vmatpush1.bf16.msra.mxu0 %v816
    %896 = vmatprep.subr.bf16.mxu0 0
    %897 = vmatpush1.bf16.msra.mxu0 %v813
    %898 = vmatprep.subr.bf16.mxu0 0
    %899 = vmatpush1.bf16.msra.mxu0 %v810
    %900 = vmatprep.subr.bf16.mxu0 0
    %901 = vmatpush1.bf16.msra.mxu0 %v807
    %902 = vmatprep.subr.bf16.mxu0 0
    %903 = vmatpush1.bf16.msra.mxu0 %v804
    %904 = vmatprep.subr.bf16.mxu0 0
    %905 = vmatpush1.bf16.msra.mxu0 %v801
    %906 = vmatprep.subr.bf16.mxu0 0
    %907 = vmatpush1.bf16.msra.mxu0 %v798
    %908 = vmatprep.subr.bf16.mxu0 0
    %909 = vmatpush1.bf16.msra.mxu0 %v795
    %910 = vmatprep.subr.bf16.mxu0 0
    %911 = vmatpush2.bf16.msra.mxu0 0
    %912 = vmatprep.subr.bf16.mxu0 0
    %913 = vmatpush2.bf16.msra.mxu0 0
    %914 = vmatprep.subr.bf16.mxu0 0
    %915 = vmatpush2.bf16.msra.mxu0 0
    %916 = vmatprep.subr.bf16.mxu0 0
    %917 = vmatpush2.bf16.msra.mxu0 0
    %918 = vmatprep.subr.bf16.mxu0 0
    %919 = vmatpush2.bf16.msra.mxu0 0
    %920 = vmatprep.subr.bf16.mxu0 0
    %921 = vmatpush2.bf16.msra.mxu0 0
    %922 = vmatprep.subr.bf16.mxu0 0
    %923 = vmatpush2.bf16.msra.mxu0 0
    %924 = vmatprep.subr.bf16.mxu0 0
    %925 = vmatpush2.bf16.msra.mxu0 0
    %926 = vmatprep.mubr.bf16.mxu0 0
    %927 = vmatmul.mubr.bf16.gmra.mxu0 %v694
    %v928 = vpop.f32.mrf.mxu0
    %v929 = vadd.f32 %v709, %v928
    %v930 = vpop.f32.mrf.mxu0
    %v931 = vpop.f32.mrf.mxu0
    %v932 = vadd.f32 %v709, %v931
    %v933 = vpop.f32.mrf.mxu0
    %934 = vmatprep.mubr.bf16.mxu0 0
    %935 = vmatmul.mubr.bf16.gmra.mxu0 %v695
    %v936 = vpop.f32.mrf.mxu0
    %v937 = vadd.f32 %v709, %v936
    %v938 = vpop.f32.mrf.mxu0
    %v939 = vpop.f32.mrf.mxu0
    %v940 = vadd.f32 %v709, %v939
    %v941 = vpop.f32.mrf.mxu0
    %942 = vdwg.mxu0
    %v943 = vpack.c.bf16 %v880, %v876
    %v944 = vpack.c.bf16 %v890, %v886
    %v945 = vpack.c.bf16 %v882, %v878
    %v946 = vpack.c.bf16 %v892, %v888
    %v947 = vpack.c.bf16 %v932, %v929
    %v948 = vpack.c.bf16 %v940, %v937
    %vm949 = vcmask 261120
    %v951 = vsel %vm949, %v943, 0
    %v954 = vsel %vm949, %v944, 0
    %v957 = vsel %vm949, %v945, 0
    %v960 = vsel %vm949, %v946, 0
    %962 = vmatprep.subr.bf16.mxu0 0
    %963 = vmatpush1.bf16.xpose.msra.mxu0 0
    %964 = vmatprep.subr.bf16.mxu0 0
    %965 = vmatpush1.bf16.xpose.msra.mxu0 0
    %966 = vmatprep.subr.bf16.mxu0 0
    %967 = vmatpush1.bf16.xpose.msra.mxu0 0
    %968 = vmatprep.subr.bf16.mxu0 0
    %969 = vmatpush1.bf16.xpose.msra.mxu0 0
    %970 = vmatprep.subr.bf16.mxu0 0
    %971 = vmatpush1.bf16.xpose.msra.mxu0 0
    %972 = vmatprep.subr.bf16.mxu0 0
    %973 = vmatpush1.bf16.xpose.msra.mxu0 0
    %974 = vmatprep.subr.bf16.mxu0 0
    %975 = vmatpush1.bf16.xpose.msra.mxu0 %v960
    %976 = vmatprep.subr.bf16.mxu0 0
    %977 = vmatpush1.bf16.xpose.msra.mxu0 %v957
    %978 = vmatprep.subr.bf16.mxu0 0
    %979 = vmatpush2.bf16.xpose.msra.mxu0 0
    %980 = vmatprep.subr.bf16.mxu0 0
    %981 = vmatpush2.bf16.xpose.msra.mxu0 0
    %982 = vmatprep.subr.bf16.mxu0 0
    %983 = vmatpush2.bf16.xpose.msra.mxu0 0
    %984 = vmatprep.subr.bf16.mxu0 0
    %985 = vmatpush2.bf16.xpose.msra.mxu0 0
    %986 = vmatprep.subr.bf16.mxu0 0
    %987 = vmatpush2.bf16.xpose.msra.mxu0 0
    %988 = vmatprep.subr.bf16.mxu0 0
    %989 = vmatpush2.bf16.xpose.msra.mxu0 0
    %990 = vmatprep.subr.bf16.mxu0 0
    %991 = vmatpush2.bf16.xpose.msra.mxu0 0
    %992 = vmatprep.subr.bf16.mxu0 0
    %993 = vmatpush2.bf16.xpose.msra.mxu0 0
    %994 = vmatprep.mubr.bf16.mxu0 0
    %995 = vmatmul.mubr.bf16.gmra.mxu0 %v951
    %v996 = vpop.f32.mrf.mxu0
    %v997 = vadd.f32 %v658, %v996
    %v998 = vpop.f32.mrf.mxu0
    %v999 = vpop.f32.mrf.mxu0
    %v1000 = vadd.f32 %v659, %v999
    %v1001 = vpop.f32.mrf.mxu0
    %1002 = vmatprep.mubr.bf16.mxu0 0
    %1003 = vmatmul.mubr.bf16.gmra.mxu0 %v954
    %v1004 = vpop.f32.mrf.mxu0
    %v1005 = vadd.f32 %v660, %v1004
    %v1006 = vpop.f32.mrf.mxu0
    %v1007 = vpop.f32.mrf.mxu0
    %v1008 = vadd.f32 %v661, %v1007
    %v1009 = vpop.f32.mrf.mxu0
    %1010 = vdwg.mxu0
    %v1011 = vsel %vm949, %v997, -inf
    %1012 = vmax.xlane.f32.xlu0 %v1011
    %v1013 = vpop.xlane.xlu0 %1012
    %v1014 = vsel %vm949, %v1000, -inf
    %1015 = vmax.xlane.f32.xlu0 %v1014
    %v1016 = vpop.xlane.xlu0 %1015
    %v1017 = vsel %vm949, %v1005, -inf
    %1018 = vmax.xlane.f32.xlu0 %v1017
    %v1019 = vpop.xlane.xlu0 %1018
    %v1020 = vsel %vm949, %v1008, -inf
    %1021 = vmax.xlane.f32.xlu0 %v1020
    %v1022 = vpop.xlane.xlu0 %1021
    %v1023 = vsub.f32 %v997, %v1013
    %v1024 = vsub.f32 %v1000, %v1016
    %v1025 = vsub.f32 %v1005, %v1019
    %v1026 = vsub.f32 %v1008, %v1022
    %v1027 = vmul.f32 %v1023, 1.442695
    %v1028 = vpow.pop %v1027
    %v1029 = vmul.f32 %v1024, 1.442695
    %v1030 = vpow.pop %v1029
    %v1031 = vmul.f32 %v1025, 1.442695
    %v1032 = vpow.pop %v1031
    %v1033 = vmul.f32 %v1026, 1.442695
    %v1034 = vpow.pop %v1033
    %v1035 = vsel %vm949, %v1028, 0.0
    %1036 = vadd.xlane.f32.xlu0 %v1035
    %v1037 = vpop.xlane.xlu0 %1036
    %v1038 = vsel %vm949, %v1030, 0.0
    %1039 = vadd.xlane.f32.xlu0 %v1038
    %v1040 = vpop.xlane.xlu0 %1039
    %v1041 = vsel %vm949, %v1032, 0.0
    %1042 = vadd.xlane.f32.xlu0 %v1041
    %v1043 = vpop.xlane.xlu0 %1042
    %v1044 = vsel %vm949, %v1034, 0.0
    %1045 = vadd.xlane.f32.xlu0 %v1044
    %v1046 = vpop.xlane.xlu0 %1045
    %v1047 = vrcp.pop %v1037
    %v1048 = vrcp.pop %v1040
    %v1049 = vrcp.pop %v1043
    %v1050 = vrcp.pop %v1046
    %v1051 = vmul.f32 %v1028, %v1047
    %v1052 = vmul.f32 %v1030, %v1048
    %v1053 = vmul.f32 %v1032, %v1049
    %v1054 = vmul.f32 %v1034, %v1050
    %v1055 = vpack.c.bf16 %v1052, %v1051
    %v1056 = vpack.c.bf16 %v1054, %v1053
    %v1058 = vsel %vm949, %v1055, 0
    %v1061 = vsel %vm949, %v1056, 0
    %1063 = vmatprep.subr.bf16.mxu0 0
    %1064 = vmatpush1.bf16.msra.mxu0 0
    %1065 = vmatprep.subr.bf16.mxu0 0
    %1066 = vmatpush1.bf16.msra.mxu0 0
    %1067 = vmatprep.subr.bf16.mxu0 0
    %1068 = vmatpush1.bf16.msra.mxu0 0
    %1069 = vmatprep.subr.bf16.mxu0 0
    %1070 = vmatpush1.bf16.msra.mxu0 0
    %1071 = vmatprep.subr.bf16.mxu0 0
    %1072 = vmatpush1.bf16.msra.mxu0 0
    %1073 = vmatprep.subr.bf16.mxu0 0
    %1074 = vmatpush1.bf16.msra.mxu0 0
    %1075 = vmatprep.subr.bf16.mxu0 0
    %1076 = vmatpush1.bf16.msra.mxu0 %v948
    %1077 = vmatprep.subr.bf16.mxu0 0
    %1078 = vmatpush1.bf16.msra.mxu0 %v947
    %1079 = vmatprep.subr.bf16.mxu0 0
    %1080 = vmatpush2.bf16.msra.mxu0 0
    %1081 = vmatprep.subr.bf16.mxu0 0
    %1082 = vmatpush2.bf16.msra.mxu0 0
    %1083 = vmatprep.subr.bf16.mxu0 0
    %1084 = vmatpush2.bf16.msra.mxu0 0
    %1085 = vmatprep.subr.bf16.mxu0 0
    %1086 = vmatpush2.bf16.msra.mxu0 0
    %1087 = vmatprep.subr.bf16.mxu0 0
    %1088 = vmatpush2.bf16.msra.mxu0 0
    %1089 = vmatprep.subr.bf16.mxu0 0
    %1090 = vmatpush2.bf16.msra.mxu0 0
    %1091 = vmatprep.subr.bf16.mxu0 0
    %1092 = vmatpush2.bf16.msra.mxu0 0
    %1093 = vmatprep.subr.bf16.mxu0 0
    %1094 = vmatpush2.bf16.msra.mxu0 0
    %1095 = vmatprep.mubr.bf16.mxu0 0
    %1096 = vmatmul.mubr.bf16.gmra.mxu0 %v1058
    %v1097 = vpop.f32.mrf.mxu0
    %v1098 = vadd.f32 0.0, %v1097
    %v1099 = vpop.f32.mrf.mxu0
    %v1100 = vpop.f32.mrf.mxu0
    %v1101 = vadd.f32 0.0, %v1100
    %v1102 = vpop.f32.mrf.mxu0
    %1103 = vmatprep.mubr.bf16.mxu0 0
    %1104 = vmatmul.mubr.bf16.gmra.mxu0 %v1061
    %v1105 = vpop.f32.mrf.mxu0
    %v1106 = vadd.f32 0.0, %v1105
    %v1107 = vpop.f32.mrf.mxu0
    %v1108 = vpop.f32.mrf.mxu0
    %v1109 = vadd.f32 0.0, %v1108
    %v1110 = vpop.f32.mrf.mxu0
    %1111 = vdwg.mxu0
    %1112 = vst.msk [vmem:[#allocation2] sm:$0xff] %vm949, %v1098
    %1113 = vst.msk [vmem:[#allocation2 + $0x8] sm:$0xff] %vm949, %v1101
    %1114 = vst.msk [vmem:[#allocation2 + $0x10] sm:$0xff] %vm949, %v1106
    %1115 = vst.msk [vmem:[#allocation2 + $0x18] sm:$0xff] %vm949, %v1109
    %1118 = vrot.lane.b32.xlu0 %v943, 96
    %v1119 = vpop.permute.xlu0 %1118
    %1120 = vrot.lane.b32.xlu0 %v944, 96
    %v1121 = vpop.permute.xlu0 %1120
    %1124 = vrot.lane.b32.xlu0 %v945, 96
    %v1125 = vpop.permute.xlu0 %1124
    %1126 = vrot.lane.b32.xlu0 %v946, 96
    %v1127 = vpop.permute.xlu0 %1126
    %v1129 = vsel %vm949, %v1119, 0
    %v1132 = vsel %vm949, %v1121, 0
    %v1135 = vsel %vm949, %v1125, 0
    %v1138 = vsel %vm949, %v1127, 0
    %1140 = vmatprep.subr.bf16.mxu0 0
    %1141 = vmatpush1.bf16.xpose.msra.mxu0 0
    %1142 = vmatprep.subr.bf16.mxu0 0
    %1143 = vmatpush1.bf16.xpose.msra.mxu0 0
    %1144 = vmatprep.subr.bf16.mxu0 0
    %1145 = vmatpush1.bf16.xpose.msra.mxu0 0
    %1146 = vmatprep.subr.bf16.mxu0 0
    %1147 = vmatpush1.bf16.xpose.msra.mxu0 0
    %1148 = vmatprep.subr.bf16.mxu0 0
    %1149 = vmatpush1.bf16.xpose.msra.mxu0 0
    %1150 = vmatprep.subr.bf16.mxu0 0
    %1151 = vmatpush1.bf16.xpose.msra.mxu0 0
    %1152 = vmatprep.subr.bf16.mxu0 0
    %1153 = vmatpush1.bf16.xpose.msra.mxu0 %v1138
    %1154 = vmatprep.subr.bf16.mxu0 0
    %1155 = vmatpush1.bf16.xpose.msra.mxu0 %v1135
    %1156 = vmatprep.subr.bf16.mxu0 0
    %1157 = vmatpush2.bf16.xpose.msra.mxu0 0
    %1158 = vmatprep.subr.bf16.mxu0 0
    %1159 = vmatpush2.bf16.xpose.msra.mxu0 0
    %1160 = vmatprep.subr.bf16.mxu0 0
    %1161 = vmatpush2.bf16.xpose.msra.mxu0 0
    %1162 = vmatprep.subr.bf16.mxu0 0
    %1163 = vmatpush2.bf16.xpose.msra.mxu0 0
    %1164 = vmatprep.subr.bf16.mxu0 0
    %1165 = vmatpush2.bf16.xpose.msra.mxu0 0
    %1166 = vmatprep.subr.bf16.mxu0 0
    %1167 = vmatpush2.bf16.xpose.msra.mxu0 0
    %1168 = vmatprep.subr.bf16.mxu0 0
    %1169 = vmatpush2.bf16.xpose.msra.mxu0 0
    %1170 = vmatprep.subr.bf16.mxu0 0
    %1171 = vmatpush2.bf16.xpose.msra.mxu0 0
    %1172 = vmatprep.mubr.bf16.mxu0 0
    %1173 = vmatmul.mubr.bf16.gmra.mxu0 %v1129
    %v1174 = vpop.f32.mrf.mxu0
    %v1175 = vadd.f32 %v658, %v1174
    %v1176 = vpop.f32.mrf.mxu0
    %v1177 = vpop.f32.mrf.mxu0
    %v1178 = vadd.f32 %v659, %v1177
    %v1179 = vpop.f32.mrf.mxu0
    %1180 = vmatprep.mubr.bf16.mxu0 0
    %1181 = vmatmul.mubr.bf16.gmra.mxu0 %v1132
    %v1182 = vpop.f32.mrf.mxu0
    %v1183 = vadd.f32 %v660, %v1182
    %v1184 = vpop.f32.mrf.mxu0
    %v1185 = vpop.f32.mrf.mxu0
    %v1186 = vadd.f32 %v661, %v1185
    %v1187 = vpop.f32.mrf.mxu0
    %1188 = vdwg.mxu0
    %v1189 = vsel %vm949, %v1175, -inf
    %1190 = vmax.xlane.f32.xlu0 %v1189
    %v1191 = vpop.xlane.xlu0 %1190
    %v1192 = vsel %vm949, %v1178, -inf
    %1193 = vmax.xlane.f32.xlu0 %v1192
    %v1194 = vpop.xlane.xlu0 %1193
    %v1195 = vsel %vm949, %v1183, -inf
    %1196 = vmax.xlane.f32.xlu0 %v1195
    %v1197 = vpop.xlane.xlu0 %1196
    %v1198 = vsel %vm949, %v1186, -inf
    %1199 = vmax.xlane.f32.xlu0 %v1198
    %v1200 = vpop.xlane.xlu0 %1199
    %v1201 = vsub.f32 %v1175, %v1191
    %v1202 = vsub.f32 %v1178, %v1194
    %v1203 = vsub.f32 %v1183, %v1197
    %v1204 = vsub.f32 %v1186, %v1200
    %v1205 = vmul.f32 %v1201, 1.442695
    %v1206 = vpow.pop %v1205
    %v1207 = vmul.f32 %v1202, 1.442695
    %v1208 = vpow.pop %v1207
    %v1209 = vmul.f32 %v1203, 1.442695
    %v1210 = vpow.pop %v1209
    %v1211 = vmul.f32 %v1204, 1.442695
    %v1212 = vpow.pop %v1211
    %v1213 = vsel %vm949, %v1206, 0.0
    %1214 = vadd.xlane.f32.xlu0 %v1213
    %v1215 = vpop.xlane.xlu0 %1214
    %v1216 = vsel %vm949, %v1208, 0.0
    %1217 = vadd.xlane.f32.xlu0 %v1216
    %v1218 = vpop.xlane.xlu0 %1217
    %v1219 = vsel %vm949, %v1210, 0.0
    %1220 = vadd.xlane.f32.xlu0 %v1219
    %v1221 = vpop.xlane.xlu0 %1220
    %v1222 = vsel %vm949, %v1212, 0.0
    %1223 = vadd.xlane.f32.xlu0 %v1222
    %v1224 = vpop.xlane.xlu0 %1223
    %v1225 = vrcp.pop %v1215
    %v1226 = vrcp.pop %v1218
    %v1227 = vrcp.pop %v1221
    %v1228 = vrcp.pop %v1224
    %v1229 = vmul.f32 %v1206, %v1225
    %v1230 = vmul.f32 %v1208, %v1226
    %v1231 = vmul.f32 %v1210, %v1227
    %v1232 = vmul.f32 %v1212, %v1228
    %v1233 = vpack.c.bf16 %v1230, %v1229
    %v1234 = vpack.c.bf16 %v1232, %v1231
    %1237 = vrot.lane.b32.xlu0 %v947, 96
    %v1238 = vpop.permute.xlu0 %1237
    %1239 = vrot.lane.b32.xlu0 %v948, 96
    %v1240 = vpop.permute.xlu0 %1239
    %v1244 = vsel %vm949, %v1233, 0
    %v1247 = vsel %vm949, %v1234, 0
    %1249 = vmatprep.subr.bf16.mxu0 0
    %1250 = vmatpush1.bf16.msra.mxu0 0
    %1251 = vmatprep.subr.bf16.mxu0 0
    %1252 = vmatpush1.bf16.msra.mxu0 0
    %1253 = vmatprep.subr.bf16.mxu0 0
    %1254 = vmatpush1.bf16.msra.mxu0 0
    %1255 = vmatprep.subr.bf16.mxu0 0
    %1256 = vmatpush1.bf16.msra.mxu0 0
    %1257 = vmatprep.subr.bf16.mxu0 0
    %1258 = vmatpush1.bf16.msra.mxu0 0
    %1259 = vmatprep.subr.bf16.mxu0 0
    %1260 = vmatpush1.bf16.msra.mxu0 0
    %1261 = vmatprep.subr.bf16.mxu0 0
    %1262 = vmatpush1.bf16.msra.mxu0 %v1240
    %1263 = vmatprep.subr.bf16.mxu0 0
    %1264 = vmatpush1.bf16.msra.mxu0 %v1238
    %1265 = vmatprep.subr.bf16.mxu0 0
    %1266 = vmatpush2.bf16.msra.mxu0 0
    %1267 = vmatprep.subr.bf16.mxu0 0
    %1268 = vmatpush2.bf16.msra.mxu0 0
    %1269 = vmatprep.subr.bf16.mxu0 0
    %1270 = vmatpush2.bf16.msra.mxu0 0
    %1271 = vmatprep.subr.bf16.mxu0 0
    %1272 = vmatpush2.bf16.msra.mxu0 0
    %1273 = vmatprep.subr.bf16.mxu0 0
    %1274 = vmatpush2.bf16.msra.mxu0 0
    %1275 = vmatprep.subr.bf16.mxu0 0
    %1276 = vmatpush2.bf16.msra.mxu0 0
    %1277 = vmatprep.subr.bf16.mxu0 0
    %1278 = vmatpush2.bf16.msra.mxu0 0
    %1279 = vmatprep.subr.bf16.mxu0 0
    %1280 = vmatpush2.bf16.msra.mxu0 0
    %1281 = vmatprep.mubr.bf16.mxu0 0
    %1282 = vmatmul.mubr.bf16.gmra.mxu0 %v1244
    %v1283 = vpop.f32.mrf.mxu0
    %v1284 = vadd.f32 0.0, %v1283
    %v1285 = vpop.f32.mrf.mxu0
    %v1286 = vpop.f32.mrf.mxu0
    %v1287 = vadd.f32 0.0, %v1286
    %v1288 = vpop.f32.mrf.mxu0
    %1289 = vmatprep.mubr.bf16.mxu0 0
    %1290 = vmatmul.mubr.bf16.gmra.mxu0 %v1247
    %v1291 = vpop.f32.mrf.mxu0
    %v1292 = vadd.f32 0.0, %v1291
    %v1293 = vpop.f32.mrf.mxu0
    %v1294 = vpop.f32.mrf.mxu0
    %v1295 = vadd.f32 0.0, %v1294
    %v1296 = vpop.f32.mrf.mxu0
    %1297 = vdwg.mxu0
    %1302 = vrot.lane.b32.xlu0 %v1284, 32
    %v1303 = vpop.permute.xlu0 %1302
    %1304 = vrot.lane.b32.xlu0 %v1287, 32
    %v1305 = vpop.permute.xlu0 %1304
    %1306 = vrot.lane.b32.xlu0 %v1292, 32
    %v1307 = vpop.permute.xlu0 %1306
    %1308 = vrot.lane.b32.xlu0 %v1295, 32
    %v1309 = vpop.permute.xlu0 %1308
    %vm1314 = vcmask 523520
    %1315 = vst.msk [vmem:[#allocation2] sm:$0xff] %vm1314, %v1303
    %1316 = vst.msk [vmem:[#allocation2 + $0x8] sm:$0xff] %vm1314, %v1305
    %1317 = vst.msk [vmem:[#allocation2 + $0x10] sm:$0xff] %vm1314, %v1307
    %1318 = vst.msk [vmem:[#allocation2 + $0x18] sm:$0xff] %vm1314, %v1309
    %1319 = vrot.lane.b32.xlu0 %v943, 64
    %v1320 = vpop.permute.xlu0 %1319
    %1321 = vrot.lane.b32.xlu0 %v944, 64
    %v1322 = vpop.permute.xlu0 %1321
    %1323 = vrot.lane.b32.xlu0 %v945, 64
    %v1324 = vpop.permute.xlu0 %1323
    %1325 = vrot.lane.b32.xlu0 %v946, 64
    %v1326 = vpop.permute.xlu0 %1325
    %v1328 = vsel %vm949, %v1320, 0
    %v1331 = vsel %vm949, %v1322, 0
    %v1334 = vsel %vm949, %v1324, 0
    %v1337 = vsel %vm949, %v1326, 0
    %1339 = vmatprep.subr.bf16.mxu0 0
    %1340 = vmatpush1.bf16.xpose.msra.mxu0 0
    %1341 = vmatprep.subr.bf16.mxu0 0
    %1342 = vmatpush1.bf16.xpose.msra.mxu0 0
    %1343 = vmatprep.subr.bf16.mxu0 0
    %1344 = vmatpush1.bf16.xpose.msra.mxu0 0
    %1345 = vmatprep.subr.bf16.mxu0 0
    %1346 = vmatpush1.bf16.xpose.msra.mxu0 0
    %1347 = vmatprep.subr.bf16.mxu0 0
    %1348 = vmatpush1.bf16.xpose.msra.mxu0 0
    %1349 = vmatprep.subr.bf16.mxu0 0
    %1350 = vmatpush1.bf16.xpose.msra.mxu0 0
    %1351 = vmatprep.subr.bf16.mxu0 0
    %1352 = vmatpush1.bf16.xpose.msra.mxu0 %v1337
    %1353 = vmatprep.subr.bf16.mxu0 0
    %1354 = vmatpush1.bf16.xpose.msra.mxu0 %v1334
    %1355 = vmatprep.subr.bf16.mxu0 0
    %1356 = vmatpush2.bf16.xpose.msra.mxu0 0
    %1357 = vmatprep.subr.bf16.mxu0 0
    %1358 = vmatpush2.bf16.xpose.msra.mxu0 0
    %1359 = vmatprep.subr.bf16.mxu0 0
    %1360 = vmatpush2.bf16.xpose.msra.mxu0 0
    %1361 = vmatprep.subr.bf16.mxu0 0
    %1362 = vmatpush2.bf16.xpose.msra.mxu0 0
    %1363 = vmatprep.subr.bf16.mxu0 0
    %1364 = vmatpush2.bf16.xpose.msra.mxu0 0
    %1365 = vmatprep.subr.bf16.mxu0 0
    %1366 = vmatpush2.bf16.xpose.msra.mxu0 0
    %1367 = vmatprep.subr.bf16.mxu0 0
    %1368 = vmatpush2.bf16.xpose.msra.mxu0 0
    %1369 = vmatprep.subr.bf16.mxu0 0
    %1370 = vmatpush2.bf16.xpose.msra.mxu0 0
    %1371 = vmatprep.mubr.bf16.mxu0 0
    %1372 = vmatmul.mubr.bf16.gmra.mxu0 %v1328
    %v1373 = vpop.f32.mrf.mxu0
    %v1374 = vadd.f32 %v658, %v1373
    %v1375 = vpop.f32.mrf.mxu0
    %v1376 = vpop.f32.mrf.mxu0
    %v1377 = vadd.f32 %v659, %v1376
    %v1378 = vpop.f32.mrf.mxu0
    %1379 = vmatprep.mubr.bf16.mxu0 0
    %1380 = vmatmul.mubr.bf16.gmra.mxu0 %v1331
    %v1381 = vpop.f32.mrf.mxu0
    %v1382 = vadd.f32 %v660, %v1381
    %v1383 = vpop.f32.mrf.mxu0
    %v1384 = vpop.f32.mrf.mxu0
    %v1385 = vadd.f32 %v661, %v1384
    %v1386 = vpop.f32.mrf.mxu0
    %1387 = vdwg.mxu0
    %v1388 = vsel %vm949, %v1374, -inf
    %1389 = vmax.xlane.f32.xlu0 %v1388
    %v1390 = vpop.xlane.xlu0 %1389
    %v1391 = vsel %vm949, %v1377, -inf
    %1392 = vmax.xlane.f32.xlu0 %v1391
    %v1393 = vpop.xlane.xlu0 %1392
    %v1394 = vsel %vm949, %v1382, -inf
    %1395 = vmax.xlane.f32.xlu0 %v1394
    %v1396 = vpop.xlane.xlu0 %1395
    %v1397 = vsel %vm949, %v1385, -inf
    %1398 = vmax.xlane.f32.xlu0 %v1397
    %v1399 = vpop.xlane.xlu0 %1398
    %v1400 = vsub.f32 %v1374, %v1390
    %v1401 = vsub.f32 %v1377, %v1393
    %v1402 = vsub.f32 %v1382, %v1396
    %v1403 = vsub.f32 %v1385, %v1399
    %v1404 = vmul.f32 %v1400, 1.442695
    %v1405 = vpow.pop %v1404
    %v1406 = vmul.f32 %v1401, 1.442695
    %v1407 = vpow.pop %v1406
    %v1408 = vmul.f32 %v1402, 1.442695
    %v1409 = vpow.pop %v1408
    %v1410 = vmul.f32 %v1403, 1.442695
    %v1411 = vpow.pop %v1410
    %v1412 = vsel %vm949, %v1405, 0.0
    %1413 = vadd.xlane.f32.xlu0 %v1412
    %v1414 = vpop.xlane.xlu0 %1413
    %v1415 = vsel %vm949, %v1407, 0.0
    %1416 = vadd.xlane.f32.xlu0 %v1415
    %v1417 = vpop.xlane.xlu0 %1416
    %v1418 = vsel %vm949, %v1409, 0.0
    %1419 = vadd.xlane.f32.xlu0 %v1418
    %v1420 = vpop.xlane.xlu0 %1419
    %v1421 = vsel %vm949, %v1411, 0.0
    %1422 = vadd.xlane.f32.xlu0 %v1421
    %v1423 = vpop.xlane.xlu0 %1422
    %v1424 = vrcp.pop %v1414
    %v1425 = vrcp.pop %v1417
    %v1426 = vrcp.pop %v1420
    %v1427 = vrcp.pop %v1423
    %v1428 = vmul.f32 %v1405, %v1424
    %v1429 = vmul.f32 %v1407, %v1425
    %v1430 = vmul.f32 %v1409, %v1426
    %v1431 = vmul.f32 %v1411, %v1427
    %v1432 = vpack.c.bf16 %v1429, %v1428
    %v1433 = vpack.c.bf16 %v1431, %v1430
    %1434 = vrot.lane.b32.xlu0 %v947, 64
    %v1435 = vpop.permute.xlu0 %1434
    %1436 = vrot.lane.b32.xlu0 %v948, 64
    %v1437 = vpop.permute.xlu0 %1436
    %v1441 = vsel %vm949, %v1432, 0
    %v1444 = vsel %vm949, %v1433, 0
    %1446 = vmatprep.subr.bf16.mxu0 0
    %1447 = vmatpush1.bf16.msra.mxu0 0
    %1448 = vmatprep.subr.bf16.mxu0 0
    %1449 = vmatpush1.bf16.msra.mxu0 0
    %1450 = vmatprep.subr.bf16.mxu0 0
    %1451 = vmatpush1.bf16.msra.mxu0 0
    %1452 = vmatprep.subr.bf16.mxu0 0
    %1453 = vmatpush1.bf16.msra.mxu0 0
    %1454 = vmatprep.subr.bf16.mxu0 0
    %1455 = vmatpush1.bf16.msra.mxu0 0
    %1456 = vmatprep.subr.bf16.mxu0 0
    %1457 = vmatpush1.bf16.msra.mxu0 0
    %1458 = vmatprep.subr.bf16.mxu0 0
    %1459 = vmatpush1.bf16.msra.mxu0 %v1437
    %1460 = vmatprep.subr.bf16.mxu0 0
    %1461 = vmatpush1.bf16.msra.mxu0 %v1435
    %1462 = vmatprep.subr.bf16.mxu0 0
    %1463 = vmatpush2.bf16.msra.mxu0 0
    %1464 = vmatprep.subr.bf16.mxu0 0
    %1465 = vmatpush2.bf16.msra.mxu0 0
    %1466 = vmatprep.subr.bf16.mxu0 0
    %1467 = vmatpush2.bf16.msra.mxu0 0
    %1468 = vmatprep.subr.bf16.mxu0 0
    %1469 = vmatpush2.bf16.msra.mxu0 0
    %1470 = vmatprep.subr.bf16.mxu0 0
    %1471 = vmatpush2.bf16.msra.mxu0 0
    %1472 = vmatprep.subr.bf16.mxu0 0
    %1473 = vmatpush2.bf16.msra.mxu0 0
    %1474 = vmatprep.subr.bf16.mxu0 0
    %1475 = vmatpush2.bf16.msra.mxu0 0
    %1476 = vmatprep.subr.bf16.mxu0 0
    %1477 = vmatpush2.bf16.msra.mxu0 0
    %1478 = vmatprep.mubr.bf16.mxu0 0
    %1479 = vmatmul.mubr.bf16.gmra.mxu0 %v1441
    %v1480 = vpop.f32.mrf.mxu0
    %v1481 = vadd.f32 0.0, %v1480
    %v1482 = vpop.f32.mrf.mxu0
    %v1483 = vpop.f32.mrf.mxu0
    %v1484 = vadd.f32 0.0, %v1483
    %v1485 = vpop.f32.mrf.mxu0
    %1486 = vmatprep.mubr.bf16.mxu0 0
    %1487 = vmatmul.mubr.bf16.gmra.mxu0 %v1444
    %v1488 = vpop.f32.mrf.mxu0
    %v1489 = vadd.f32 0.0, %v1488
    %v1490 = vpop.f32.mrf.mxu0
    %v1491 = vpop.f32.mrf.mxu0
    %v1492 = vadd.f32 0.0, %v1491
    %v1493 = vpop.f32.mrf.mxu0
    %1494 = vdwg.mxu0
    %1499 = vrot.lane.b32.xlu0 %v1481, 64
    %v1500 = vpop.permute.xlu0 %1499
    %1501 = vrot.lane.b32.xlu0 %v1484, 64
    %v1502 = vpop.permute.xlu0 %1501
    %1503 = vrot.lane.b32.xlu0 %v1489, 64
    %v1504 = vpop.permute.xlu0 %1503
    %1505 = vrot.lane.b32.xlu0 %v1492, 64
    %v1506 = vpop.permute.xlu0 %1505
    %vm1511 = vcmask 785920
    %1512 = vst.msk [vmem:[#allocation2] sm:$0xff] %vm1511, %v1500
    %1513 = vst.msk [vmem:[#allocation2 + $0x8] sm:$0xff] %vm1511, %v1502
    %1514 = vst.msk [vmem:[#allocation2 + $0x10] sm:$0xff] %vm1511, %v1504
    %1515 = vst.msk [vmem:[#allocation2 + $0x18] sm:$0xff] %vm1511, %v1506
    %1516 = vrot.lane.b32.xlu0 %v943, 32
    %v1517 = vpop.permute.xlu0 %1516
    %1518 = vrot.lane.b32.xlu0 %v944, 32
    %v1519 = vpop.permute.xlu0 %1518
    %1520 = vrot.lane.b32.xlu0 %v945, 32
    %v1521 = vpop.permute.xlu0 %1520
    %1522 = vrot.lane.b32.xlu0 %v946, 32
    %v1523 = vpop.permute.xlu0 %1522
    %v1525 = vsel %vm949, %v1517, 0
    %v1528 = vsel %vm949, %v1519, 0
    %v1531 = vsel %vm949, %v1521, 0
    %v1534 = vsel %vm949, %v1523, 0
    %1536 = vmatprep.subr.bf16.mxu0 0
    %1537 = vmatpush1.bf16.xpose.msra.mxu0 0
    %1538 = vmatprep.subr.bf16.mxu0 0
    %1539 = vmatpush1.bf16.xpose.msra.mxu0 0
    %1540 = vmatprep.subr.bf16.mxu0 0
    %1541 = vmatpush1.bf16.xpose.msra.mxu0 0
    %1542 = vmatprep.subr.bf16.mxu0 0
    %1543 = vmatpush1.bf16.xpose.msra.mxu0 0
    %1544 = vmatprep.subr.bf16.mxu0 0
    %1545 = vmatpush1.bf16.xpose.msra.mxu0 0
    %1546 = vmatprep.subr.bf16.mxu0 0
    %1547 = vmatpush1.bf16.xpose.msra.mxu0 0
    %1548 = vmatprep.subr.bf16.mxu0 0
    %1549 = vmatpush1.bf16.xpose.msra.mxu0 %v1534
    %1550 = vmatprep.subr.bf16.mxu0 0
    %1551 = vmatpush1.bf16.xpose.msra.mxu0 %v1531
    %1552 = vmatprep.subr.bf16.mxu0 0
    %1553 = vmatpush2.bf16.xpose.msra.mxu0 0
    %1554 = vmatprep.subr.bf16.mxu0 0
    %1555 = vmatpush2.bf16.xpose.msra.mxu0 0
    %1556 = vmatprep.subr.bf16.mxu0 0
    %1557 = vmatpush2.bf16.xpose.msra.mxu0 0
    %1558 = vmatprep.subr.bf16.mxu0 0
    %1559 = vmatpush2.bf16.xpose.msra.mxu0 0
    %1560 = vmatprep.subr.bf16.mxu0 0
    %1561 = vmatpush2.bf16.xpose.msra.mxu0 0
    %1562 = vmatprep.subr.bf16.mxu0 0
    %1563 = vmatpush2.bf16.xpose.msra.mxu0 0
    %1564 = vmatprep.subr.bf16.mxu0 0
    %1565 = vmatpush2.bf16.xpose.msra.mxu0 0
    %1566 = vmatprep.subr.bf16.mxu0 0
    %1567 = vmatpush2.bf16.xpose.msra.mxu0 0
    %1568 = vmatprep.mubr.bf16.mxu0 0
    %1569 = vmatmul.mubr.bf16.gmra.mxu0 %v1525
    %v1570 = vpop.f32.mrf.mxu0
    %v1571 = vadd.f32 %v658, %v1570
    %v1572 = vpop.f32.mrf.mxu0
    %v1573 = vpop.f32.mrf.mxu0
    %v1574 = vadd.f32 %v659, %v1573
    %v1575 = vpop.f32.mrf.mxu0
    %1576 = vmatprep.mubr.bf16.mxu0 0
    %1577 = vmatmul.mubr.bf16.gmra.mxu0 %v1528
    %v1578 = vpop.f32.mrf.mxu0
    %v1579 = vadd.f32 %v660, %v1578
    %v1580 = vpop.f32.mrf.mxu0
    %v1581 = vpop.f32.mrf.mxu0
    %v1582 = vadd.f32 %v661, %v1581
    %v1583 = vpop.f32.mrf.mxu0
    %1584 = vdwg.mxu0
    %v1585 = vsel %vm949, %v1571, -inf
    %1586 = vmax.xlane.f32.xlu0 %v1585
    %v1587 = vpop.xlane.xlu0 %1586
    %v1588 = vsel %vm949, %v1574, -inf
    %1589 = vmax.xlane.f32.xlu0 %v1588
    %v1590 = vpop.xlane.xlu0 %1589
    %v1591 = vsel %vm949, %v1579, -inf
    %1592 = vmax.xlane.f32.xlu0 %v1591
    %v1593 = vpop.xlane.xlu0 %1592
    %v1594 = vsel %vm949, %v1582, -inf
    %1595 = vmax.xlane.f32.xlu0 %v1594
    %v1596 = vpop.xlane.xlu0 %1595
    %v1597 = vsub.f32 %v1571, %v1587
    %v1598 = vsub.f32 %v1574, %v1590
    %v1599 = vsub.f32 %v1579, %v1593
    %v1600 = vsub.f32 %v1582, %v1596
    %v1601 = vmul.f32 %v1597, 1.442695
    %v1602 = vpow.pop %v1601
    %v1603 = vmul.f32 %v1598, 1.442695
    %v1604 = vpow.pop %v1603
    %v1605 = vmul.f32 %v1599, 1.442695
    %v1606 = vpow.pop %v1605
    %v1607 = vmul.f32 %v1600, 1.442695
    %v1608 = vpow.pop %v1607
    %v1609 = vsel %vm949, %v1602, 0.0
    %1610 = vadd.xlane.f32.xlu0 %v1609
    %v1611 = vpop.xlane.xlu0 %1610
    %v1612 = vsel %vm949, %v1604, 0.0
    %1613 = vadd.xlane.f32.xlu0 %v1612
    %v1614 = vpop.xlane.xlu0 %1613
    %v1615 = vsel %vm949, %v1606, 0.0
    %1616 = vadd.xlane.f32.xlu0 %v1615
    %v1617 = vpop.xlane.xlu0 %1616
    %v1618 = vsel %vm949, %v1608, 0.0
    %1619 = vadd.xlane.f32.xlu0 %v1618
    %v1620 = vpop.xlane.xlu0 %1619
    %v1621 = vrcp.pop %v1611
    %v1622 = vrcp.pop %v1614
    %v1623 = vrcp.pop %v1617
    %v1624 = vrcp.pop %v1620
    %v1625 = vmul.f32 %v1602, %v1621
    %v1626 = vmul.f32 %v1604, %v1622
    %v1627 = vmul.f32 %v1606, %v1623
    %v1628 = vmul.f32 %v1608, %v1624
    %v1629 = vpack.c.bf16 %v1626, %v1625
    %v1630 = vpack.c.bf16 %v1628, %v1627
    %1631 = vrot.lane.b32.xlu0 %v947, 32
    %v1632 = vpop.permute.xlu0 %1631
    %1633 = vrot.lane.b32.xlu0 %v948, 32
    %v1634 = vpop.permute.xlu0 %1633
    %v1638 = vsel %vm949, %v1629, 0
    %v1641 = vsel %vm949, %v1630, 0
    %1643 = vmatprep.subr.bf16.mxu0 0
    %1644 = vmatpush1.bf16.msra.mxu0 0
    %1645 = vmatprep.subr.bf16.mxu0 0
    %1646 = vmatpush1.bf16.msra.mxu0 0
    %1647 = vmatprep.subr.bf16.mxu0 0
    %1648 = vmatpush1.bf16.msra.mxu0 0
    %1649 = vmatprep.subr.bf16.mxu0 0
    %1650 = vmatpush1.bf16.msra.mxu0 0
    %1651 = vmatprep.subr.bf16.mxu0 0
    %1652 = vmatpush1.bf16.msra.mxu0 0
    %1653 = vmatprep.subr.bf16.mxu0 0
    %1654 = vmatpush1.bf16.msra.mxu0 0
    %1655 = vmatprep.subr.bf16.mxu0 0
    %1656 = vmatpush1.bf16.msra.mxu0 %v1634
    %1657 = vmatprep.subr.bf16.mxu0 0
    %1658 = vmatpush1.bf16.msra.mxu0 %v1632
    %1659 = vmatprep.subr.bf16.mxu0 0
    %1660 = vmatpush2.bf16.msra.mxu0 0
    %1661 = vmatprep.subr.bf16.mxu0 0
    %1662 = vmatpush2.bf16.msra.mxu0 0
    %1663 = vmatprep.subr.bf16.mxu0 0
    %1664 = vmatpush2.bf16.msra.mxu0 0
    %1665 = vmatprep.subr.bf16.mxu0 0
    %1666 = vmatpush2.bf16.msra.mxu0 0
    %1667 = vmatprep.subr.bf16.mxu0 0
    %1668 = vmatpush2.bf16.msra.mxu0 0
    %1669 = vmatprep.subr.bf16.mxu0 0
    %1670 = vmatpush2.bf16.msra.mxu0 0
    %1671 = vmatprep.subr.bf16.mxu0 0
    %1672 = vmatpush2.bf16.msra.mxu0 0
    %1673 = vmatprep.subr.bf16.mxu0 0
    %1674 = vmatpush2.bf16.msra.mxu0 0
    %1675 = vmatprep.mubr.bf16.mxu0 0
    %1676 = vmatmul.mubr.bf16.gmra.mxu0 %v1638
    %v1677 = vpop.f32.mrf.mxu0
    %v1678 = vadd.f32 0.0, %v1677
    %v1679 = vpop.f32.mrf.mxu0
    %v1680 = vpop.f32.mrf.mxu0
    %v1681 = vadd.f32 0.0, %v1680
    %v1682 = vpop.f32.mrf.mxu0
    %1683 = vmatprep.mubr.bf16.mxu0 0
    %1684 = vmatmul.mubr.bf16.gmra.mxu0 %v1641
    %v1685 = vpop.f32.mrf.mxu0
    %v1686 = vadd.f32 0.0, %v1685
    %v1687 = vpop.f32.mrf.mxu0
    %v1688 = vpop.f32.mrf.mxu0
    %v1689 = vadd.f32 0.0, %v1688
    %v1690 = vpop.f32.mrf.mxu0
    %1691 = vdwg.mxu0
    %1696 = vrot.lane.b32.xlu0 %v1678, 96
    %v1697 = vpop.permute.xlu0 %1696
    %1698 = vrot.lane.b32.xlu0 %v1681, 96
    %v1699 = vpop.permute.xlu0 %1698
    %1700 = vrot.lane.b32.xlu0 %v1686, 96
    %v1701 = vpop.permute.xlu0 %1700
    %1702 = vrot.lane.b32.xlu0 %v1689, 96
    %v1703 = vpop.permute.xlu0 %1702
    %vm1708 = vcmask 1048320
    %1709 = vst.msk [vmem:[#allocation2] sm:$0xff] %vm1708, %v1697
    %1710 = vst.msk [vmem:[#allocation2 + $0x8] sm:$0xff] %vm1708, %v1699
    %1711 = vst.msk [vmem:[#allocation2 + $0x10] sm:$0xff] %vm1708, %v1701
    %1712 = vst.msk [vmem:[#allocation2 + $0x18] sm:$0xff] %vm1708, %v1703
    %v1713 = vld [vmem:[#allocation2] sm:$0xff]
    %v1714 = vld [vmem:[#allocation2 + $0x8] sm:$0xff]
    %v1715 = vld [vmem:[#allocation2 + $0x10] sm:$0xff]
    %v1716 = vld [vmem:[#allocation2 + $0x18] sm:$0xff]
    %v1717 = vld [vmem:[%s10] sm:$0xf]
    %v1718 = vld [vmem:[%s10 + $0x4] sm:$0xf]
    %v1719 = vld [vmem:[%s10 + $0x8] sm:$0xf]
    %v1720 = vld [vmem:[%s10 + $0xc] sm:$0xf]
    %v1721 = vld [vmem:[%s10 + $0x10] sm:$0xf]
    %v1722 = vld [vmem:[%s10 + $0x14] sm:$0xf]
    %v1723 = vld [vmem:[%s10 + $0x18] sm:$0xf]
    %v1724 = vld [vmem:[%s10 + $0x1c] sm:$0xf]
    %v1725 = vld [vmem:[%s10 + $0x20] sm:$0xf]
    %v1726 = vld [vmem:[%s10 + $0x24] sm:$0xf]
    %v1727 = vld [vmem:[%s10 + $0x28] sm:$0xf]
    %v1728 = vld [vmem:[%s10 + $0x2c] sm:$0xf]
    %v1729 = vld [vmem:[%s10 + $0x30] sm:$0xf]
    %v1730 = vld [vmem:[%s10 + $0x34] sm:$0xf]
    %v1731 = vld [vmem:[%s10 + $0x38] sm:$0xf]
    %v1732 = vld [vmem:[%s10 + $0x3c] sm:$0xf]
    %v1733 = vpack.c.bf16 %v1714, %v1713
    %v1734 = vpack.c.bf16 %v1716, %v1715
    %v1735 = vld [vmem:[#allocation13] sm:$0x1]
    %v1737 = vlaneseq
    %v1738 = vshrl.u32 %v1737, 7
    %v1739 = vsub.s32 0, %v1738
    %v1740 = vrot.slane %v1735, %v1739
    %v1758 = vunpack.c.l.b16 %v1717
    %v1759 = vunpack.c.l.b16 %v1718
    %v1760 = vunpack.c.l.b16 %v1719
    %v1761 = vunpack.c.l.b16 %v1720
    %v1762 = vunpack.c.l.b16 %v1721
    %v1763 = vunpack.c.l.b16 %v1722
    %v1764 = vunpack.c.l.b16 %v1723
    %v1765 = vunpack.c.l.b16 %v1724
    %v1766 = vunpack.c.l.b16 %v1725
    %v1767 = vunpack.c.l.b16 %v1726
    %v1768 = vunpack.c.l.b16 %v1727
    %v1769 = vunpack.c.l.b16 %v1728
    %v1770 = vunpack.c.l.b16 %v1729
    %v1771 = vunpack.c.l.b16 %v1730
    %v1772 = vunpack.c.l.b16 %v1731
    %v1773 = vunpack.c.l.b16 %v1732
    %v1774 = vpack.c.b16 %v1759, %v1758
    %v1775 = vpack.c.b16 %v1761, %v1760
    %v1776 = vpack.c.b16 %v1763, %v1762
    %v1777 = vpack.c.b16 %v1765, %v1764
    %v1778 = vpack.c.b16 %v1767, %v1766
    %v1779 = vpack.c.b16 %v1769, %v1768
    %v1780 = vpack.c.b16 %v1771, %v1770
    %v1781 = vpack.c.b16 %v1773, %v1772
    %1790 = vmatprep.subr.bf16.mxu0 0
    %1791 = vmatpush1.bf16.msra.mxu0 %v1781
    %1792 = vmatprep.subr.bf16.mxu0 0
    %1793 = vmatpush1.bf16.msra.mxu0 %v1780
    %1794 = vmatprep.subr.bf16.mxu0 0
    %1795 = vmatpush1.bf16.msra.mxu0 %v1779
    %1796 = vmatprep.subr.bf16.mxu0 0
    %1797 = vmatpush1.bf16.msra.mxu0 %v1778
    %1798 = vmatprep.subr.bf16.mxu0 0
    %1799 = vmatpush1.bf16.msra.mxu0 %v1777
    %1800 = vmatprep.subr.bf16.mxu0 0
    %1801 = vmatpush1.bf16.msra.mxu0 %v1776
    %1802 = vmatprep.subr.bf16.mxu0 0
    %1803 = vmatpush1.bf16.msra.mxu0 %v1775
    %1804 = vmatprep.subr.bf16.mxu0 0
    %1805 = vmatpush1.bf16.msra.mxu0 %v1774
    %1806 = vmatprep.subr.bf16.mxu0 0
    %1807 = vmatpush2.bf16.msra.mxu0 0
    %1808 = vmatprep.subr.bf16.mxu0 0
    %1809 = vmatpush2.bf16.msra.mxu0 0
    %1810 = vmatprep.subr.bf16.mxu0 0
    %1811 = vmatpush2.bf16.msra.mxu0 0
    %1812 = vmatprep.subr.bf16.mxu0 0
    %1813 = vmatpush2.bf16.msra.mxu0 0
    %1814 = vmatprep.subr.bf16.mxu0 0
    %1815 = vmatpush2.bf16.msra.mxu0 0
    %1816 = vmatprep.subr.bf16.mxu0 0
    %1817 = vmatpush2.bf16.msra.mxu0 0
    %1818 = vmatprep.subr.bf16.mxu0 0
    %1819 = vmatpush2.bf16.msra.mxu0 0
    %1820 = vmatprep.subr.bf16.mxu0 0
    %1821 = vmatpush2.bf16.msra.mxu0 0
    %1822 = vmatprep.mubr.bf16.mxu0 0
    %1823 = vmatmul.mubr.bf16.gmra.mxu0 %v1733
    %v1824 = vpop.f32.mrf.mxu0
    %v1825 = vadd.f32 %v1740, %v1824
    %v1826 = vpop.f32.mrf.mxu0
    %v1827 = vpop.f32.mrf.mxu0
    %v1828 = vadd.f32 %v1740, %v1827
    %v1829 = vpop.f32.mrf.mxu0
    %1830 = vmatprep.mubr.bf16.mxu0 0
    %1831 = vmatmul.mubr.bf16.gmra.mxu0 %v1734
    %v1832 = vpop.f32.mrf.mxu0
    %v1833 = vadd.f32 %v1740, %v1832
    %v1834 = vpop.f32.mrf.mxu0
    %v1835 = vpop.f32.mrf.mxu0
    %v1836 = vadd.f32 %v1740, %v1835
    %v1837 = vpop.f32.mrf.mxu0
    %1838 = vdwg.mxu0
    %v1839 = vadd.f32 %v1825, %v654
    %v1840 = vadd.f32 %v1828, %v655
    %v1841 = vadd.f32 %v1833, %v656
    %v1842 = vadd.f32 %v1836, %v657
    %v1843 = vld [vmem:[#allocation14] sm:$0x1]
    %v1844 = vld [vmem:[#allocation16] sm:$0x1]
    %1845 = vadd.xlane.f32.xlu0 %v1839
    %v1846 = vpop.xlane.xlu0 %1845
    %1847 = vadd.xlane.f32.xlu0 %v1840
    %v1848 = vpop.xlane.xlu0 %1847
    %1849 = vadd.xlane.f32.xlu0 %v1841
    %v1850 = vpop.xlane.xlu0 %1849
    %1851 = vadd.xlane.f32.xlu0 %v1842
    %v1852 = vpop.xlane.xlu0 %1851
    %v1853 = vmul.f32 %v1846, %v601
    %v1854 = vmul.f32 %v1848, %v601
    %v1855 = vmul.f32 %v1850, %v601
    %v1856 = vmul.f32 %v1852, %v601
    %v1857 = vsub.f32 %v1839, %v1853
    %v1858 = vsub.f32 %v1840, %v1854
    %v1859 = vsub.f32 %v1841, %v1855
    %v1860 = vsub.f32 %v1842, %v1856
    %v1861 = vmul.f32 %v1857, %v1857
    %v1862 = vmul.f32 %v1858, %v1858
    %v1863 = vmul.f32 %v1859, %v1859
    %v1864 = vmul.f32 %v1860, %v1860
    %1865 = vadd.xlane.f32.xlu0 %v1861
    %v1866 = vpop.xlane.xlu0 %1865
    %1867 = vadd.xlane.f32.xlu0 %v1862
    %v1868 = vpop.xlane.xlu0 %1867
    %1869 = vadd.xlane.f32.xlu0 %v1863
    %v1870 = vpop.xlane.xlu0 %1869
    %1871 = vadd.xlane.f32.xlu0 %v1864
    %v1872 = vpop.xlane.xlu0 %1871
    %v1873 = vmul.f32 %v1866, %v601
    %v1874 = vmul.f32 %v1868, %v601
    %v1875 = vmul.f32 %v1870, %v601
    %v1876 = vmul.f32 %v1872, %v601
    %v1877 = vadd.f32 %v1873, 1e-05
    %v1878 = vadd.f32 %v1874, 1e-05
    %v1879 = vadd.f32 %v1875, 1e-05
    %v1880 = vadd.f32 %v1876, 1e-05
    %v1881 = vrsqrt.pop %v1877
    %v1882 = vrsqrt.pop %v1878
    %v1883 = vrsqrt.pop %v1879
    %v1884 = vrsqrt.pop %v1880
    %v1885 = vmul.f32 %v1857, %v1881
    %v1886 = vmul.f32 %v1858, %v1882
    %v1887 = vmul.f32 %v1859, %v1883
    %v1888 = vmul.f32 %v1860, %v1884
    %v1890 = vlaneseq
    %v1891 = vshrl.u32 %v1890, 7
    %v1892 = vsub.s32 0, %v1891
    %v1893 = vrot.slane %v1843, %v1892
    %v1895 = vmul.f32 %v1885, %v1893
    %v1896 = vmul.f32 %v1886, %v1893
    %v1897 = vmul.f32 %v1887, %v1893
    %v1898 = vmul.f32 %v1888, %v1893
    %v1900 = vlaneseq
    %v1901 = vshrl.u32 %v1900, 7
    %v1902 = vsub.s32 0, %v1901
    %v1903 = vrot.slane %v1844, %v1902
    %v1905 = vadd.f32 %v1895, %v1903
    %v1906 = vadd.f32 %v1896, %v1903
    %v1907 = vadd.f32 %v1897, %v1903
    %v1908 = vadd.f32 %v1898, %v1903
    %v1909 = vld [vmem:[#allocation17] sm:$0xff]
    %v1910 = vld [vmem:[#allocation17 + $0x8] sm:$0xff]
    %v1911 = vld [vmem:[#allocation17 + $0x10] sm:$0xff]
    %v1912 = vld [vmem:[#allocation17 + $0x18] sm:$0xff]
    %v1913 = vld [vmem:[#allocation17 + $0x20] sm:$0xff]
    %v1914 = vld [vmem:[#allocation17 + $0x28] sm:$0xff]
    %v1915 = vld [vmem:[#allocation17 + $0x30] sm:$0xff]
    %v1916 = vld [vmem:[#allocation17 + $0x38] sm:$0xff]
    %v1917 = vld [vmem:[#allocation17 + $0x40] sm:$0xff]
    %v1918 = vld [vmem:[#allocation17 + $0x48] sm:$0xff]
    %v1919 = vld [vmem:[#allocation17 + $0x50] sm:$0xff]
    %v1920 = vld [vmem:[#allocation17 + $0x58] sm:$0xff]
    %v1921 = vld [vmem:[#allocation17 + $0x60] sm:$0xff]
    %v1922 = vld [vmem:[#allocation17 + $0x68] sm:$0xff]
    %v1923 = vld [vmem:[#allocation17 + $0x70] sm:$0xff]
    %v1924 = vld [vmem:[#allocation17 + $0x78] sm:$0xff]
    %v1925 = vpack.c.bf16 %v1906, %v1905
    %v1926 = vpack.c.bf16 %v1908, %v1907
    %v1927 = vld [vmem:[%s15] sm:$0x3]
    %v1929 = vlaneseq
    %v1930 = vshrl.u32 %v1929, 7
    %v1931 = vsub.s32 0, %v1930
    %v1932 = vrot.slane %v1927, %v1931
    %v1933 = vlaneseq
    %v1934 = vshrl.u32 %v1933, 7
    %v1935 = vsub.s32 1, %v1934
    %v1936 = vrot.slane %v1927, %v1935
    %v1955 = vunpack.c.l.b16 %v1909
    %v1956 = vunpack.c.h.b16 %v1909
    %v1957 = vunpack.c.l.b16 %v1910
    %v1958 = vunpack.c.h.b16 %v1910
    %v1959 = vunpack.c.l.b16 %v1911
    %v1960 = vunpack.c.h.b16 %v1911
    %v1961 = vunpack.c.l.b16 %v1912
    %v1962 = vunpack.c.h.b16 %v1912
    %v1963 = vunpack.c.l.b16 %v1913
    %v1964 = vunpack.c.h.b16 %v1913
    %v1965 = vunpack.c.l.b16 %v1914
    %v1966 = vunpack.c.h.b16 %v1914
    %v1967 = vunpack.c.l.b16 %v1915
    %v1968 = vunpack.c.h.b16 %v1915
    %v1969 = vunpack.c.l.b16 %v1916
    %v1970 = vunpack.c.h.b16 %v1916
    %v1971 = vunpack.c.l.b16 %v1917
    %v1972 = vunpack.c.h.b16 %v1917
    %v1973 = vunpack.c.l.b16 %v1918
    %v1974 = vunpack.c.h.b16 %v1918
    %v1975 = vunpack.c.l.b16 %v1919
    %v1976 = vunpack.c.h.b16 %v1919
    %v1977 = vunpack.c.l.b16 %v1920
    %v1978 = vunpack.c.h.b16 %v1920
    %v1979 = vunpack.c.l.b16 %v1921
    %v1980 = vunpack.c.h.b16 %v1921
    %v1981 = vunpack.c.l.b16 %v1922
    %v1982 = vunpack.c.h.b16 %v1922
    %v1983 = vunpack.c.l.b16 %v1923
    %v1984 = vunpack.c.h.b16 %v1923
    %v1985 = vunpack.c.l.b16 %v1924
    %v1986 = vunpack.c.h.b16 %v1924
    %v1987 = vpack.c.b16 %v1957, %v1955
    %v1988 = vpack.c.b16 %v1958, %v1956
    %v1989 = vpack.c.b16 %v1961, %v1959
    %v1990 = vpack.c.b16 %v1962, %v1960
    %v1991 = vpack.c.b16 %v1965, %v1963
    %v1992 = vpack.c.b16 %v1966, %v1964
    %v1993 = vpack.c.b16 %v1969, %v1967
    %v1994 = vpack.c.b16 %v1970, %v1968
    %v1995 = vpack.c.b16 %v1973, %v1971
    %v1996 = vpack.c.b16 %v1974, %v1972
    %v1997 = vpack.c.b16 %v1977, %v1975
    %v1998 = vpack.c.b16 %v1978, %v1976
    %v1999 = vpack.c.b16 %v1981, %v1979
    %v2000 = vpack.c.b16 %v1982, %v1980
    %v2001 = vpack.c.b16 %v1985, %v1983
    %v2002 = vpack.c.b16 %v1986, %v1984
    %2019 = vmatprep.subr.bf16.mxu0 %v2002
    %2020 = vmatpush1.bf16.msra.mxu0 %v2001
    %2021 = vmatprep.subr.bf16.mxu0 %v2000
    %2022 = vmatpush1.bf16.msra.mxu0 %v1999
    %2023 = vmatprep.subr.bf16.mxu0 %v1998
    %2024 = vmatpush1.bf16.msra.mxu0 %v1997
    %2025 = vmatprep.subr.bf16.mxu0 %v1996
    %2026 = vmatpush1.bf16.msra.mxu0 %v1995
    %2027 = vmatprep.subr.bf16.mxu0 %v1994
    %2028 = vmatpush1.bf16.msra.mxu0 %v1993
    %2029 = vmatprep.subr.bf16.mxu0 %v1992
    %2030 = vmatpush1.bf16.msra.mxu0 %v1991
    %2031 = vmatprep.subr.bf16.mxu0 %v1990
    %2032 = vmatpush1.bf16.msra.mxu0 %v1989
    %2033 = vmatprep.subr.bf16.mxu0 %v1988
    %2034 = vmatpush1.bf16.msra.mxu0 %v1987
    %2035 = vmatprep.subr.bf16.mxu0 0
    %2036 = vmatpush2.bf16.msra.mxu0 0
    %2037 = vmatprep.subr.bf16.mxu0 0
    %2038 = vmatpush2.bf16.msra.mxu0 0
    %2039 = vmatprep.subr.bf16.mxu0 0
    %2040 = vmatpush2.bf16.msra.mxu0 0
    %2041 = vmatprep.subr.bf16.mxu0 0
    %2042 = vmatpush2.bf16.msra.mxu0 0
    %2043 = vmatprep.subr.bf16.mxu0 0
    %2044 = vmatpush2.bf16.msra.mxu0 0
    %2045 = vmatprep.subr.bf16.mxu0 0
    %2046 = vmatpush2.bf16.msra.mxu0 0
    %2047 = vmatprep.subr.bf16.mxu0 0
    %2048 = vmatpush2.bf16.msra.mxu0 0
    %2049 = vmatprep.subr.bf16.mxu0 0
    %2050 = vmatpush2.bf16.msra.mxu0 0
    %2051 = vmatprep.mubr.bf16.mxu0 0
    %2052 = vmatmul.mubr.bf16.gmra.mxu0 %v1925
    %v2053 = vpop.f32.mrf.mxu0
    %v2054 = vadd.f32 %v1932, %v2053
    %v2055 = vpop.f32.mrf.mxu0
    %v2056 = vadd.f32 %v1936, %v2055
    %v2057 = vpop.f32.mrf.mxu0
    %v2058 = vadd.f32 %v1932, %v2057
    %v2059 = vpop.f32.mrf.mxu0
    %v2060 = vadd.f32 %v1936, %v2059
    %2061 = vmatprep.mubr.bf16.mxu0 0
    %2062 = vmatmul.mubr.bf16.gmra.mxu0 %v1926
    %v2063 = vpop.f32.mrf.mxu0
    %v2064 = vadd.f32 %v1932, %v2063
    %v2065 = vpop.f32.mrf.mxu0
    %v2066 = vadd.f32 %v1936, %v2065
    %v2067 = vpop.f32.mrf.mxu0
    %v2068 = vadd.f32 %v1932, %v2067
    %v2069 = vpop.f32.mrf.mxu0
    %v2070 = vadd.f32 %v1936, %v2069
    %2071 = vdwg.mxu0
    %v2072 = vmul.f32 %v2054, 0.5
    %v2073 = vmul.f32 %v2056, 0.5
    %v2074 = vmul.f32 %v2058, 0.5
    %v2075 = vmul.f32 %v2060, 0.5
    %v2076 = vmul.f32 %v2064, 0.5
    %v2077 = vmul.f32 %v2066, 0.5
    %v2078 = vmul.f32 %v2068, 0.5
    %v2079 = vmul.f32 %v2070, 0.5
    %v2080 = vmul.f32 %v2054, 0.044715
    %v2081 = vmul.f32 %v2056, 0.044715
    %v2082 = vmul.f32 %v2058, 0.044715
    %v2083 = vmul.f32 %v2060, 0.044715
    %v2084 = vmul.f32 %v2064, 0.044715
    %v2085 = vmul.f32 %v2066, 0.044715
    %v2086 = vmul.f32 %v2068, 0.044715
    %v2087 = vmul.f32 %v2070, 0.044715
    %v2088 = vmul.f32 %v2080, %v2054
    %v2089 = vmul.f32 %v2081, %v2056
    %v2090 = vmul.f32 %v2082, %v2058
    %v2091 = vmul.f32 %v2083, %v2060
    %v2092 = vmul.f32 %v2084, %v2064
    %v2093 = vmul.f32 %v2085, %v2066
    %v2094 = vmul.f32 %v2086, %v2068
    %v2095 = vmul.f32 %v2087, %v2070
    %v2096 = vmul.f32 %v2088, %v2054
    %v2097 = vmul.f32 %v2089, %v2056
    %v2098 = vmul.f32 %v2090, %v2058
    %v2099 = vmul.f32 %v2091, %v2060
    %v2100 = vmul.f32 %v2092, %v2064
    %v2101 = vmul.f32 %v2093, %v2066
    %v2102 = vmul.f32 %v2094, %v2068
    %v2103 = vmul.f32 %v2095, %v2070
    %v2104 = vadd.f32 %v2054, %v2096
    %v2105 = vadd.f32 %v2056, %v2097
    %v2106 = vadd.f32 %v2058, %v2098
    %v2107 = vadd.f32 %v2060, %v2099
    %v2108 = vadd.f32 %v2064, %v2100
    %v2109 = vadd.f32 %v2066, %v2101
    %v2110 = vadd.f32 %v2068, %v2102
    %v2111 = vadd.f32 %v2070, %v2103
    %v2112 = vmul.f32 %v2104, 0.7978846
    %v2113 = vmul.f32 %v2105, 0.7978846
    %v2114 = vmul.f32 %v2106, 0.7978846
    %v2115 = vmul.f32 %v2107, 0.7978846
    %v2116 = vmul.f32 %v2108, 0.7978846
    %v2117 = vmul.f32 %v2109, 0.7978846
    %v2118 = vmul.f32 %v2110, 0.7978846
    %v2119 = vmul.f32 %v2111, 0.7978846
    %v2120 = vtanh.pop %v2112
    %v2121 = vtanh.pop %v2113
    %v2122 = vtanh.pop %v2114
    %v2123 = vtanh.pop %v2115
    %v2124 = vtanh.pop %v2116
    %v2125 = vtanh.pop %v2117
    %v2126 = vtanh.pop %v2118
    %v2127 = vtanh.pop %v2119
    %v2128 = vadd.f32 %v2120, 1.0
    %v2129 = vadd.f32 %v2121, 1.0
    %v2130 = vadd.f32 %v2122, 1.0
    %v2131 = vadd.f32 %v2123, 1.0
    %v2132 = vadd.f32 %v2124, 1.0
    %v2133 = vadd.f32 %v2125, 1.0
    %v2134 = vadd.f32 %v2126, 1.0
    %v2135 = vadd.f32 %v2127, 1.0
    %v2136 = vmul.f32 %v2072, %v2128
    %v2137 = vmul.f32 %v2073, %v2129
    %v2138 = vmul.f32 %v2074, %v2130
    %v2139 = vmul.f32 %v2075, %v2131
    %v2140 = vmul.f32 %v2076, %v2132
    %v2141 = vmul.f32 %v2077, %v2133
    %v2142 = vmul.f32 %v2078, %v2134
    %v2143 = vmul.f32 %v2079, %v2135
    %v2144 = vld [vmem:[#allocation19] sm:$0xf]
    %v2145 = vld [vmem:[#allocation19 + $0x4] sm:$0xf]
    %v2146 = vld [vmem:[#allocation19 + $0x8] sm:$0xf]
    %v2147 = vld [vmem:[#allocation19 + $0xc] sm:$0xf]
    %v2148 = vld [vmem:[#allocation19 + $0x10] sm:$0xf]
    %v2149 = vld [vmem:[#allocation19 + $0x14] sm:$0xf]
    %v2150 = vld [vmem:[#allocation19 + $0x18] sm:$0xf]
    %v2151 = vld [vmem:[#allocation19 + $0x1c] sm:$0xf]
    %v2152 = vld [vmem:[#allocation19 + $0x20] sm:$0xf]
    %v2153 = vld [vmem:[#allocation19 + $0x24] sm:$0xf]
    %v2154 = vld [vmem:[#allocation19 + $0x28] sm:$0xf]
    %v2155 = vld [vmem:[#allocation19 + $0x2c] sm:$0xf]
    %v2156 = vld [vmem:[#allocation19 + $0x30] sm:$0xf]
    %v2157 = vld [vmem:[#allocation19 + $0x34] sm:$0xf]
    %v2158 = vld [vmem:[#allocation19 + $0x38] sm:$0xf]
    %v2159 = vld [vmem:[#allocation19 + $0x3c] sm:$0xf]
    %v2160 = vld [vmem:[#allocation19 + $0x40] sm:$0xf]
    %v2161 = vld [vmem:[#allocation19 + $0x44] sm:$0xf]
    %v2162 = vld [vmem:[#allocation19 + $0x48] sm:$0xf]
    %v2163 = vld [vmem:[#allocation19 + $0x4c] sm:$0xf]
    %v2164 = vld [vmem:[#allocation19 + $0x50] sm:$0xf]
    %v2165 = vld [vmem:[#allocation19 + $0x54] sm:$0xf]
    %v2166 = vld [vmem:[#allocation19 + $0x58] sm:$0xf]
    %v2167 = vld [vmem:[#allocation19 + $0x5c] sm:$0xf]
    %v2168 = vld [vmem:[#allocation19 + $0x60] sm:$0xf]
    %v2169 = vld [vmem:[#allocation19 + $0x64] sm:$0xf]
    %v2170 = vld [vmem:[#allocation19 + $0x68] sm:$0xf]
    %v2171 = vld [vmem:[#allocation19 + $0x6c] sm:$0xf]
    %v2172 = vld [vmem:[#allocation19 + $0x70] sm:$0xf]
    %v2173 = vld [vmem:[#allocation19 + $0x74] sm:$0xf]
    %v2174 = vld [vmem:[#allocation19 + $0x78] sm:$0xf]
    %v2175 = vld [vmem:[#allocation19 + $0x7c] sm:$0xf]
    %v2176 = vpack.c.bf16 %v2138, %v2136
    %v2177 = vpack.c.bf16 %v2139, %v2137
    %v2178 = vpack.c.bf16 %v2142, %v2140
    %v2179 = vpack.c.bf16 %v2143, %v2141
    %v2180 = vld [vmem:[#allocation20] sm:$0x1]
    %v2182 = vlaneseq
    %v2183 = vshrl.u32 %v2182, 7
    %v2184 = vsub.s32 0, %v2183
    %v2185 = vrot.slane %v2180, %v2184
    %v2219 = vunpack.c.l.b16 %v2144
    %v2220 = vunpack.c.l.b16 %v2145
    %v2221 = vunpack.c.l.b16 %v2146
    %v2222 = vunpack.c.l.b16 %v2147
    %v2223 = vunpack.c.l.b16 %v2148
    %v2224 = vunpack.c.l.b16 %v2149
    %v2225 = vunpack.c.l.b16 %v2150
    %v2226 = vunpack.c.l.b16 %v2151
    %v2227 = vunpack.c.l.b16 %v2152
    %v2228 = vunpack.c.l.b16 %v2153
    %v2229 = vunpack.c.l.b16 %v2154
    %v2230 = vunpack.c.l.b16 %v2155
    %v2231 = vunpack.c.l.b16 %v2156
    %v2232 = vunpack.c.l.b16 %v2157
    %v2233 = vunpack.c.l.b16 %v2158
    %v2234 = vunpack.c.l.b16 %v2159
    %v2235 = vunpack.c.l.b16 %v2160
    %v2236 = vunpack.c.l.b16 %v2161
    %v2237 = vunpack.c.l.b16 %v2162
    %v2238 = vunpack.c.l.b16 %v2163
    %v2239 = vunpack.c.l.b16 %v2164
    %v2240 = vunpack.c.l.b16 %v2165
    %v2241 = vunpack.c.l.b16 %v2166
    %v2242 = vunpack.c.l.b16 %v2167
    %v2243 = vunpack.c.l.b16 %v2168
    %v2244 = vunpack.c.l.b16 %v2169
    %v2245 = vunpack.c.l.b16 %v2170
    %v2246 = vunpack.c.l.b16 %v2171
    %v2247 = vunpack.c.l.b16 %v2172
    %v2248 = vunpack.c.l.b16 %v2173
    %v2249 = vunpack.c.l.b16 %v2174
    %v2250 = vunpack.c.l.b16 %v2175
    %v2251 = vpack.c.b16 %v2220, %v2219
    %v2252 = vpack.c.b16 %v2222, %v2221
    %v2253 = vpack.c.b16 %v2224, %v2223
    %v2254 = vpack.c.b16 %v2226, %v2225
    %v2255 = vpack.c.b16 %v2228, %v2227
    %v2256 = vpack.c.b16 %v2230, %v2229
    %v2257 = vpack.c.b16 %v2232, %v2231
    %v2258 = vpack.c.b16 %v2234, %v2233
    %v2259 = vpack.c.b16 %v2236, %v2235
    %v2260 = vpack.c.b16 %v2238, %v2237
    %v2261 = vpack.c.b16 %v2240, %v2239
    %v2262 = vpack.c.b16 %v2242, %v2241
    %v2263 = vpack.c.b16 %v2244, %v2243
    %v2264 = vpack.c.b16 %v2246, %v2245
    %v2265 = vpack.c.b16 %v2248, %v2247
    %v2266 = vpack.c.b16 %v2250, %v2249
    %2283 = vmatprep.subr.bf16.mxu0 0
    %2284 = vmatpush1.bf16.msra.mxu0 %v2258
    %2285 = vmatprep.subr.bf16.mxu0 0
    %2286 = vmatpush1.bf16.msra.mxu0 %v2257
    %2287 = vmatprep.subr.bf16.mxu0 0
    %2288 = vmatpush1.bf16.msra.mxu0 %v2256
    %2289 = vmatprep.subr.bf16.mxu0 0
    %2290 = vmatpush1.bf16.msra.mxu0 %v2255
    %2291 = vmatprep.subr.bf16.mxu0 0
    %2292 = vmatpush1.bf16.msra.mxu0 %v2254
    %2293 = vmatprep.subr.bf16.mxu0 0
    %2294 = vmatpush1.bf16.msra.mxu0 %v2253
    %2295 = vmatprep.subr.bf16.mxu0 0
    %2296 = vmatpush1.bf16.msra.mxu0 %v2252
    %2297 = vmatprep.subr.bf16.mxu0 0
    %2298 = vmatpush1.bf16.msra.mxu0 %v2251
    %2299 = vmatprep.subr.bf16.mxu0 0
    %2300 = vmatpush2.bf16.msra.mxu0 %v2266
    %2301 = vmatprep.subr.bf16.mxu0 0
    %2302 = vmatpush2.bf16.msra.mxu0 %v2265
    %2303 = vmatprep.subr.bf16.mxu0 0
    %2304 = vmatpush2.bf16.msra.mxu0 %v2264
    %2305 = vmatprep.subr.bf16.mxu0 0
    %2306 = vmatpush2.bf16.msra.mxu0 %v2263
    %2307 = vmatprep.subr.bf16.mxu0 0
    %2308 = vmatpush2.bf16.msra.mxu0 %v2262
    %2309 = vmatprep.subr.bf16.mxu0 0
    %2310 = vmatpush2.bf16.msra.mxu0 %v2261
    %2311 = vmatprep.subr.bf16.mxu0 0
    %2312 = vmatpush2.bf16.msra.mxu0 %v2260
    %2313 = vmatprep.subr.bf16.mxu0 0
    %2314 = vmatpush2.bf16.msra.mxu0 %v2259
    %2315 = vmatprep.mubr.bf16.mxu0 %v2177
    %2316 = vmatmul.mubr.bf16.gmra.mxu0 %v2176
    %v2317 = vpop.f32.mrf.mxu0
    %v2318 = vadd.f32 %v2185, %v2317
    %v2319 = vpop.f32.mrf.mxu0
    %v2320 = vpop.f32.mrf.mxu0
    %v2321 = vadd.f32 %v2185, %v2320
    %v2322 = vpop.f32.mrf.mxu0
    %2323 = vmatprep.mubr.bf16.mxu0 %v2179
    %2324 = vmatmul.mubr.bf16.gmra.mxu0 %v2178
    %v2325 = vpop.f32.mrf.mxu0
    %v2326 = vadd.f32 %v2185, %v2325
    %v2327 = vpop.f32.mrf.mxu0
    %v2328 = vpop.f32.mrf.mxu0
    %v2329 = vadd.f32 %v2185, %v2328
    %v2330 = vpop.f32.mrf.mxu0
    %2331 = vdwg.mxu0
    %v2332 = vadd.f32 %v2318, %v1905
    %v2333 = vadd.f32 %v2321, %v1906
    %v2334 = vadd.f32 %v2326, %v1907
    %v2335 = vadd.f32 %v2329, %v1908
    %v2336 = vld [vmem:[#allocation22] sm:$0x1]
    %v2337 = vld [vmem:[#allocation23] sm:$0x1]
    %2338 = vadd.xlane.f32.xlu0 %v2332
    %v2339 = vpop.xlane.xlu0 %2338
    %2340 = vadd.xlane.f32.xlu0 %v2333
    %v2341 = vpop.xlane.xlu0 %2340
    %2342 = vadd.xlane.f32.xlu0 %v2334
    %v2343 = vpop.xlane.xlu0 %2342
    %2344 = vadd.xlane.f32.xlu0 %v2335
    %v2345 = vpop.xlane.xlu0 %2344
    %v2346 = vmul.f32 %v2339, %v601
    %v2347 = vmul.f32 %v2341, %v601
    %v2348 = vmul.f32 %v2343, %v601
    %v2349 = vmul.f32 %v2345, %v601
    %v2350 = vsub.f32 %v2332, %v2346
    %v2351 = vsub.f32 %v2333, %v2347
    %v2352 = vsub.f32 %v2334, %v2348
    %v2353 = vsub.f32 %v2335, %v2349
    %v2354 = vmul.f32 %v2350, %v2350
    %v2355 = vmul.f32 %v2351, %v2351
    %v2356 = vmul.f32 %v2352, %v2352
    %v2357 = vmul.f32 %v2353, %v2353
    %2358 = vadd.xlane.f32.xlu0 %v2354
    %v2359 = vpop.xlane.xlu0 %2358
    %2360 = vadd.xlane.f32.xlu0 %v2355
    %v2361 = vpop.xlane.xlu0 %2360
    %2362 = vadd.xlane.f32.xlu0 %v2356
    %v2363 = vpop.xlane.xlu0 %2362
    %2364 = vadd.xlane.f32.xlu0 %v2357
    %v2365 = vpop.xlane.xlu0 %2364
    %v2366 = vmul.f32 %v2359, %v601
    %v2367 = vmul.f32 %v2361, %v601
    %v2368 = vmul.f32 %v2363, %v601
    %v2369 = vmul.f32 %v2365, %v601
    %v2370 = vadd.f32 %v2366, 1e-05
    %v2371 = vadd.f32 %v2367, 1e-05
    %v2372 = vadd.f32 %v2368, 1e-05
    %v2373 = vadd.f32 %v2369, 1e-05
    %v2374 = vrsqrt.pop %v2370
    %v2375 = vrsqrt.pop %v2371
    %v2376 = vrsqrt.pop %v2372
    %v2377 = vrsqrt.pop %v2373
    %v2378 = vmul.f32 %v2350, %v2374
    %v2379 = vmul.f32 %v2351, %v2375
    %v2380 = vmul.f32 %v2352, %v2376
    %v2381 = vmul.f32 %v2353, %v2377
    %v2383 = vlaneseq
    %v2384 = vshrl.u32 %v2383, 7
    %v2385 = vsub.s32 0, %v2384
    %v2386 = vrot.slane %v2336, %v2385
    %v2388 = vmul.f32 %v2378, %v2386
    %v2389 = vmul.f32 %v2379, %v2386
    %v2390 = vmul.f32 %v2380, %v2386
    %v2391 = vmul.f32 %v2381, %v2386
    %v2393 = vlaneseq
    %v2394 = vshrl.u32 %v2393, 7
    %v2395 = vsub.s32 0, %v2394
    %v2396 = vrot.slane %v2337, %v2395
    %v2398 = vadd.f32 %v2388, %v2396
    %v2399 = vadd.f32 %v2389, %v2396
    %v2400 = vadd.f32 %v2390, %v2396
    %v2401 = vadd.f32 %v2391, %v2396
    %s2402 = scalar_lea.vmem [#allocation10], 192
    %v2403 = vld [vmem:[%s2402] sm:$0xff]
    %v2404 = vld [vmem:[%s2402 + $0x8] sm:$0xf]
    %v2405 = vld [vmem:[%s2402 + $0xc] sm:$0xff]
    %v2406 = vld [vmem:[%s2402 + $0x14] sm:$0xf]
    %v2407 = vld [vmem:[%s2402 + $0x18] sm:$0xff]
    %v2408 = vld [vmem:[%s2402 + $0x20] sm:$0xf]
    %v2409 = vld [vmem:[%s2402 + $0x24] sm:$0xff]
    %v2410 = vld [vmem:[%s2402 + $0x2c] sm:$0xf]
    %v2411 = vld [vmem:[%s2402 + $0x30] sm:$0xff]
    %v2412 = vld [vmem:[%s2402 + $0x38] sm:$0xf]
    %v2413 = vld [vmem:[%s2402 + $0x3c] sm:$0xff]
    %v2414 = vld [vmem:[%s2402 + $0x44] sm:$0xf]
    %v2415 = vld [vmem:[%s2402 + $0x48] sm:$0xff]
    %v2416 = vld [vmem:[%s2402 + $0x50] sm:$0xf]
    %v2417 = vld [vmem:[%s2402 + $0x54] sm:$0xff]
    %v2418 = vld [vmem:[%s2402 + $0x5c] sm:$0xf]
    %v2419 = vld [vmem:[%s2402 + $0x60] sm:$0xff]
    %v2420 = vld [vmem:[%s2402 + $0x68] sm:$0xf]
    %v2421 = vld [vmem:[%s2402 + $0x6c] sm:$0xff]
    %v2422 = vld [vmem:[%s2402 + $0x74] sm:$0xf]
    %v2423 = vld [vmem:[%s2402 + $0x78] sm:$0xff]
    %v2424 = vld [vmem:[%s2402 + $0x80] sm:$0xf]
    %v2425 = vld [vmem:[%s2402 + $0x84] sm:$0xff]
    %v2426 = vld [vmem:[%s2402 + $0x8c] sm:$0xf]
    %v2427 = vld [vmem:[%s2402 + $0x90] sm:$0xff]
    %v2428 = vld [vmem:[%s2402 + $0x98] sm:$0xf]
    %v2429 = vld [vmem:[%s2402 + $0x9c] sm:$0xff]
    %v2430 = vld [vmem:[%s2402 + $0xa4] sm:$0xf]
    %v2431 = vld [vmem:[%s2402 + $0xa8] sm:$0xff]
    %v2432 = vld [vmem:[%s2402 + $0xb0] sm:$0xf]
    %v2433 = vld [vmem:[%s2402 + $0xb4] sm:$0xff]
    %v2434 = vld [vmem:[%s2402 + $0xbc] sm:$0xf]
    %v2435 = vpack.c.bf16 %v2399, %v2398
    %v2436 = vpack.c.bf16 %v2401, %v2400
    %s2437 = scalar_lea.vmem [#allocation11], 3
    %v2438 = vld [vmem:[%s2437] sm:$0x7]
    %v2440 = vlaneseq
    %v2441 = vshrl.u32 %v2440, 7
    %v2442 = vsub.s32 0, %v2441
    %v2443 = vrot.slane %v2438, %v2442
    %v2444 = vlaneseq
    %v2445 = vshrl.u32 %v2444, 7
    %v2446 = vsub.s32 1, %v2445
    %v2447 = vrot.slane %v2438, %v2446
    %v2448 = vlaneseq
    %v2449 = vshrl.u32 %v2448, 7
    %v2450 = vsub.s32 2, %v2449
    %v2451 = vrot.slane %v2438, %v2450
    %v2487 = vunpack.c.l.b16 %v2403
    %v2488 = vunpack.c.h.b16 %v2403
    %v2489 = vunpack.c.l.b16 %v2404
    %v2490 = vunpack.c.l.b16 %v2405
    %v2491 = vunpack.c.h.b16 %v2405
    %v2492 = vunpack.c.l.b16 %v2406
    %v2493 = vunpack.c.l.b16 %v2407
    %v2494 = vunpack.c.h.b16 %v2407
    %v2495 = vunpack.c.l.b16 %v2408
    %v2496 = vunpack.c.l.b16 %v2409
    %v2497 = vunpack.c.h.b16 %v2409
    %v2498 = vunpack.c.l.b16 %v2410
    %v2499 = vunpack.c.l.b16 %v2411
    %v2500 = vunpack.c.h.b16 %v2411
    %v2501 = vunpack.c.l.b16 %v2412
    %v2502 = vunpack.c.l.b16 %v2413
    %v2503 = vunpack.c.h.b16 %v2413
    %v2504 = vunpack.c.l.b16 %v2414
    %v2505 = vunpack.c.l.b16 %v2415
    %v2506 = vunpack.c.h.b16 %v2415
    %v2507 = vunpack.c.l.b16 %v2416
    %v2508 = vunpack.c.l.b16 %v2417
    %v2509 = vunpack.c.h.b16 %v2417
    %v2510 = vunpack.c.l.b16 %v2418
    %v2511 = vunpack.c.l.b16 %v2419
    %v2512 = vunpack.c.h.b16 %v2419
    %v2513 = vunpack.c.l.b16 %v2420
    %v2514 = vunpack.c.l.b16 %v2421
    %v2515 = vunpack.c.h.b16 %v2421
    %v2516 = vunpack.c.l.b16 %v2422
    %v2517 = vunpack.c.l.b16 %v2423
    %v2518 = vunpack.c.h.b16 %v2423
    %v2519 = vunpack.c.l.b16 %v2424
    %v2520 = vunpack.c.l.b16 %v2425
    %v2521 = vunpack.c.h.b16 %v2425
    %v2522 = vunpack.c.l.b16 %v2426
    %v2523 = vunpack.c.l.b16 %v2427
    %v2524 = vunpack.c.h.b16 %v2427
    %v2525 = vunpack.c.l.b16 %v2428
    %v2526 = vunpack.c.l.b16 %v2429
    %v2527 = vunpack.c.h.b16 %v2429
    %v2528 = vunpack.c.l.b16 %v2430
    %v2529 = vunpack.c.l.b16 %v2431
    %v2530 = vunpack.c.h.b16 %v2431
    %v2531 = vunpack.c.l.b16 %v2432
    %v2532 = vunpack.c.l.b16 %v2433
    %v2533 = vunpack.c.h.b16 %v2433
    %v2534 = vunpack.c.l.b16 %v2434
    %v2535 = vpack.c.b16 %v2490, %v2487
    %v2536 = vpack.c.b16 %v2491, %v2488
    %v2537 = vpack.c.b16 %v2492, %v2489
    %v2538 = vpack.c.b16 %v2496, %v2493
    %v2539 = vpack.c.b16 %v2497, %v2494
    %v2540 = vpack.c.b16 %v2498, %v2495
    %v2541 = vpack.c.b16 %v2502, %v2499
    %v2542 = vpack.c.b16 %v2503, %v2500
    %v2543 = vpack.c.b16 %v2504, %v2501
    %v2544 = vpack.c.b16 %v2508, %v2505
    %v2545 = vpack.c.b16 %v2509, %v2506
    %v2546 = vpack.c.b16 %v2510, %v2507
    %v2547 = vpack.c.b16 %v2514, %v2511
    %v2548 = vpack.c.b16 %v2515, %v2512
    %v2549 = vpack.c.b16 %v2516, %v2513
    %v2550 = vpack.c.b16 %v2520, %v2517
    %v2551 = vpack.c.b16 %v2521, %v2518
    %v2552 = vpack.c.b16 %v2522, %v2519
    %v2553 = vpack.c.b16 %v2526, %v2523
    %v2554 = vpack.c.b16 %v2527, %v2524
    %v2555 = vpack.c.b16 %v2528, %v2525
    %v2556 = vpack.c.b16 %v2532, %v2529
    %v2557 = vpack.c.b16 %v2533, %v2530
    %v2558 = vpack.c.b16 %v2534, %v2531
    %2583 = vmatprep.subr.bf16.mxu0 %v2557
    %2584 = vmatpush1.bf16.msra.mxu0 %v2556
    %2585 = vmatprep.subr.bf16.mxu0 %v2554
    %2586 = vmatpush1.bf16.msra.mxu0 %v2553
    %2587 = vmatprep.subr.bf16.mxu0 %v2551
    %2588 = vmatpush1.bf16.msra.mxu0 %v2550
    %2589 = vmatprep.subr.bf16.mxu0 %v2548
    %2590 = vmatpush1.bf16.msra.mxu0 %v2547
    %2591 = vmatprep.subr.bf16.mxu0 %v2545
    %2592 = vmatpush1.bf16.msra.mxu0 %v2544
    %2593 = vmatprep.subr.bf16.mxu0 %v2542
    %2594 = vmatpush1.bf16.msra.mxu0 %v2541
    %2595 = vmatprep.subr.bf16.mxu0 %v2539
    %2596 = vmatpush1.bf16.msra.mxu0 %v2538
    %2597 = vmatprep.subr.bf16.mxu0 %v2536
    %2598 = vmatpush1.bf16.msra.mxu0 %v2535
    %2599 = vmatprep.subr.bf16.mxu0 0
    %2600 = vmatpush2.bf16.msra.mxu0 0
    %2601 = vmatprep.subr.bf16.mxu0 0
    %2602 = vmatpush2.bf16.msra.mxu0 0
    %2603 = vmatprep.subr.bf16.mxu0 0
    %2604 = vmatpush2.bf16.msra.mxu0 0
    %2605 = vmatprep.subr.bf16.mxu0 0
    %2606 = vmatpush2.bf16.msra.mxu0 0
    %2607 = vmatprep.subr.bf16.mxu0 0
    %2608 = vmatpush2.bf16.msra.mxu0 0
    %2609 = vmatprep.subr.bf16.mxu0 0
    %2610 = vmatpush2.bf16.msra.mxu0 0
    %2611 = vmatprep.subr.bf16.mxu0 0
    %2612 = vmatpush2.bf16.msra.mxu0 0
    %2613 = vmatprep.subr.bf16.mxu0 0
    %2614 = vmatpush2.bf16.msra.mxu0 0
    %2615 = vmatprep.mubr.bf16.mxu0 0
    %2616 = vmatmul.mubr.bf16.gmra.mxu0 %v2435
    %v2617 = vpop.f32.mrf.mxu0
    %v2618 = vadd.f32 %v2443, %v2617
    %v2619 = vpop.f32.mrf.mxu0
    %v2620 = vadd.f32 %v2447, %v2619
    %v2621 = vpop.f32.mrf.mxu0
    %v2622 = vadd.f32 %v2443, %v2621
    %v2623 = vpop.f32.mrf.mxu0
    %v2624 = vadd.f32 %v2447, %v2623
    %2625 = vmatprep.mubr.bf16.mxu0 0
    %2626 = vmatmul.mubr.bf16.gmra.mxu0 %v2436
    %v2627 = vpop.f32.mrf.mxu0
    %v2628 = vadd.f32 %v2443, %v2627
    %v2629 = vpop.f32.mrf.mxu0
    %v2630 = vadd.f32 %v2447, %v2629
    %v2631 = vpop.f32.mrf.mxu0
    %v2632 = vadd.f32 %v2443, %v2631
    %v2633 = vpop.f32.mrf.mxu0
    %v2634 = vadd.f32 %v2447, %v2633
    %2635 = vdwg.mxu0
    %2636 = vmatprep.subr.bf16.mxu0 0
    %2637 = vmatpush1.bf16.msra.mxu0 %v2558
    %2638 = vmatprep.subr.bf16.mxu0 0
    %2639 = vmatpush1.bf16.msra.mxu0 %v2555
    %2640 = vmatprep.subr.bf16.mxu0 0
    %2641 = vmatpush1.bf16.msra.mxu0 %v2552
    %2642 = vmatprep.subr.bf16.mxu0 0
    %2643 = vmatpush1.bf16.msra.mxu0 %v2549
    %2644 = vmatprep.subr.bf16.mxu0 0
    %2645 = vmatpush1.bf16.msra.mxu0 %v2546
    %2646 = vmatprep.subr.bf16.mxu0 0
    %2647 = vmatpush1.bf16.msra.mxu0 %v2543
    %2648 = vmatprep.subr.bf16.mxu0 0
    %2649 = vmatpush1.bf16.msra.mxu0 %v2540
    %2650 = vmatprep.subr.bf16.mxu0 0
    %2651 = vmatpush1.bf16.msra.mxu0 %v2537
    %2652 = vmatprep.subr.bf16.mxu0 0
    %2653 = vmatpush2.bf16.msra.mxu0 0
    %2654 = vmatprep.subr.bf16.mxu0 0
    %2655 = vmatpush2.bf16.msra.mxu0 0
    %2656 = vmatprep.subr.bf16.mxu0 0
    %2657 = vmatpush2.bf16.msra.mxu0 0
    %2658 = vmatprep.subr.bf16.mxu0 0
    %2659 = vmatpush2.bf16.msra.mxu0 0
    %2660 = vmatprep.subr.bf16.mxu0 0
    %2661 = vmatpush2.bf16.msra.mxu0 0
    %2662 = vmatprep.subr.bf16.mxu0 0
    %2663 = vmatpush2.bf16.msra.mxu0 0
    %2664 = vmatprep.subr.bf16.mxu0 0
    %2665 = vmatpush2.bf16.msra.mxu0 0
    %2666 = vmatprep.subr.bf16.mxu0 0
    %2667 = vmatpush2.bf16.msra.mxu0 0
    %2668 = vmatprep.mubr.bf16.mxu0 0
    %2669 = vmatmul.mubr.bf16.gmra.mxu0 %v2435
    %v2670 = vpop.f32.mrf.mxu0
    %v2671 = vadd.f32 %v2451, %v2670
    %v2672 = vpop.f32.mrf.mxu0
    %v2673 = vpop.f32.mrf.mxu0
    %v2674 = vadd.f32 %v2451, %v2673
    %v2675 = vpop.f32.mrf.mxu0
    %2676 = vmatprep.mubr.bf16.mxu0 0
    %2677 = vmatmul.mubr.bf16.gmra.mxu0 %v2436
    %v2678 = vpop.f32.mrf.mxu0
    %v2679 = vadd.f32 %v2451, %v2678
    %v2680 = vpop.f32.mrf.mxu0
    %v2681 = vpop.f32.mrf.mxu0
    %v2682 = vadd.f32 %v2451, %v2681
    %v2683 = vpop.f32.mrf.mxu0
    %2684 = vdwg.mxu0
    %v2685 = vpack.c.bf16 %v2622, %v2618
    %v2686 = vpack.c.bf16 %v2632, %v2628
    %v2687 = vpack.c.bf16 %v2624, %v2620
    %v2688 = vpack.c.bf16 %v2634, %v2630
    %v2689 = vpack.c.bf16 %v2674, %v2671
    %v2690 = vpack.c.bf16 %v2682, %v2679
    %v2692 = vsel %vm949, %v2685, 0
    %v2695 = vsel %vm949, %v2686, 0
    %v2698 = vsel %vm949, %v2687, 0
    %v2701 = vsel %vm949, %v2688, 0
    %2703 = vmatprep.subr.bf16.mxu0 0
    %2704 = vmatpush1.bf16.xpose.msra.mxu0 0
    %2705 = vmatprep.subr.bf16.mxu0 0
    %2706 = vmatpush1.bf16.xpose.msra.mxu0 0
    %2707 = vmatprep.subr.bf16.mxu0 0
    %2708 = vmatpush1.bf16.xpose.msra.mxu0 0
    %2709 = vmatprep.subr.bf16.mxu0 0
    %2710 = vmatpush1.bf16.xpose.msra.mxu0 0
    %2711 = vmatprep.subr.bf16.mxu0 0
    %2712 = vmatpush1.bf16.xpose.msra.mxu0 0
    %2713 = vmatprep.subr.bf16.mxu0 0
    %2714 = vmatpush1.bf16.xpose.msra.mxu0 0
    %2715 = vmatprep.subr.bf16.mxu0 0
    %2716 = vmatpush1.bf16.xpose.msra.mxu0 %v2701
    %2717 = vmatprep.subr.bf16.mxu0 0
    %2718 = vmatpush1.bf16.xpose.msra.mxu0 %v2698
    %2719 = vmatprep.subr.bf16.mxu0 0
    %2720 = vmatpush2.bf16.xpose.msra.mxu0 0
    %2721 = vmatprep.subr.bf16.mxu0 0
    %2722 = vmatpush2.bf16.xpose.msra.mxu0 0
    %2723 = vmatprep.subr.bf16.mxu0 0
    %2724 = vmatpush2.bf16.xpose.msra.mxu0 0
    %2725 = vmatprep.subr.bf16.mxu0 0
    %2726 = vmatpush2.bf16.xpose.msra.mxu0 0
    %2727 = vmatprep.subr.bf16.mxu0 0
    %2728 = vmatpush2.bf16.xpose.msra.mxu0 0
    %2729 = vmatprep.subr.bf16.mxu0 0
    %2730 = vmatpush2.bf16.xpose.msra.mxu0 0
    %2731 = vmatprep.subr.bf16.mxu0 0
    %2732 = vmatpush2.bf16.xpose.msra.mxu0 0
    %2733 = vmatprep.subr.bf16.mxu0 0
    %2734 = vmatpush2.bf16.xpose.msra.mxu0 0
    %2735 = vmatprep.mubr.bf16.mxu0 0
    %2736 = vmatmul.mubr.bf16.gmra.mxu0 %v2692
    %v2737 = vpop.f32.mrf.mxu0
    %v2738 = vadd.f32 %v658, %v2737
    %v2739 = vpop.f32.mrf.mxu0
    %v2740 = vpop.f32.mrf.mxu0
    %v2741 = vadd.f32 %v659, %v2740
    %v2742 = vpop.f32.mrf.mxu0
    %2743 = vmatprep.mubr.bf16.mxu0 0
    %2744 = vmatmul.mubr.bf16.gmra.mxu0 %v2695
    %v2745 = vpop.f32.mrf.mxu0
    %v2746 = vadd.f32 %v660, %v2745
    %v2747 = vpop.f32.mrf.mxu0
    %v2748 = vpop.f32.mrf.mxu0
    %v2749 = vadd.f32 %v661, %v2748
    %v2750 = vpop.f32.mrf.mxu0
    %2751 = vdwg.mxu0
    %v2752 = vsel %vm949, %v2738, -inf
    %2753 = vmax.xlane.f32.xlu0 %v2752
    %v2754 = vpop.xlane.xlu0 %2753
    %v2755 = vsel %vm949, %v2741, -inf
    %2756 = vmax.xlane.f32.xlu0 %v2755
    %v2757 = vpop.xlane.xlu0 %2756
    %v2758 = vsel %vm949, %v2746, -inf
    %2759 = vmax.xlane.f32.xlu0 %v2758
    %v2760 = vpop.xlane.xlu0 %2759
    %v2761 = vsel %vm949, %v2749, -inf
    %2762 = vmax.xlane.f32.xlu0 %v2761
    %v2763 = vpop.xlane.xlu0 %2762
    %v2764 = vsub.f32 %v2738, %v2754
    %v2765 = vsub.f32 %v2741, %v2757
    %v2766 = vsub.f32 %v2746, %v2760
    %v2767 = vsub.f32 %v2749, %v2763
    %v2768 = vmul.f32 %v2764, 1.442695
    %v2769 = vpow.pop %v2768
    %v2770 = vmul.f32 %v2765, 1.442695
    %v2771 = vpow.pop %v2770
    %v2772 = vmul.f32 %v2766, 1.442695
    %v2773 = vpow.pop %v2772
    %v2774 = vmul.f32 %v2767, 1.442695
    %v2775 = vpow.pop %v2774
    %v2776 = vsel %vm949, %v2769, 0.0
    %2777 = vadd.xlane.f32.xlu0 %v2776
    %v2778 = vpop.xlane.xlu0 %2777
    %v2779 = vsel %vm949, %v2771, 0.0
    %2780 = vadd.xlane.f32.xlu0 %v2779
    %v2781 = vpop.xlane.xlu0 %2780
    %v2782 = vsel %vm949, %v2773, 0.0
    %2783 = vadd.xlane.f32.xlu0 %v2782
    %v2784 = vpop.xlane.xlu0 %2783
    %v2785 = vsel %vm949, %v2775, 0.0
    %2786 = vadd.xlane.f32.xlu0 %v2785
    %v2787 = vpop.xlane.xlu0 %2786
    %v2788 = vrcp.pop %v2778
    %v2789 = vrcp.pop %v2781
    %v2790 = vrcp.pop %v2784
    %v2791 = vrcp.pop %v2787
    %v2792 = vmul.f32 %v2769, %v2788
    %v2793 = vmul.f32 %v2771, %v2789
    %v2794 = vmul.f32 %v2773, %v2790
    %v2795 = vmul.f32 %v2775, %v2791
    %v2796 = vpack.c.bf16 %v2793, %v2792
    %v2797 = vpack.c.bf16 %v2795, %v2794
    %v2799 = vsel %vm949, %v2796, 0
    %v2802 = vsel %vm949, %v2797, 0
    %2804 = vmatprep.subr.bf16.mxu0 0
    %2805 = vmatpush1.bf16.msra.mxu0 0
    %2806 = vmatprep.subr.bf16.mxu0 0
    %2807 = vmatpush1.bf16.msra.mxu0 0
    %2808 = vmatprep.subr.bf16.mxu0 0
    %2809 = vmatpush1.bf16.msra.mxu0 0
    %2810 = vmatprep.subr.bf16.mxu0 0
    %2811 = vmatpush1.bf16.msra.mxu0 0
    %2812 = vmatprep.subr.bf16.mxu0 0
    %2813 = vmatpush1.bf16.msra.mxu0 0
    %2814 = vmatprep.subr.bf16.mxu0 0
    %2815 = vmatpush1.bf16.msra.mxu0 0
    %2816 = vmatprep.subr.bf16.mxu0 0
    %2817 = vmatpush1.bf16.msra.mxu0 %v2690
    %2818 = vmatprep.subr.bf16.mxu0 0
    %2819 = vmatpush1.bf16.msra.mxu0 %v2689
    %2820 = vmatprep.subr.bf16.mxu0 0
    %2821 = vmatpush2.bf16.msra.mxu0 0
    %2822 = vmatprep.subr.bf16.mxu0 0
    %2823 = vmatpush2.bf16.msra.mxu0 0
    %2824 = vmatprep.subr.bf16.mxu0 0
    %2825 = vmatpush2.bf16.msra.mxu0 0
    %2826 = vmatprep.subr.bf16.mxu0 0
    %2827 = vmatpush2.bf16.msra.mxu0 0
    %2828 = vmatprep.subr.bf16.mxu0 0
    %2829 = vmatpush2.bf16.msra.mxu0 0
    %2830 = vmatprep.subr.bf16.mxu0 0
    %2831 = vmatpush2.bf16.msra.mxu0 0
    %2832 = vmatprep.subr.bf16.mxu0 0
    %2833 = vmatpush2.bf16.msra.mxu0 0
    %2834 = vmatprep.subr.bf16.mxu0 0
    %2835 = vmatpush2.bf16.msra.mxu0 0
    %2836 = vmatprep.mubr.bf16.mxu0 0
    %2837 = vmatmul.mubr.bf16.gmra.mxu0 %v2799
    %v2838 = vpop.f32.mrf.mxu0
    %v2839 = vadd.f32 0.0, %v2838
    %v2840 = vpop.f32.mrf.mxu0
    %v2841 = vpop.f32.mrf.mxu0
    %v2842 = vadd.f32 0.0, %v2841
    %v2843 = vpop.f32.mrf.mxu0
    %2844 = vmatprep.mubr.bf16.mxu0 0
    %2845 = vmatmul.mubr.bf16.gmra.mxu0 %v2802
    %v2846 = vpop.f32.mrf.mxu0
    %v2847 = vadd.f32 0.0, %v2846
    %v2848 = vpop.f32.mrf.mxu0
    %v2849 = vpop.f32.mrf.mxu0
    %v2850 = vadd.f32 0.0, %v2849
    %v2851 = vpop.f32.mrf.mxu0
    %2852 = vdwg.mxu0
    %2853 = vst.msk [vmem:[#allocation2] sm:$0xff] %vm949, %v2839
    %2854 = vst.msk [vmem:[#allocation2 + $0x8] sm:$0xff] %vm949, %v2842
    %2855 = vst.msk [vmem:[#allocation2 + $0x10] sm:$0xff] %vm949, %v2847
    %2856 = vst.msk [vmem:[#allocation2 + $0x18] sm:$0xff] %vm949, %v2850
    %2859 = vrot.lane.b32.xlu0 %v2685, 96
    %v2860 = vpop.permute.xlu0 %2859
    %2861 = vrot.lane.b32.xlu0 %v2686, 96
    %v2862 = vpop.permute.xlu0 %2861
    %2865 = vrot.lane.b32.xlu0 %v2687, 96
    %v2866 = vpop.permute.xlu0 %2865
    %2867 = vrot.lane.b32.xlu0 %v2688, 96
    %v2868 = vpop.permute.xlu0 %2867
    %v2870 = vsel %vm949, %v2860, 0
    %v2873 = vsel %vm949, %v2862, 0
    %v2876 = vsel %vm949, %v2866, 0
    %v2879 = vsel %vm949, %v2868, 0
    %2881 = vmatprep.subr.bf16.mxu0 0
    %2882 = vmatpush1.bf16.xpose.msra.mxu0 0
    %2883 = vmatprep.subr.bf16.mxu0 0
    %2884 = vmatpush1.bf16.xpose.msra.mxu0 0
    %2885 = vmatprep.subr.bf16.mxu0 0
    %2886 = vmatpush1.bf16.xpose.msra.mxu0 0
    %2887 = vmatprep.subr.bf16.mxu0 0
    %2888 = vmatpush1.bf16.xpose.msra.mxu0 0
    %2889 = vmatprep.subr.bf16.mxu0 0
    %2890 = vmatpush1.bf16.xpose.msra.mxu0 0
    %2891 = vmatprep.subr.bf16.mxu0 0
    %2892 = vmatpush1.bf16.xpose.msra.mxu0 0
    %2893 = vmatprep.subr.bf16.mxu0 0
    %2894 = vmatpush1.bf16.xpose.msra.mxu0 %v2879
    %2895 = vmatprep.subr.bf16.mxu0 0
    %2896 = vmatpush1.bf16.xpose.msra.mxu0 %v2876
    %2897 = vmatprep.subr.bf16.mxu0 0
    %2898 = vmatpush2.bf16.xpose.msra.mxu0 0
    %2899 = vmatprep.subr.bf16.mxu0 0
    %2900 = vmatpush2.bf16.xpose.msra.mxu0 0
    %2901 = vmatprep.subr.bf16.mxu0 0
    %2902 = vmatpush2.bf16.xpose.msra.mxu0 0
    %2903 = vmatprep.subr.bf16.mxu0 0
    %2904 = vmatpush2.bf16.xpose.msra.mxu0 0
    %2905 = vmatprep.subr.bf16.mxu0 0
    %2906 = vmatpush2.bf16.xpose.msra.mxu0 0
    %2907 = vmatprep.subr.bf16.mxu0 0
    %2908 = vmatpush2.bf16.xpose.msra.mxu0 0
    %2909 = vmatprep.subr.bf16.mxu0 0
    %2910 = vmatpush2.bf16.xpose.msra.mxu0 0
    %2911 = vmatprep.subr.bf16.mxu0 0
    %2912 = vmatpush2.bf16.xpose.msra.mxu0 0
    %2913 = vmatprep.mubr.bf16.mxu0 0
    %2914 = vmatmul.mubr.bf16.gmra.mxu0 %v2870
    %v2915 = vpop.f32.mrf.mxu0
    %v2916 = vadd.f32 %v658, %v2915
    %v2917 = vpop.f32.mrf.mxu0
    %v2918 = vpop.f32.mrf.mxu0
    %v2919 = vadd.f32 %v659, %v2918
    %v2920 = vpop.f32.mrf.mxu0
    %2921 = vmatprep.mubr.bf16.mxu0 0
    %2922 = vmatmul.mubr.bf16.gmra.mxu0 %v2873
    %v2923 = vpop.f32.mrf.mxu0
    %v2924 = vadd.f32 %v660, %v2923
    %v2925 = vpop.f32.mrf.mxu0
    %v2926 = vpop.f32.mrf.mxu0
    %v2927 = vadd.f32 %v661, %v2926
    %v2928 = vpop.f32.mrf.mxu0
    %2929 = vdwg.mxu0
    %v2930 = vsel %vm949, %v2916, -inf
    %2931 = vmax.xlane.f32.xlu0 %v2930
    %v2932 = vpop.xlane.xlu0 %2931
    %v2933 = vsel %vm949, %v2919, -inf
    %2934 = vmax.xlane.f32.xlu0 %v2933
    %v2935 = vpop.xlane.xlu0 %2934
    %v2936 = vsel %vm949, %v2924, -inf
    %2937 = vmax.xlane.f32.xlu0 %v2936
    %v2938 = vpop.xlane.xlu0 %2937
    %v2939 = vsel %vm949, %v2927, -inf
    %2940 = vmax.xlane.f32.xlu0 %v2939
    %v2941 = vpop.xlane.xlu0 %2940
    %v2942 = vsub.f32 %v2916, %v2932
    %v2943 = vsub.f32 %v2919, %v2935
    %v2944 = vsub.f32 %v2924, %v2938
    %v2945 = vsub.f32 %v2927, %v2941
    %v2946 = vmul.f32 %v2942, 1.442695
    %v2947 = vpow.pop %v2946
    %v2948 = vmul.f32 %v2943, 1.442695
    %v2949 = vpow.pop %v2948
    %v2950 = vmul.f32 %v2944, 1.442695
    %v2951 = vpow.pop %v2950
    %v2952 = vmul.f32 %v2945, 1.442695
    %v2953 = vpow.pop %v2952
    %v2954 = vsel %vm949, %v2947, 0.0
    %2955 = vadd.xlane.f32.xlu0 %v2954
    %v2956 = vpop.xlane.xlu0 %2955
    %v2957 = vsel %vm949, %v2949, 0.0
    %2958 = vadd.xlane.f32.xlu0 %v2957
    %v2959 = vpop.xlane.xlu0 %2958
    %v2960 = vsel %vm949, %v2951, 0.0
    %2961 = vadd.xlane.f32.xlu0 %v2960
    %v2962 = vpop.xlane.xlu0 %2961
    %v2963 = vsel %vm949, %v2953, 0.0
    %2964 = vadd.xlane.f32.xlu0 %v2963
    %v2965 = vpop.xlane.xlu0 %2964
    %v2966 = vrcp.pop %v2956
    %v2967 = vrcp.pop %v2959
    %v2968 = vrcp.pop %v2962
    %v2969 = vrcp.pop %v2965
    %v2970 = vmul.f32 %v2947, %v2966
    %v2971 = vmul.f32 %v2949, %v2967
    %v2972 = vmul.f32 %v2951, %v2968
    %v2973 = vmul.f32 %v2953, %v2969
    %v2974 = vpack.c.bf16 %v2971, %v2970
    %v2975 = vpack.c.bf16 %v2973, %v2972
    %2978 = vrot.lane.b32.xlu0 %v2689, 96
    %v2979 = vpop.permute.xlu0 %2978
    %2980 = vrot.lane.b32.xlu0 %v2690, 96
    %v2981 = vpop.permute.xlu0 %2980
    %v2985 = vsel %vm949, %v2974, 0
    %v2988 = vsel %vm949, %v2975, 0
    %2990 = vmatprep.subr.bf16.mxu0 0
    %2991 = vmatpush1.bf16.msra.mxu0 0
    %2992 = vmatprep.subr.bf16.mxu0 0
    %2993 = vmatpush1.bf16.msra.mxu0 0
    %2994 = vmatprep.subr.bf16.mxu0 0
    %2995 = vmatpush1.bf16.msra.mxu0 0
    %2996 = vmatprep.subr.bf16.mxu0 0
    %2997 = vmatpush1.bf16.msra.mxu0 0
    %2998 = vmatprep.subr.bf16.mxu0 0
    %2999 = vmatpush1.bf16.msra.mxu0 0
    %3000 = vmatprep.subr.bf16.mxu0 0
    %3001 = vmatpush1.bf16.msra.mxu0 0
    %3002 = vmatprep.subr.bf16.mxu0 0
    %3003 = vmatpush1.bf16.msra.mxu0 %v2981
    %3004 = vmatprep.subr.bf16.mxu0 0
    %3005 = vmatpush1.bf16.msra.mxu0 %v2979
    %3006 = vmatprep.subr.bf16.mxu0 0
    %3007 = vmatpush2.bf16.msra.mxu0 0
    %3008 = vmatprep.subr.bf16.mxu0 0
    %3009 = vmatpush2.bf16.msra.mxu0 0
    %3010 = vmatprep.subr.bf16.mxu0 0
    %3011 = vmatpush2.bf16.msra.mxu0 0
    %3012 = vmatprep.subr.bf16.mxu0 0
    %3013 = vmatpush2.bf16.msra.mxu0 0
    %3014 = vmatprep.subr.bf16.mxu0 0
    %3015 = vmatpush2.bf16.msra.mxu0 0
    %3016 = vmatprep.subr.bf16.mxu0 0
    %3017 = vmatpush2.bf16.msra.mxu0 0
    %3018 = vmatprep.subr.bf16.mxu0 0
    %3019 = vmatpush2.bf16.msra.mxu0 0
    %3020 = vmatprep.subr.bf16.mxu0 0
    %3021 = vmatpush2.bf16.msra.mxu0 0
    %3022 = vmatprep.mubr.bf16.mxu0 0
    %3023 = vmatmul.mubr.bf16.gmra.mxu0 %v2985
    %v3024 = vpop.f32.mrf.mxu0
    %v3025 = vadd.f32 0.0, %v3024
    %v3026 = vpop.f32.mrf.mxu0
    %v3027 = vpop.f32.mrf.mxu0
    %v3028 = vadd.f32 0.0, %v3027
    %v3029 = vpop.f32.mrf.mxu0
    %3030 = vmatprep.mubr.bf16.mxu0 0
    %3031 = vmatmul.mubr.bf16.gmra.mxu0 %v2988
    %v3032 = vpop.f32.mrf.mxu0
    %v3033 = vadd.f32 0.0, %v3032
    %v3034 = vpop.f32.mrf.mxu0
    %v3035 = vpop.f32.mrf.mxu0
    %v3036 = vadd.f32 0.0, %v3035
    %v3037 = vpop.f32.mrf.mxu0
    %3038 = vdwg.mxu0
    %3043 = vrot.lane.b32.xlu0 %v3025, 32
    %v3044 = vpop.permute.xlu0 %3043
    %3045 = vrot.lane.b32.xlu0 %v3028, 32
    %v3046 = vpop.permute.xlu0 %3045
    %3047 = vrot.lane.b32.xlu0 %v3033, 32
    %v3048 = vpop.permute.xlu0 %3047
    %3049 = vrot.lane.b32.xlu0 %v3036, 32
    %v3050 = vpop.permute.xlu0 %3049
    %3055 = vst.msk [vmem:[#allocation2] sm:$0xff] %vm1314, %v3044
    %3056 = vst.msk [vmem:[#allocation2 + $0x8] sm:$0xff] %vm1314, %v3046
    %3057 = vst.msk [vmem:[#allocation2 + $0x10] sm:$0xff] %vm1314, %v3048
    %3058 = vst.msk [vmem:[#allocation2 + $0x18] sm:$0xff] %vm1314, %v3050
    %3059 = vrot.lane.b32.xlu0 %v2685, 64
    %v3060 = vpop.permute.xlu0 %3059
    %3061 = vrot.lane.b32.xlu0 %v2686, 64
    %v3062 = vpop.permute.xlu0 %3061
    %3063 = vrot.lane.b32.xlu0 %v2687, 64
    %v3064 = vpop.permute.xlu0 %3063
    %3065 = vrot.lane.b32.xlu0 %v2688, 64
    %v3066 = vpop.permute.xlu0 %3065
    %v3068 = vsel %vm949, %v3060, 0
    %v3071 = vsel %vm949, %v3062, 0
    %v3074 = vsel %vm949, %v3064, 0
    %v3077 = vsel %vm949, %v3066, 0
    %3079 = vmatprep.subr.bf16.mxu0 0
    %3080 = vmatpush1.bf16.xpose.msra.mxu0 0
    %3081 = vmatprep.subr.bf16.mxu0 0
    %3082 = vmatpush1.bf16.xpose.msra.mxu0 0
    %3083 = vmatprep.subr.bf16.mxu0 0
    %3084 = vmatpush1.bf16.xpose.msra.mxu0 0
    %3085 = vmatprep.subr.bf16.mxu0 0
    %3086 = vmatpush1.bf16.xpose.msra.mxu0 0
    %3087 = vmatprep.subr.bf16.mxu0 0
    %3088 = vmatpush1.bf16.xpose.msra.mxu0 0
    %3089 = vmatprep.subr.bf16.mxu0 0
    %3090 = vmatpush1.bf16.xpose.msra.mxu0 0
    %3091 = vmatprep.subr.bf16.mxu0 0
    %3092 = vmatpush1.bf16.xpose.msra.mxu0 %v3077
    %3093 = vmatprep.subr.bf16.mxu0 0
    %3094 = vmatpush1.bf16.xpose.msra.mxu0 %v3074
    %3095 = vmatprep.subr.bf16.mxu0 0
    %3096 = vmatpush2.bf16.xpose.msra.mxu0 0
    %3097 = vmatprep.subr.bf16.mxu0 0
    %3098 = vmatpush2.bf16.xpose.msra.mxu0 0
    %3099 = vmatprep.subr.bf16.mxu0 0
    %3100 = vmatpush2.bf16.xpose.msra.mxu0 0
    %3101 = vmatprep.subr.bf16.mxu0 0
    %3102 = vmatpush2.bf16.xpose.msra.mxu0 0
    %3103 = vmatprep.subr.bf16.mxu0 0
    %3104 = vmatpush2.bf16.xpose.msra.mxu0 0
    %3105 = vmatprep.subr.bf16.mxu0 0
    %3106 = vmatpush2.bf16.xpose.msra.mxu0 0
    %3107 = vmatprep.subr.bf16.mxu0 0
    %3108 = vmatpush2.bf16.xpose.msra.mxu0 0
    %3109 = vmatprep.subr.bf16.mxu0 0
    %3110 = vmatpush2.bf16.xpose.msra.mxu0 0
    %3111 = vmatprep.mubr.bf16.mxu0 0
    %3112 = vmatmul.mubr.bf16.gmra.mxu0 %v3068
    %v3113 = vpop.f32.mrf.mxu0
    %v3114 = vadd.f32 %v658, %v3113
    %v3115 = vpop.f32.mrf.mxu0
    %v3116 = vpop.f32.mrf.mxu0
    %v3117 = vadd.f32 %v659, %v3116
    %v3118 = vpop.f32.mrf.mxu0
    %3119 = vmatprep.mubr.bf16.mxu0 0
    %3120 = vmatmul.mubr.bf16.gmra.mxu0 %v3071
    %v3121 = vpop.f32.mrf.mxu0
    %v3122 = vadd.f32 %v660, %v3121
    %v3123 = vpop.f32.mrf.mxu0
    %v3124 = vpop.f32.mrf.mxu0
    %v3125 = vadd.f32 %v661, %v3124
    %v3126 = vpop.f32.mrf.mxu0
    %3127 = vdwg.mxu0
    %v3128 = vsel %vm949, %v3114, -inf
    %3129 = vmax.xlane.f32.xlu0 %v3128
    %v3130 = vpop.xlane.xlu0 %3129
    %v3131 = vsel %vm949, %v3117, -inf
    %3132 = vmax.xlane.f32.xlu0 %v3131
    %v3133 = vpop.xlane.xlu0 %3132
    %v3134 = vsel %vm949, %v3122, -inf
    %3135 = vmax.xlane.f32.xlu0 %v3134
    %v3136 = vpop.xlane.xlu0 %3135
    %v3137 = vsel %vm949, %v3125, -inf
    %3138 = vmax.xlane.f32.xlu0 %v3137
    %v3139 = vpop.xlane.xlu0 %3138
    %v3140 = vsub.f32 %v3114, %v3130
    %v3141 = vsub.f32 %v3117, %v3133
    %v3142 = vsub.f32 %v3122, %v3136
    %v3143 = vsub.f32 %v3125, %v3139
    %v3144 = vmul.f32 %v3140, 1.442695
    %v3145 = vpow.pop %v3144
    %v3146 = vmul.f32 %v3141, 1.442695
    %v3147 = vpow.pop %v3146
    %v3148 = vmul.f32 %v3142, 1.442695
    %v3149 = vpow.pop %v3148
    %v3150 = vmul.f32 %v3143, 1.442695
    %v3151 = vpow.pop %v3150
    %v3152 = vsel %vm949, %v3145, 0.0
    %3153 = vadd.xlane.f32.xlu0 %v3152
    %v3154 = vpop.xlane.xlu0 %3153
    %v3155 = vsel %vm949, %v3147, 0.0
    %3156 = vadd.xlane.f32.xlu0 %v3155
    %v3157 = vpop.xlane.xlu0 %3156
    %v3158 = vsel %vm949, %v3149, 0.0
    %3159 = vadd.xlane.f32.xlu0 %v3158
    %v3160 = vpop.xlane.xlu0 %3159
    %v3161 = vsel %vm949, %v3151, 0.0
    %3162 = vadd.xlane.f32.xlu0 %v3161
    %v3163 = vpop.xlane.xlu0 %3162
    %v3164 = vrcp.pop %v3154
    %v3165 = vrcp.pop %v3157
    %v3166 = vrcp.pop %v3160
    %v3167 = vrcp.pop %v3163
    %v3168 = vmul.f32 %v3145, %v3164
    %v3169 = vmul.f32 %v3147, %v3165
    %v3170 = vmul.f32 %v3149, %v3166
    %v3171 = vmul.f32 %v3151, %v3167
    %v3172 = vpack.c.bf16 %v3169, %v3168
    %v3173 = vpack.c.bf16 %v3171, %v3170
    %3174 = vrot.lane.b32.xlu0 %v2689, 64
    %v3175 = vpop.permute.xlu0 %3174
    %3176 = vrot.lane.b32.xlu0 %v2690, 64
    %v3177 = vpop.permute.xlu0 %3176
    %v3181 = vsel %vm949, %v3172, 0
    %v3184 = vsel %vm949, %v3173, 0
    %3186 = vmatprep.subr.bf16.mxu0 0
    %3187 = vmatpush1.bf16.msra.mxu0 0
    %3188 = vmatprep.subr.bf16.mxu0 0
    %3189 = vmatpush1.bf16.msra.mxu0 0
    %3190 = vmatprep.subr.bf16.mxu0 0
    %3191 = vmatpush1.bf16.msra.mxu0 0
    %3192 = vmatprep.subr.bf16.mxu0 0
    %3193 = vmatpush1.bf16.msra.mxu0 0
    %3194 = vmatprep.subr.bf16.mxu0 0
    %3195 = vmatpush1.bf16.msra.mxu0 0
    %3196 = vmatprep.subr.bf16.mxu0 0
    %3197 = vmatpush1.bf16.msra.mxu0 0
    %3198 = vmatprep.subr.bf16.mxu0 0
    %3199 = vmatpush1.bf16.msra.mxu0 %v3177
    %3200 = vmatprep.subr.bf16.mxu0 0
    %3201 = vmatpush1.bf16.msra.mxu0 %v3175
    %3202 = vmatprep.subr.bf16.mxu0 0
    %3203 = vmatpush2.bf16.msra.mxu0 0
    %3204 = vmatprep.subr.bf16.mxu0 0
    %3205 = vmatpush2.bf16.msra.mxu0 0
    %3206 = vmatprep.subr.bf16.mxu0 0
    %3207 = vmatpush2.bf16.msra.mxu0 0
    %3208 = vmatprep.subr.bf16.mxu0 0
    %3209 = vmatpush2.bf16.msra.mxu0 0
    %3210 = vmatprep.subr.bf16.mxu0 0
    %3211 = vmatpush2.bf16.msra.mxu0 0
    %3212 = vmatprep.subr.bf16.mxu0 0
    %3213 = vmatpush2.bf16.msra.mxu0 0
    %3214 = vmatprep.subr.bf16.mxu0 0
    %3215 = vmatpush2.bf16.msra.mxu0 0
    %3216 = vmatprep.subr.bf16.mxu0 0
    %3217 = vmatpush2.bf16.msra.mxu0 0
    %3218 = vmatprep.mubr.bf16.mxu0 0
    %3219 = vmatmul.mubr.bf16.gmra.mxu0 %v3181
    %v3220 = vpop.f32.mrf.mxu0
    %v3221 = vadd.f32 0.0, %v3220
    %v3222 = vpop.f32.mrf.mxu0
    %v3223 = vpop.f32.mrf.mxu0
    %v3224 = vadd.f32 0.0, %v3223
    %v3225 = vpop.f32.mrf.mxu0
    %3226 = vmatprep.mubr.bf16.mxu0 0
    %3227 = vmatmul.mubr.bf16.gmra.mxu0 %v3184
    %v3228 = vpop.f32.mrf.mxu0
    %v3229 = vadd.f32 0.0, %v3228
    %v3230 = vpop.f32.mrf.mxu0
    %v3231 = vpop.f32.mrf.mxu0
    %v3232 = vadd.f32 0.0, %v3231
    %v3233 = vpop.f32.mrf.mxu0
    %3234 = vdwg.mxu0
    %3239 = vrot.lane.b32.xlu0 %v3221, 64
    %v3240 = vpop.permute.xlu0 %3239
    %3241 = vrot.lane.b32.xlu0 %v3224, 64
    %v3242 = vpop.permute.xlu0 %3241
    %3243 = vrot.lane.b32.xlu0 %v3229, 64
    %v3244 = vpop.permute.xlu0 %3243
    %3245 = vrot.lane.b32.xlu0 %v3232, 64
    %v3246 = vpop.permute.xlu0 %3245
    %3251 = vst.msk [vmem:[#allocation2] sm:$0xff] %vm1511, %v3240
    %3252 = vst.msk [vmem:[#allocation2 + $0x8] sm:$0xff] %vm1511, %v3242
    %3253 = vst.msk [vmem:[#allocation2 + $0x10] sm:$0xff] %vm1511, %v3244
    %3254 = vst.msk [vmem:[#allocation2 + $0x18] sm:$0xff] %vm1511, %v3246
    %3255 = vrot.lane.b32.xlu0 %v2685, 32
    %v3256 = vpop.permute.xlu0 %3255
    %3257 = vrot.lane.b32.xlu0 %v2686, 32
    %v3258 = vpop.permute.xlu0 %3257
    %3259 = vrot.lane.b32.xlu0 %v2687, 32
    %v3260 = vpop.permute.xlu0 %3259
    %3261 = vrot.lane.b32.xlu0 %v2688, 32
    %v3262 = vpop.permute.xlu0 %3261
    %v3264 = vsel %vm949, %v3256, 0
    %v3267 = vsel %vm949, %v3258, 0
    %v3270 = vsel %vm949, %v3260, 0
    %v3273 = vsel %vm949, %v3262, 0
    %3275 = vmatprep.subr.bf16.mxu0 0
    %3276 = vmatpush1.bf16.xpose.msra.mxu0 0
    %3277 = vmatprep.subr.bf16.mxu0 0
    %3278 = vmatpush1.bf16.xpose.msra.mxu0 0
    %3279 = vmatprep.subr.bf16.mxu0 0
    %3280 = vmatpush1.bf16.xpose.msra.mxu0 0
    %3281 = vmatprep.subr.bf16.mxu0 0
    %3282 = vmatpush1.bf16.xpose.msra.mxu0 0
    %3283 = vmatprep.subr.bf16.mxu0 0
    %3284 = vmatpush1.bf16.xpose.msra.mxu0 0
    %3285 = vmatprep.subr.bf16.mxu0 0
    %3286 = vmatpush1.bf16.xpose.msra.mxu0 0
    %3287 = vmatprep.subr.bf16.mxu0 0
    %3288 = vmatpush1.bf16.xpose.msra.mxu0 %v3273
    %3289 = vmatprep.subr.bf16.mxu0 0
    %3290 = vmatpush1.bf16.xpose.msra.mxu0 %v3270
    %3291 = vmatprep.subr.bf16.mxu0 0
    %3292 = vmatpush2.bf16.xpose.msra.mxu0 0
    %3293 = vmatprep.subr.bf16.mxu0 0
    %3294 = vmatpush2.bf16.xpose.msra.mxu0 0
    %3295 = vmatprep.subr.bf16.mxu0 0
    %3296 = vmatpush2.bf16.xpose.msra.mxu0 0
    %3297 = vmatprep.subr.bf16.mxu0 0
    %3298 = vmatpush2.bf16.xpose.msra.mxu0 0
    %3299 = vmatprep.subr.bf16.mxu0 0
    %3300 = vmatpush2.bf16.xpose.msra.mxu0 0
    %3301 = vmatprep.subr.bf16.mxu0 0
    %3302 = vmatpush2.bf16.xpose.msra.mxu0 0
    %3303 = vmatprep.subr.bf16.mxu0 0
    %3304 = vmatpush2.bf16.xpose.msra.mxu0 0
    %3305 = vmatprep.subr.bf16.mxu0 0
    %3306 = vmatpush2.bf16.xpose.msra.mxu0 0
    %3307 = vmatprep.mubr.bf16.mxu0 0
    %3308 = vmatmul.mubr.bf16.gmra.mxu0 %v3264
    %v3309 = vpop.f32.mrf.mxu0
    %v3310 = vadd.f32 %v658, %v3309
    %v3311 = vpop.f32.mrf.mxu0
    %v3312 = vpop.f32.mrf.mxu0
    %v3313 = vadd.f32 %v659, %v3312
    %v3314 = vpop.f32.mrf.mxu0
    %3315 = vmatprep.mubr.bf16.mxu0 0
    %3316 = vmatmul.mubr.bf16.gmra.mxu0 %v3267
    %v3317 = vpop.f32.mrf.mxu0
    %v3318 = vadd.f32 %v660, %v3317
    %v3319 = vpop.f32.mrf.mxu0
    %v3320 = vpop.f32.mrf.mxu0
    %v3321 = vadd.f32 %v661, %v3320
    %v3322 = vpop.f32.mrf.mxu0
    %3323 = vdwg.mxu0
    %v3324 = vsel %vm949, %v3310, -inf
    %3325 = vmax.xlane.f32.xlu0 %v3324
    %v3326 = vpop.xlane.xlu0 %3325
    %v3327 = vsel %vm949, %v3313, -inf
    %3328 = vmax.xlane.f32.xlu0 %v3327
    %v3329 = vpop.xlane.xlu0 %3328
    %v3330 = vsel %vm949, %v3318, -inf
    %3331 = vmax.xlane.f32.xlu0 %v3330
    %v3332 = vpop.xlane.xlu0 %3331
    %v3333 = vsel %vm949, %v3321, -inf
    %3334 = vmax.xlane.f32.xlu0 %v3333
    %v3335 = vpop.xlane.xlu0 %3334
    %v3336 = vsub.f32 %v3310, %v3326
    %v3337 = vsub.f32 %v3313, %v3329
    %v3338 = vsub.f32 %v3318, %v3332
    %v3339 = vsub.f32 %v3321, %v3335
    %v3340 = vmul.f32 %v3336, 1.442695
    %v3341 = vpow.pop %v3340
    %v3342 = vmul.f32 %v3337, 1.442695
    %v3343 = vpow.pop %v3342
    %v3344 = vmul.f32 %v3338, 1.442695
    %v3345 = vpow.pop %v3344
    %v3346 = vmul.f32 %v3339, 1.442695
    %v3347 = vpow.pop %v3346
    %v3348 = vsel %vm949, %v3341, 0.0
    %3349 = vadd.xlane.f32.xlu0 %v3348
    %v3350 = vpop.xlane.xlu0 %3349
    %v3351 = vsel %vm949, %v3343, 0.0
    %3352 = vadd.xlane.f32.xlu0 %v3351
    %v3353 = vpop.xlane.xlu0 %3352
    %v3354 = vsel %vm949, %v3345, 0.0
    %3355 = vadd.xlane.f32.xlu0 %v3354
    %v3356 = vpop.xlane.xlu0 %3355
    %v3357 = vsel %vm949, %v3347, 0.0
    %3358 = vadd.xlane.f32.xlu0 %v3357
    %v3359 = vpop.xlane.xlu0 %3358
    %v3360 = vrcp.pop %v3350
    %v3361 = vrcp.pop %v3353
    %v3362 = vrcp.pop %v3356
    %v3363 = vrcp.pop %v3359
    %v3364 = vmul.f32 %v3341, %v3360
    %v3365 = vmul.f32 %v3343, %v3361
    %v3366 = vmul.f32 %v3345, %v3362
    %v3367 = vmul.f32 %v3347, %v3363
    %v3368 = vpack.c.bf16 %v3365, %v3364
    %v3369 = vpack.c.bf16 %v3367, %v3366
    %3370 = vrot.lane.b32.xlu0 %v2689, 32
    %v3371 = vpop.permute.xlu0 %3370
    %3372 = vrot.lane.b32.xlu0 %v2690, 32
    %v3373 = vpop.permute.xlu0 %3372
    %v3377 = vsel %vm949, %v3368, 0
    %v3380 = vsel %vm949, %v3369, 0
    %3382 = vmatprep.subr.bf16.mxu0 0
    %3383 = vmatpush1.bf16.msra.mxu0 0
    %3384 = vmatprep.subr.bf16.mxu0 0
    %3385 = vmatpush1.bf16.msra.mxu0 0
    %3386 = vmatprep.subr.bf16.mxu0 0
    %3387 = vmatpush1.bf16.msra.mxu0 0
    %3388 = vmatprep.subr.bf16.mxu0 0
    %3389 = vmatpush1.bf16.msra.mxu0 0
    %3390 = vmatprep.subr.bf16.mxu0 0
    %3391 = vmatpush1.bf16.msra.mxu0 0
    %3392 = vmatprep.subr.bf16.mxu0 0
    %3393 = vmatpush1.bf16.msra.mxu0 0
    %3394 = vmatprep.subr.bf16.mxu0 0
    %3395 = vmatpush1.bf16.msra.mxu0 %v3373
    %3396 = vmatprep.subr.bf16.mxu0 0
    %3397 = vmatpush1.bf16.msra.mxu0 %v3371
    %3398 = vmatprep.subr.bf16.mxu0 0
    %3399 = vmatpush2.bf16.msra.mxu0 0
    %3400 = vmatprep.subr.bf16.mxu0 0
    %3401 = vmatpush2.bf16.msra.mxu0 0
    %3402 = vmatprep.subr.bf16.mxu0 0
    %3403 = vmatpush2.bf16.msra.mxu0 0
    %3404 = vmatprep.subr.bf16.mxu0 0
    %3405 = vmatpush2.bf16.msra.mxu0 0
    %3406 = vmatprep.subr.bf16.mxu0 0
    %3407 = vmatpush2.bf16.msra.mxu0 0
    %3408 = vmatprep.subr.bf16.mxu0 0
    %3409 = vmatpush2.bf16.msra.mxu0 0
    %3410 = vmatprep.subr.bf16.mxu0 0
    %3411 = vmatpush2.bf16.msra.mxu0 0
    %3412 = vmatprep.subr.bf16.mxu0 0
    %3413 = vmatpush2.bf16.msra.mxu0 0
    %3414 = vmatprep.mubr.bf16.mxu0 0
    %3415 = vmatmul.mubr.bf16.gmra.mxu0 %v3377
    %v3416 = vpop.f32.mrf.mxu0
    %v3417 = vadd.f32 0.0, %v3416
    %v3418 = vpop.f32.mrf.mxu0
    %v3419 = vpop.f32.mrf.mxu0
    %v3420 = vadd.f32 0.0, %v3419
    %v3421 = vpop.f32.mrf.mxu0
    %3422 = vmatprep.mubr.bf16.mxu0 0
    %3423 = vmatmul.mubr.bf16.gmra.mxu0 %v3380
    %v3424 = vpop.f32.mrf.mxu0
    %v3425 = vadd.f32 0.0, %v3424
    %v3426 = vpop.f32.mrf.mxu0
    %v3427 = vpop.f32.mrf.mxu0
    %v3428 = vadd.f32 0.0, %v3427
    %v3429 = vpop.f32.mrf.mxu0
    %3430 = vdwg.mxu0
    %3435 = vrot.lane.b32.xlu0 %v3417, 96
    %v3436 = vpop.permute.xlu0 %3435
    %3437 = vrot.lane.b32.xlu0 %v3420, 96
    %v3438 = vpop.permute.xlu0 %3437
    %3439 = vrot.lane.b32.xlu0 %v3425, 96
    %v3440 = vpop.permute.xlu0 %3439
    %3441 = vrot.lane.b32.xlu0 %v3428, 96
    %v3442 = vpop.permute.xlu0 %3441
    %3447 = vst.msk [vmem:[#allocation2] sm:$0xff] %vm1708, %v3436
    %3448 = vst.msk [vmem:[#allocation2 + $0x8] sm:$0xff] %vm1708, %v3438
    %3449 = vst.msk [vmem:[#allocation2 + $0x10] sm:$0xff] %vm1708, %v3440
    %3450 = vst.msk [vmem:[#allocation2 + $0x18] sm:$0xff] %vm1708, %v3442
    %v3451 = vld [vmem:[#allocation2] sm:$0xff]
    %v3452 = vld [vmem:[#allocation2 + $0x8] sm:$0xff]
    %v3453 = vld [vmem:[#allocation2 + $0x10] sm:$0xff]
    %v3454 = vld [vmem:[#allocation2 + $0x18] sm:$0xff]
    %s3455 = scalar_lea.vmem %s10, 64
    %v3456 = vld [vmem:[%s3455] sm:$0xf]
    %v3457 = vld [vmem:[%s3455 + $0x4] sm:$0xf]
    %v3458 = vld [vmem:[%s3455 + $0x8] sm:$0xf]
    %v3459 = vld [vmem:[%s3455 + $0xc] sm:$0xf]
    %v3460 = vld [vmem:[%s3455 + $0x10] sm:$0xf]
    %v3461 = vld [vmem:[%s3455 + $0x14] sm:$0xf]
    %v3462 = vld [vmem:[%s3455 + $0x18] sm:$0xf]
    %v3463 = vld [vmem:[%s3455 + $0x1c] sm:$0xf]
    %v3464 = vld [vmem:[%s3455 + $0x20] sm:$0xf]
    %v3465 = vld [vmem:[%s3455 + $0x24] sm:$0xf]
    %v3466 = vld [vmem:[%s3455 + $0x28] sm:$0xf]
    %v3467 = vld [vmem:[%s3455 + $0x2c] sm:$0xf]
    %v3468 = vld [vmem:[%s3455 + $0x30] sm:$0xf]
    %v3469 = vld [vmem:[%s3455 + $0x34] sm:$0xf]
    %v3470 = vld [vmem:[%s3455 + $0x38] sm:$0xf]
    %v3471 = vld [vmem:[%s3455 + $0x3c] sm:$0xf]
    %v3472 = vpack.c.bf16 %v3452, %v3451
    %v3473 = vpack.c.bf16 %v3454, %v3453
    %s3474 = scalar_lea.vmem [#allocation13], 1
    %v3475 = vld [vmem:[%s3474] sm:$0x1]
    %v3477 = vlaneseq
    %v3478 = vshrl.u32 %v3477, 7
    %v3479 = vsub.s32 0, %v3478
    %v3480 = vrot.slane %v3475, %v3479
    %v3498 = vunpack.c.l.b16 %v3456
    %v3499 = vunpack.c.l.b16 %v3457
    %v3500 = vunpack.c.l.b16 %v3458
    %v3501 = vunpack.c.l.b16 %v3459
    %v3502 = vunpack.c.l.b16 %v3460
    %v3503 = vunpack.c.l.b16 %v3461
    %v3504 = vunpack.c.l.b16 %v3462
    %v3505 = vunpack.c.l.b16 %v3463
    %v3506 = vunpack.c.l.b16 %v3464
    %v3507 = vunpack.c.l.b16 %v3465
    %v3508 = vunpack.c.l.b16 %v3466
    %v3509 = vunpack.c.l.b16 %v3467
    %v3510 = vunpack.c.l.b16 %v3468
    %v3511 = vunpack.c.l.b16 %v3469
    %v3512 = vunpack.c.l.b16 %v3470
    %v3513 = vunpack.c.l.b16 %v3471
    %v3514 = vpack.c.b16 %v3499, %v3498
    %v3515 = vpack.c.b16 %v3501, %v3500
    %v3516 = vpack.c.b16 %v3503, %v3502
    %v3517 = vpack.c.b16 %v3505, %v3504
    %v3518 = vpack.c.b16 %v3507, %v3506
    %v3519 = vpack.c.b16 %v3509, %v3508
    %v3520 = vpack.c.b16 %v3511, %v3510
    %v3521 = vpack.c.b16 %v3513, %v3512
    %3530 = vmatprep.subr.bf16.mxu0 0
    %3531 = vmatpush1.bf16.msra.mxu0 %v3521
    %3532 = vmatprep.subr.bf16.mxu0 0
    %3533 = vmatpush1.bf16.msra.mxu0 %v3520
    %3534 = vmatprep.subr.bf16.mxu0 0
    %3535 = vmatpush1.bf16.msra.mxu0 %v3519
    %3536 = vmatprep.subr.bf16.mxu0 0
    %3537 = vmatpush1.bf16.msra.mxu0 %v3518
    %3538 = vmatprep.subr.bf16.mxu0 0
    %3539 = vmatpush1.bf16.msra.mxu0 %v3517
    %3540 = vmatprep.subr.bf16.mxu0 0
    %3541 = vmatpush1.bf16.msra.mxu0 %v3516
    %3542 = vmatprep.subr.bf16.mxu0 0
    %3543 = vmatpush1.bf16.msra.mxu0 %v3515
    %3544 = vmatprep.subr.bf16.mxu0 0
    %3545 = vmatpush1.bf16.msra.mxu0 %v3514
    %3546 = vmatprep.subr.bf16.mxu0 0
    %3547 = vmatpush2.bf16.msra.mxu0 0
    %3548 = vmatprep.subr.bf16.mxu0 0
    %3549 = vmatpush2.bf16.msra.mxu0 0
    %3550 = vmatprep.subr.bf16.mxu0 0
    %3551 = vmatpush2.bf16.msra.mxu0 0
    %3552 = vmatprep.subr.bf16.mxu0 0
    %3553 = vmatpush2.bf16.msra.mxu0 0
    %3554 = vmatprep.subr.bf16.mxu0 0
    %3555 = vmatpush2.bf16.msra.mxu0 0
    %3556 = vmatprep.subr.bf16.mxu0 0
    %3557 = vmatpush2.bf16.msra.mxu0 0
    %3558 = vmatprep.subr.bf16.mxu0 0
    %3559 = vmatpush2.bf16.msra.mxu0 0
    %3560 = vmatprep.subr.bf16.mxu0 0
    %3561 = vmatpush2.bf16.msra.mxu0 0
    %3562 = vmatprep.mubr.bf16.mxu0 0
    %3563 = vmatmul.mubr.bf16.gmra.mxu0 %v3472
    %v3564 = vpop.f32.mrf.mxu0
    %v3565 = vadd.f32 %v3480, %v3564
    %v3566 = vpop.f32.mrf.mxu0
    %v3567 = vpop.f32.mrf.mxu0
    %v3568 = vadd.f32 %v3480, %v3567
    %v3569 = vpop.f32.mrf.mxu0
    %3570 = vmatprep.mubr.bf16.mxu0 0
    %3571 = vmatmul.mubr.bf16.gmra.mxu0 %v3473
    %v3572 = vpop.f32.mrf.mxu0
    %v3573 = vadd.f32 %v3480, %v3572
    %v3574 = vpop.f32.mrf.mxu0
    %v3575 = vpop.f32.mrf.mxu0
    %v3576 = vadd.f32 %v3480, %v3575
    %v3577 = vpop.f32.mrf.mxu0
    %3578 = vdwg.mxu0
    %v3579 = vadd.f32 %v3565, %v2398
    %v3580 = vadd.f32 %v3568, %v2399
    %v3581 = vadd.f32 %v3573, %v2400
    %v3582 = vadd.f32 %v3576, %v2401
    %s3583 = scalar_lea.vmem [#allocation14], 1
    %v3584 = vld [vmem:[%s3583] sm:$0x1]
    %s3585 = scalar_lea.vmem [#allocation16], 1
    %v3586 = vld [vmem:[%s3585] sm:$0x1]
    %3587 = vadd.xlane.f32.xlu0 %v3579
    %v3588 = vpop.xlane.xlu0 %3587
    %3589 = vadd.xlane.f32.xlu0 %v3580
    %v3590 = vpop.xlane.xlu0 %3589
    %3591 = vadd.xlane.f32.xlu0 %v3581
    %v3592 = vpop.xlane.xlu0 %3591
    %3593 = vadd.xlane.f32.xlu0 %v3582
    %v3594 = vpop.xlane.xlu0 %3593
    %v3595 = vmul.f32 %v3588, %v601
    %v3596 = vmul.f32 %v3590, %v601
    %v3597 = vmul.f32 %v3592, %v601
    %v3598 = vmul.f32 %v3594, %v601
    %v3599 = vsub.f32 %v3579, %v3595
    %v3600 = vsub.f32 %v3580, %v3596
    %v3601 = vsub.f32 %v3581, %v3597
    %v3602 = vsub.f32 %v3582, %v3598
    %v3603 = vmul.f32 %v3599, %v3599
    %v3604 = vmul.f32 %v3600, %v3600
    %v3605 = vmul.f32 %v3601, %v3601
    %v3606 = vmul.f32 %v3602, %v3602
    %3607 = vadd.xlane.f32.xlu0 %v3603
    %v3608 = vpop.xlane.xlu0 %3607
    %3609 = vadd.xlane.f32.xlu0 %v3604
    %v3610 = vpop.xlane.xlu0 %3609
    %3611 = vadd.xlane.f32.xlu0 %v3605
    %v3612 = vpop.xlane.xlu0 %3611
    %3613 = vadd.xlane.f32.xlu0 %v3606
    %v3614 = vpop.xlane.xlu0 %3613
    %v3615 = vmul.f32 %v3608, %v601
    %v3616 = vmul.f32 %v3610, %v601
    %v3617 = vmul.f32 %v3612, %v601
    %v3618 = vmul.f32 %v3614, %v601
    %v3619 = vadd.f32 %v3615, 1e-05
    %v3620 = vadd.f32 %v3616, 1e-05
    %v3621 = vadd.f32 %v3617, 1e-05
    %v3622 = vadd.f32 %v3618, 1e-05
    %v3623 = vrsqrt.pop %v3619
    %v3624 = vrsqrt.pop %v3620
    %v3625 = vrsqrt.pop %v3621
    %v3626 = vrsqrt.pop %v3622
    %v3627 = vmul.f32 %v3599, %v3623
    %v3628 = vmul.f32 %v3600, %v3624
    %v3629 = vmul.f32 %v3601, %v3625
    %v3630 = vmul.f32 %v3602, %v3626
    %v3632 = vlaneseq
    %v3633 = vshrl.u32 %v3632, 7
    %v3634 = vsub.s32 0, %v3633
    %v3635 = vrot.slane %v3584, %v3634
    %v3637 = vmul.f32 %v3627, %v3635
    %v3638 = vmul.f32 %v3628, %v3635
    %v3639 = vmul.f32 %v3629, %v3635
    %v3640 = vmul.f32 %v3630, %v3635
    %v3642 = vlaneseq
    %v3643 = vshrl.u32 %v3642, 7
    %v3644 = vsub.s32 0, %v3643
    %v3645 = vrot.slane %v3586, %v3644
    %v3647 = vadd.f32 %v3637, %v3645
    %v3648 = vadd.f32 %v3638, %v3645
    %v3649 = vadd.f32 %v3639, %v3645
    %v3650 = vadd.f32 %v3640, %v3645
    %s3651 = scalar_lea.vmem [#allocation17], 128
    %v3652 = vld [vmem:[%s3651] sm:$0xff]
    %v3653 = vld [vmem:[%s3651 + $0x8] sm:$0xff]
    %v3654 = vld [vmem:[%s3651 + $0x10] sm:$0xff]
    %v3655 = vld [vmem:[%s3651 + $0x18] sm:$0xff]
    %v3656 = vld [vmem:[%s3651 + $0x20] sm:$0xff]
    %v3657 = vld [vmem:[%s3651 + $0x28] sm:$0xff]
    %v3658 = vld [vmem:[%s3651 + $0x30] sm:$0xff]
    %v3659 = vld [vmem:[%s3651 + $0x38] sm:$0xff]
    %v3660 = vld [vmem:[%s3651 + $0x40] sm:$0xff]
    %v3661 = vld [vmem:[%s3651 + $0x48] sm:$0xff]
    %v3662 = vld [vmem:[%s3651 + $0x50] sm:$0xff]
    %v3663 = vld [vmem:[%s3651 + $0x58] sm:$0xff]
    %v3664 = vld [vmem:[%s3651 + $0x60] sm:$0xff]
    %v3665 = vld [vmem:[%s3651 + $0x68] sm:$0xff]
    %v3666 = vld [vmem:[%s3651 + $0x70] sm:$0xff]
    %v3667 = vld [vmem:[%s3651 + $0x78] sm:$0xff]
    %v3668 = vpack.c.bf16 %v3648, %v3647
    %v3669 = vpack.c.bf16 %v3650, %v3649
    %s3670 = scalar_lea.vmem %s15, 2
    %v3671 = vld [vmem:[%s3670] sm:$0x3]
    %v3673 = vlaneseq
    %v3674 = vshrl.u32 %v3673, 7
    %v3675 = vsub.s32 0, %v3674
    %v3676 = vrot.slane %v3671, %v3675
    %v3677 = vlaneseq
    %v3678 = vshrl.u32 %v3677, 7
    %v3679 = vsub.s32 1, %v3678
    %v3680 = vrot.slane %v3671, %v3679
    %v3699 = vunpack.c.l.b16 %v3652
    %v3700 = vunpack.c.h.b16 %v3652
    %v3701 = vunpack.c.l.b16 %v3653
    %v3702 = vunpack.c.h.b16 %v3653
    %v3703 = vunpack.c.l.b16 %v3654
    %v3704 = vunpack.c.h.b16 %v3654
    %v3705 = vunpack.c.l.b16 %v3655
    %v3706 = vunpack.c.h.b16 %v3655
    %v3707 = vunpack.c.l.b16 %v3656
    %v3708 = vunpack.c.h.b16 %v3656
    %v3709 = vunpack.c.l.b16 %v3657
    %v3710 = vunpack.c.h.b16 %v3657
    %v3711 = vunpack.c.l.b16 %v3658
    %v3712 = vunpack.c.h.b16 %v3658
    %v3713 = vunpack.c.l.b16 %v3659
    %v3714 = vunpack.c.h.b16 %v3659
    %v3715 = vunpack.c.l.b16 %v3660
    %v3716 = vunpack.c.h.b16 %v3660
    %v3717 = vunpack.c.l.b16 %v3661
    %v3718 = vunpack.c.h.b16 %v3661
    %v3719 = vunpack.c.l.b16 %v3662
    %v3720 = vunpack.c.h.b16 %v3662
    %v3721 = vunpack.c.l.b16 %v3663
    %v3722 = vunpack.c.h.b16 %v3663
    %v3723 = vunpack.c.l.b16 %v3664
    %v3724 = vunpack.c.h.b16 %v3664
    %v3725 = vunpack.c.l.b16 %v3665
    %v3726 = vunpack.c.h.b16 %v3665
    %v3727 = vunpack.c.l.b16 %v3666
    %v3728 = vunpack.c.h.b16 %v3666
    %v3729 = vunpack.c.l.b16 %v3667
    %v3730 = vunpack.c.h.b16 %v3667
    %v3731 = vpack.c.b16 %v3701, %v3699
    %v3732 = vpack.c.b16 %v3702, %v3700
    %v3733 = vpack.c.b16 %v3705, %v3703
    %v3734 = vpack.c.b16 %v3706, %v3704
    %v3735 = vpack.c.b16 %v3709, %v3707
    %v3736 = vpack.c.b16 %v3710, %v3708
    %v3737 = vpack.c.b16 %v3713, %v3711
    %v3738 = vpack.c.b16 %v3714, %v3712
    %v3739 = vpack.c.b16 %v3717, %v3715
    %v3740 = vpack.c.b16 %v3718, %v3716
    %v3741 = vpack.c.b16 %v3721, %v3719
    %v3742 = vpack.c.b16 %v3722, %v3720
    %v3743 = vpack.c.b16 %v3725, %v3723
    %v3744 = vpack.c.b16 %v3726, %v3724
    %v3745 = vpack.c.b16 %v3729, %v3727
    %v3746 = vpack.c.b16 %v3730, %v3728
    %3763 = vmatprep.subr.bf16.mxu0 %v3746
    %3764 = vmatpush1.bf16.msra.mxu0 %v3745
    %3765 = vmatprep.subr.bf16.mxu0 %v3744
    %3766 = vmatpush1.bf16.msra.mxu0 %v3743
    %3767 = vmatprep.subr.bf16.mxu0 %v3742
    %3768 = vmatpush1.bf16.msra.mxu0 %v3741
    %3769 = vmatprep.subr.bf16.mxu0 %v3740
    %3770 = vmatpush1.bf16.msra.mxu0 %v3739
    %3771 = vmatprep.subr.bf16.mxu0 %v3738
    %3772 = vmatpush1.bf16.msra.mxu0 %v3737
    %3773 = vmatprep.subr.bf16.mxu0 %v3736
    %3774 = vmatpush1.bf16.msra.mxu0 %v3735
    %3775 = vmatprep.subr.bf16.mxu0 %v3734
    %3776 = vmatpush1.bf16.msra.mxu0 %v3733
    %3777 = vmatprep.subr.bf16.mxu0 %v3732
    %3778 = vmatpush1.bf16.msra.mxu0 %v3731
    %3779 = vmatprep.subr.bf16.mxu0 0
    %3780 = vmatpush2.bf16.msra.mxu0 0
    %3781 = vmatprep.subr.bf16.mxu0 0
    %3782 = vmatpush2.bf16.msra.mxu0 0
    %3783 = vmatprep.subr.bf16.mxu0 0
    %3784 = vmatpush2.bf16.msra.mxu0 0
    %3785 = vmatprep.subr.bf16.mxu0 0
    %3786 = vmatpush2.bf16.msra.mxu0 0
    %3787 = vmatprep.subr.bf16.mxu0 0
    %3788 = vmatpush2.bf16.msra.mxu0 0
    %3789 = vmatprep.subr.bf16.mxu0 0
    %3790 = vmatpush2.bf16.msra.mxu0 0
    %3791 = vmatprep.subr.bf16.mxu0 0
    %3792 = vmatpush2.bf16.msra.mxu0 0
    %3793 = vmatprep.subr.bf16.mxu0 0
    %3794 = vmatpush2.bf16.msra.mxu0 0
    %3795 = vmatprep.mubr.bf16.mxu0 0
    %3796 = vmatmul.mubr.bf16.gmra.mxu0 %v3668
    %v3797 = vpop.f32.mrf.mxu0
    %v3798 = vadd.f32 %v3676, %v3797
    %v3799 = vpop.f32.mrf.mxu0
    %v3800 = vadd.f32 %v3680, %v3799
    %v3801 = vpop.f32.mrf.mxu0
    %v3802 = vadd.f32 %v3676, %v3801
    %v3803 = vpop.f32.mrf.mxu0
    %v3804 = vadd.f32 %v3680, %v3803
    %3805 = vmatprep.mubr.bf16.mxu0 0
    %3806 = vmatmul.mubr.bf16.gmra.mxu0 %v3669
    %v3807 = vpop.f32.mrf.mxu0
    %v3808 = vadd.f32 %v3676, %v3807
    %v3809 = vpop.f32.mrf.mxu0
    %v3810 = vadd.f32 %v3680, %v3809
    %v3811 = vpop.f32.mrf.mxu0
    %v3812 = vadd.f32 %v3676, %v3811
    %v3813 = vpop.f32.mrf.mxu0
    %v3814 = vadd.f32 %v3680, %v3813
    %3815 = vdwg.mxu0
    %v3816 = vmul.f32 %v3798, 0.5
    %v3817 = vmul.f32 %v3800, 0.5
    %v3818 = vmul.f32 %v3802, 0.5
    %v3819 = vmul.f32 %v3804, 0.5
    %v3820 = vmul.f32 %v3808, 0.5
    %v3821 = vmul.f32 %v3810, 0.5
    %v3822 = vmul.f32 %v3812, 0.5
    %v3823 = vmul.f32 %v3814, 0.5
    %v3824 = vmul.f32 %v3798, 0.044715
    %v3825 = vmul.f32 %v3800, 0.044715
    %v3826 = vmul.f32 %v3802, 0.044715
    %v3827 = vmul.f32 %v3804, 0.044715
    %v3828 = vmul.f32 %v3808, 0.044715
    %v3829 = vmul.f32 %v3810, 0.044715
    %v3830 = vmul.f32 %v3812, 0.044715
    %v3831 = vmul.f32 %v3814, 0.044715
    %v3832 = vmul.f32 %v3824, %v3798
    %v3833 = vmul.f32 %v3825, %v3800
    %v3834 = vmul.f32 %v3826, %v3802
    %v3835 = vmul.f32 %v3827, %v3804
    %v3836 = vmul.f32 %v3828, %v3808
    %v3837 = vmul.f32 %v3829, %v3810
    %v3838 = vmul.f32 %v3830, %v3812
    %v3839 = vmul.f32 %v3831, %v3814
    %v3840 = vmul.f32 %v3832, %v3798
    %v3841 = vmul.f32 %v3833, %v3800
    %v3842 = vmul.f32 %v3834, %v3802
    %v3843 = vmul.f32 %v3835, %v3804
    %v3844 = vmul.f32 %v3836, %v3808
    %v3845 = vmul.f32 %v3837, %v3810
    %v3846 = vmul.f32 %v3838, %v3812
    %v3847 = vmul.f32 %v3839, %v3814
    %v3848 = vadd.f32 %v3798, %v3840
    %v3849 = vadd.f32 %v3800, %v3841
    %v3850 = vadd.f32 %v3802, %v3842
    %v3851 = vadd.f32 %v3804, %v3843
    %v3852 = vadd.f32 %v3808, %v3844
    %v3853 = vadd.f32 %v3810, %v3845
    %v3854 = vadd.f32 %v3812, %v3846
    %v3855 = vadd.f32 %v3814, %v3847
    %v3856 = vmul.f32 %v3848, 0.7978846
    %v3857 = vmul.f32 %v3849, 0.7978846
    %v3858 = vmul.f32 %v3850, 0.7978846
    %v3859 = vmul.f32 %v3851, 0.7978846
    %v3860 = vmul.f32 %v3852, 0.7978846
    %v3861 = vmul.f32 %v3853, 0.7978846
    %v3862 = vmul.f32 %v3854, 0.7978846
    %v3863 = vmul.f32 %v3855, 0.7978846
    %v3864 = vtanh.pop %v3856
    %v3865 = vtanh.pop %v3857
    %v3866 = vtanh.pop %v3858
    %v3867 = vtanh.pop %v3859
    %v3868 = vtanh.pop %v3860
    %v3869 = vtanh.pop %v3861
    %v3870 = vtanh.pop %v3862
    %v3871 = vtanh.pop %v3863
    %v3872 = vadd.f32 %v3864, 1.0
    %v3873 = vadd.f32 %v3865, 1.0
    %v3874 = vadd.f32 %v3866, 1.0
    %v3875 = vadd.f32 %v3867, 1.0
    %v3876 = vadd.f32 %v3868, 1.0
    %v3877 = vadd.f32 %v3869, 1.0
    %v3878 = vadd.f32 %v3870, 1.0
    %v3879 = vadd.f32 %v3871, 1.0
    %v3880 = vmul.f32 %v3816, %v3872
    %v3881 = vmul.f32 %v3817, %v3873
    %v3882 = vmul.f32 %v3818, %v3874
    %v3883 = vmul.f32 %v3819, %v3875
    %v3884 = vmul.f32 %v3820, %v3876
    %v3885 = vmul.f32 %v3821, %v3877
    %v3886 = vmul.f32 %v3822, %v3878
    %v3887 = vmul.f32 %v3823, %v3879
    %s3888 = scalar_lea.vmem [#allocation19], 128
    %v3889 = vld [vmem:[%s3888] sm:$0xf]
    %v3890 = vld [vmem:[%s3888 + $0x4] sm:$0xf]
    %v3891 = vld [vmem:[%s3888 + $0x8] sm:$0xf]
    %v3892 = vld [vmem:[%s3888 + $0xc] sm:$0xf]
    %v3893 = vld [vmem:[%s3888 + $0x10] sm:$0xf]
    %v3894 = vld [vmem:[%s3888 + $0x14] sm:$0xf]
    %v3895 = vld [vmem:[%s3888 + $0x18] sm:$0xf]
    %v3896 = vld [vmem:[%s3888 + $0x1c] sm:$0xf]
    %v3897 = vld [vmem:[%s3888 + $0x20] sm:$0xf]
    %v3898 = vld [vmem:[%s3888 + $0x24] sm:$0xf]
    %v3899 = vld [vmem:[%s3888 + $0x28] sm:$0xf]
    %v3900 = vld [vmem:[%s3888 + $0x2c] sm:$0xf]
    %v3901 = vld [vmem:[%s3888 + $0x30] sm:$0xf]
    %v3902 = vld [vmem:[%s3888 + $0x34] sm:$0xf]
    %v3903 = vld [vmem:[%s3888 + $0x38] sm:$0xf]
    %v3904 = vld [vmem:[%s3888 + $0x3c] sm:$0xf]
    %v3905 = vld [vmem:[%s3888 + $0x40] sm:$0xf]
    %v3906 = vld [vmem:[%s3888 + $0x44] sm:$0xf]
    %v3907 = vld [vmem:[%s3888 + $0x48] sm:$0xf]
    %v3908 = vld [vmem:[%s3888 + $0x4c] sm:$0xf]
    %v3909 = vld [vmem:[%s3888 + $0x50] sm:$0xf]
    %v3910 = vld [vmem:[%s3888 + $0x54] sm:$0xf]
    %v3911 = vld [vmem:[%s3888 + $0x58] sm:$0xf]
    %v3912 = vld [vmem:[%s3888 + $0x5c] sm:$0xf]
    %v3913 = vld [vmem:[%s3888 + $0x60] sm:$0xf]
    %v3914 = vld [vmem:[%s3888 + $0x64] sm:$0xf]
    %v3915 = vld [vmem:[%s3888 + $0x68] sm:$0xf]
    %v3916 = vld [vmem:[%s3888 + $0x6c] sm:$0xf]
    %v3917 = vld [vmem:[%s3888 + $0x70] sm:$0xf]
    %v3918 = vld [vmem:[%s3888 + $0x74] sm:$0xf]
    %v3919 = vld [vmem:[%s3888 + $0x78] sm:$0xf]
    %v3920 = vld [vmem:[%s3888 + $0x7c] sm:$0xf]
    %v3921 = vpack.c.bf16 %v3882, %v3880
    %v3922 = vpack.c.bf16 %v3883, %v3881
    %v3923 = vpack.c.bf16 %v3886, %v3884
    %v3924 = vpack.c.bf16 %v3887, %v3885
    %s3925 = scalar_lea.vmem [#allocation20], 1
    %v3926 = vld [vmem:[%s3925] sm:$0x1]
    %v3928 = vlaneseq
    %v3929 = vshrl.u32 %v3928, 7
    %v3930 = vsub.s32 0, %v3929
    %v3931 = vrot.slane %v3926, %v3930
    %v3965 = vunpack.c.l.b16 %v3889
    %v3966 = vunpack.c.l.b16 %v3890
    %v3967 = vunpack.c.l.b16 %v3891
    %v3968 = vunpack.c.l.b16 %v3892
    %v3969 = vunpack.c.l.b16 %v3893
    %v3970 = vunpack.c.l.b16 %v3894
    %v3971 = vunpack.c.l.b16 %v3895
    %v3972 = vunpack.c.l.b16 %v3896
    %v3973 = vunpack.c.l.b16 %v3897
    %v3974 = vunpack.c.l.b16 %v3898
    %v3975 = vunpack.c.l.b16 %v3899
    %v3976 = vunpack.c.l.b16 %v3900
    %v3977 = vunpack.c.l.b16 %v3901
    %v3978 = vunpack.c.l.b16 %v3902
    %v3979 = vunpack.c.l.b16 %v3903
    %v3980 = vunpack.c.l.b16 %v3904
    %v3981 = vunpack.c.l.b16 %v3905
    %v3982 = vunpack.c.l.b16 %v3906
    %v3983 = vunpack.c.l.b16 %v3907
    %v3984 = vunpack.c.l.b16 %v3908
    %v3985 = vunpack.c.l.b16 %v3909
    %v3986 = vunpack.c.l.b16 %v3910
    %v3987 = vunpack.c.l.b16 %v3911
    %v3988 = vunpack.c.l.b16 %v3912
    %v3989 = vunpack.c.l.b16 %v3913
    %v3990 = vunpack.c.l.b16 %v3914
    %v3991 = vunpack.c.l.b16 %v3915
    %v3992 = vunpack.c.l.b16 %v3916
    %v3993 = vunpack.c.l.b16 %v3917
    %v3994 = vunpack.c.l.b16 %v3918
    %v3995 = vunpack.c.l.b16 %v3919
    %v3996 = vunpack.c.l.b16 %v3920
    %v3997 = vpack.c.b16 %v3966, %v3965
    %v3998 = vpack.c.b16 %v3968, %v3967
    %v3999 = vpack.c.b16 %v3970, %v3969
    %v4000 = vpack.c.b16 %v3972, %v3971
    %v4001 = vpack.c.b16 %v3974, %v3973
    %v4002 = vpack.c.b16 %v3976, %v3975
    %v4003 = vpack.c.b16 %v3978, %v3977
    %v4004 = vpack.c.b16 %v3980, %v3979
    %v4005 = vpack.c.b16 %v3982, %v3981
    %v4006 = vpack.c.b16 %v3984, %v3983
    %v4007 = vpack.c.b16 %v3986, %v3985
    %v4008 = vpack.c.b16 %v3988, %v3987
    %v4009 = vpack.c.b16 %v3990, %v3989
    %v4010 = vpack.c.b16 %v3992, %v3991
    %v4011 = vpack.c.b16 %v3994, %v3993
    %v4012 = vpack.c.b16 %v3996, %v3995
    %4029 = vmatprep.subr.bf16.mxu0 0
    %4030 = vmatpush1.bf16.msra.mxu0 %v4004
    %4031 = vmatprep.subr.bf16.mxu0 0
    %4032 = vmatpush1.bf16.msra.mxu0 %v4003
    %4033 = vmatprep.subr.bf16.mxu0 0
    %4034 = vmatpush1.bf16.msra.mxu0 %v4002
    %4035 = vmatprep.subr.bf16.mxu0 0
    %4036 = vmatpush1.bf16.msra.mxu0 %v4001
    %4037 = vmatprep.subr.bf16.mxu0 0
    %4038 = vmatpush1.bf16.msra.mxu0 %v4000
    %4039 = vmatprep.subr.bf16.mxu0 0
    %4040 = vmatpush1.bf16.msra.mxu0 %v3999
    %4041 = vmatprep.subr.bf16.mxu0 0
    %4042 = vmatpush1.bf16.msra.mxu0 %v3998
    %4043 = vmatprep.subr.bf16.mxu0 0
    %4044 = vmatpush1.bf16.msra.mxu0 %v3997
    %4045 = vmatprep.subr.bf16.mxu0 0
    %4046 = vmatpush2.bf16.msra.mxu0 %v4012
    %4047 = vmatprep.subr.bf16.mxu0 0
    %4048 = vmatpush2.bf16.msra.mxu0 %v4011
    %4049 = vmatprep.subr.bf16.mxu0 0
    %4050 = vmatpush2.bf16.msra.mxu0 %v4010
    %4051 = vmatprep.subr.bf16.mxu0 0
    %4052 = vmatpush2.bf16.msra.mxu0 %v4009
    %4053 = vmatprep.subr.bf16.mxu0 0
    %4054 = vmatpush2.bf16.msra.mxu0 %v4008
    %4055 = vmatprep.subr.bf16.mxu0 0
    %4056 = vmatpush2.bf16.msra.mxu0 %v4007
    %4057 = vmatprep.subr.bf16.mxu0 0
    %4058 = vmatpush2.bf16.msra.mxu0 %v4006
    %4059 = vmatprep.subr.bf16.mxu0 0
    %4060 = vmatpush2.bf16.msra.mxu0 %v4005
    %4061 = vmatprep.mubr.bf16.mxu0 %v3922
    %4062 = vmatmul.mubr.bf16.gmra.mxu0 %v3921
    %v4063 = vpop.f32.mrf.mxu0
    %v4064 = vadd.f32 %v3931, %v4063
    %v4065 = vpop.f32.mrf.mxu0
    %v4066 = vpop.f32.mrf.mxu0
    %v4067 = vadd.f32 %v3931, %v4066
    %v4068 = vpop.f32.mrf.mxu0
    %4069 = vmatprep.mubr.bf16.mxu0 %v3924
    %4070 = vmatmul.mubr.bf16.gmra.mxu0 %v3923
    %v4071 = vpop.f32.mrf.mxu0
    %v4072 = vadd.f32 %v3931, %v4071
    %v4073 = vpop.f32.mrf.mxu0
    %v4074 = vpop.f32.mrf.mxu0
    %v4075 = vadd.f32 %v3931, %v4074
    %v4076 = vpop.f32.mrf.mxu0
    %4077 = vdwg.mxu0
    %v4078 = vadd.f32 %v4064, %v3647
    %v4079 = vadd.f32 %v4067, %v3648
    %v4080 = vadd.f32 %v4072, %v3649
    %v4081 = vadd.f32 %v4075, %v3650
    %s4082 = scalar_lea.vmem [#allocation22], 1
    %v4083 = vld [vmem:[%s4082] sm:$0x1]
    %s4084 = scalar_lea.vmem [#allocation23], 1
    %v4085 = vld [vmem:[%s4084] sm:$0x1]
    %4086 = vadd.xlane.f32.xlu0 %v4078
    %v4087 = vpop.xlane.xlu0 %4086
    %4088 = vadd.xlane.f32.xlu0 %v4079
    %v4089 = vpop.xlane.xlu0 %4088
    %4090 = vadd.xlane.f32.xlu0 %v4080
    %v4091 = vpop.xlane.xlu0 %4090
    %4092 = vadd.xlane.f32.xlu0 %v4081
    %v4093 = vpop.xlane.xlu0 %4092
    %v4094 = vmul.f32 %v4087, %v601
    %v4095 = vmul.f32 %v4089, %v601
    %v4096 = vmul.f32 %v4091, %v601
    %v4097 = vmul.f32 %v4093, %v601
    %v4098 = vsub.f32 %v4078, %v4094
    %v4099 = vsub.f32 %v4079, %v4095
    %v4100 = vsub.f32 %v4080, %v4096
    %v4101 = vsub.f32 %v4081, %v4097
    %v4102 = vmul.f32 %v4098, %v4098
    %v4103 = vmul.f32 %v4099, %v4099
    %v4104 = vmul.f32 %v4100, %v4100
    %v4105 = vmul.f32 %v4101, %v4101
    %4106 = vadd.xlane.f32.xlu0 %v4102
    %v4107 = vpop.xlane.xlu0 %4106
    %4108 = vadd.xlane.f32.xlu0 %v4103
    %v4109 = vpop.xlane.xlu0 %4108
    %4110 = vadd.xlane.f32.xlu0 %v4104
    %v4111 = vpop.xlane.xlu0 %4110
    %4112 = vadd.xlane.f32.xlu0 %v4105
    %v4113 = vpop.xlane.xlu0 %4112
    %v4114 = vmul.f32 %v4107, %v601
    %v4115 = vmul.f32 %v4109, %v601
    %v4116 = vmul.f32 %v4111, %v601
    %v4117 = vmul.f32 %v4113, %v601
    %v4118 = vadd.f32 %v4114, 1e-05
    %v4119 = vadd.f32 %v4115, 1e-05
    %v4120 = vadd.f32 %v4116, 1e-05
    %v4121 = vadd.f32 %v4117, 1e-05
    %v4122 = vrsqrt.pop %v4118
    %v4123 = vrsqrt.pop %v4119
    %v4124 = vrsqrt.pop %v4120
    %v4125 = vrsqrt.pop %v4121
    %v4126 = vmul.f32 %v4098, %v4122
    %v4127 = vmul.f32 %v4099, %v4123
    %v4128 = vmul.f32 %v4100, %v4124
    %v4129 = vmul.f32 %v4101, %v4125
    %v4131 = vlaneseq
    %v4132 = vshrl.u32 %v4131, 7
    %v4133 = vsub.s32 0, %v4132
    %v4134 = vrot.slane %v4083, %v4133
    %v4136 = vmul.f32 %v4126, %v4134
    %v4137 = vmul.f32 %v4127, %v4134
    %v4138 = vmul.f32 %v4128, %v4134
    %v4139 = vmul.f32 %v4129, %v4134
    %v4141 = vlaneseq
    %v4142 = vshrl.u32 %v4141, 7
    %v4143 = vsub.s32 0, %v4142
    %v4144 = vrot.slane %v4085, %v4143
    %v4146 = vadd.f32 %v4136, %v4144
    %v4147 = vadd.f32 %v4137, %v4144
    %v4148 = vadd.f32 %v4138, %v4144
    %v4149 = vadd.f32 %v4139, %v4144
    %4150 = vst [vmem:[#allocation2] sm:$0xff] %v4146
    %4151 = vst [vmem:[#allocation2 + $0x8] sm:$0xff] %v4147
    %4152 = vst [vmem:[#allocation2 + $0x10] sm:$0xff] %v4148
    %4153 = vst [vmem:[#allocation2 + $0x18] sm:$0xff] %v4149
    %v4154 = vld [vmem:[#allocation2] ss:$16 sm:$0x3]
    %v4155 = vld [vmem:[#allocation25] sm:$0xf]
    %v4156 = vld [vmem:[#allocation25 + $0x4] sm:$0xf]
    %v4157 = vld [vmem:[#allocation25 + $0x8] sm:$0xf]
    %v4158 = vld [vmem:[#allocation25 + $0xc] sm:$0xf]
    %v4159 = vld [vmem:[#allocation25 + $0x10] sm:$0xf]
    %v4160 = vld [vmem:[#allocation25 + $0x14] sm:$0xf]
    %v4161 = vld [vmem:[#allocation25 + $0x18] sm:$0xf]
    %v4162 = vld [vmem:[#allocation25 + $0x1c] sm:$0xf]
    %v4163 = vld [vmem:[#allocation25 + $0x20] sm:$0xf]
    %v4164 = vld [vmem:[#allocation25 + $0x24] sm:$0xf]
    %v4165 = vld [vmem:[#allocation25 + $0x28] sm:$0xf]
    %v4166 = vld [vmem:[#allocation25 + $0x2c] sm:$0xf]
    %v4167 = vld [vmem:[#allocation25 + $0x30] sm:$0xf]
    %v4168 = vld [vmem:[#allocation25 + $0x34] sm:$0xf]
    %v4169 = vld [vmem:[#allocation25 + $0x38] sm:$0xf]
    %v4170 = vld [vmem:[#allocation25 + $0x3c] sm:$0xf]
    %v4171 = vpack.c.bf16 %v4154, %v4154
    %v4172 = vld [vmem:[#allocation26] sm:$0x1]
    %v4174 = vlaneseq
    %v4175 = vshrl.u32 %v4174, 7
    %v4176 = vsub.s32 0, %v4175
    %v4177 = vrot.slane %v4172, %v4176
    %v4195 = vunpack.c.l.b16 %v4155
    %v4196 = vunpack.c.l.b16 %v4156
    %v4197 = vunpack.c.l.b16 %v4157
    %v4198 = vunpack.c.l.b16 %v4158
    %v4199 = vunpack.c.l.b16 %v4159
    %v4200 = vunpack.c.l.b16 %v4160
    %v4201 = vunpack.c.l.b16 %v4161
    %v4202 = vunpack.c.l.b16 %v4162
    %v4203 = vunpack.c.l.b16 %v4163
    %v4204 = vunpack.c.l.b16 %v4164
    %v4205 = vunpack.c.l.b16 %v4165
    %v4206 = vunpack.c.l.b16 %v4166
    %v4207 = vunpack.c.l.b16 %v4167
    %v4208 = vunpack.c.l.b16 %v4168
    %v4209 = vunpack.c.l.b16 %v4169
    %v4210 = vunpack.c.l.b16 %v4170
    %v4211 = vpack.c.b16 %v4196, %v4195
    %v4212 = vpack.c.b16 %v4198, %v4197
    %v4213 = vpack.c.b16 %v4200, %v4199
    %v4214 = vpack.c.b16 %v4202, %v4201
    %v4215 = vpack.c.b16 %v4204, %v4203
    %v4216 = vpack.c.b16 %v4206, %v4205
    %v4217 = vpack.c.b16 %v4208, %v4207
    %v4218 = vpack.c.b16 %v4210, %v4209
    %4227 = vmatprep.subr.bf16.mxu0 0
    %4228 = vmatpush1.bf16.msra.mxu0 %v4218
    %4229 = vmatprep.subr.bf16.mxu0 0
    %4230 = vmatpush1.bf16.msra.mxu0 %v4217
    %4231 = vmatprep.subr.bf16.mxu0 0
    %4232 = vmatpush1.bf16.msra.mxu0 %v4216
    %4233 = vmatprep.subr.bf16.mxu0 0
    %4234 = vmatpush1.bf16.msra.mxu0 %v4215
    %4235 = vmatprep.subr.bf16.mxu0 0
    %4236 = vmatpush1.bf16.msra.mxu0 %v4214
    %4237 = vmatprep.subr.bf16.mxu0 0
    %4238 = vmatpush1.bf16.msra.mxu0 %v4213
    %4239 = vmatprep.subr.bf16.mxu0 0
    %4240 = vmatpush1.bf16.msra.mxu0 %v4212
    %4241 = vmatprep.subr.bf16.mxu0 0
    %4242 = vmatpush1.bf16.msra.mxu0 %v4211
    %4243 = vmatprep.subr.bf16.mxu0 0
    %4244 = vmatpush2.bf16.msra.mxu0 0
    %4245 = vmatprep.subr.bf16.mxu0 0
    %4246 = vmatpush2.bf16.msra.mxu0 0
    %4247 = vmatprep.subr.bf16.mxu0 0
    %4248 = vmatpush2.bf16.msra.mxu0 0
    %4249 = vmatprep.subr.bf16.mxu0 0
    %4250 = vmatpush2.bf16.msra.mxu0 0
    %4251 = vmatprep.subr.bf16.mxu0 0
    %4252 = vmatpush2.bf16.msra.mxu0 0
    %4253 = vmatprep.subr.bf16.mxu0 0
    %4254 = vmatpush2.bf16.msra.mxu0 0
    %4255 = vmatprep.subr.bf16.mxu0 0
    %4256 = vmatpush2.bf16.msra.mxu0 0
    %4257 = vmatprep.subr.bf16.mxu0 0
    %4258 = vmatpush2.bf16.msra.mxu0 0
    %4259 = vmatprep.mubr.bf16.mxu0 0
    %4260 = vmatmul.mubr.bf16.gmra.mxu0 %v4171
    %v4261 = vpop.f32.mrf.mxu0
    %v4262 = vadd.f32 %v4177, %v4261
    %v4263 = vpop.f32.mrf.mxu0
    %v4264 = vpop.f32.mrf.mxu0
    %v4265 = vpop.f32.mrf.mxu0
    %4266 = vdwg.mxu0
    %v4267 = vtanh.pop %v4262
    %v4268 = vld [vmem:[#allocation28] sm:$0xf]
    %v4269 = vld [vmem:[#allocation28 + $0x4] sm:$0xf]
    %v4270 = vld [vmem:[#allocation28 + $0x8] sm:$0xf]
    %v4271 = vld [vmem:[#allocation28 + $0xc] sm:$0xf]
    %v4272 = vld [vmem:[#allocation28 + $0x10] sm:$0xf]
    %v4273 = vld [vmem:[#allocation28 + $0x14] sm:$0xf]
    %v4274 = vld [vmem:[#allocation28 + $0x18] sm:$0xf]
    %v4275 = vld [vmem:[#allocation28 + $0x1c] sm:$0xf]
    %v4276 = vld [vmem:[#allocation28 + $0x20] sm:$0xf]
    %v4277 = vld [vmem:[#allocation28 + $0x24] sm:$0xf]
    %v4278 = vld [vmem:[#allocation28 + $0x28] sm:$0xf]
    %v4279 = vld [vmem:[#allocation28 + $0x2c] sm:$0xf]
    %v4280 = vld [vmem:[#allocation28 + $0x30] sm:$0xf]
    %v4281 = vld [vmem:[#allocation28 + $0x34] sm:$0xf]
    %v4282 = vld [vmem:[#allocation28 + $0x38] sm:$0xf]
    %v4283 = vld [vmem:[#allocation28 + $0x3c] sm:$0xf]
    %v4284 = vpack.c.bf16 %v4267, %v4267
    %v4285 = vld [vmem:[#allocation29] sm:$0x1]
    %v4287 = vlaneseq
    %v4288 = vshrl.u32 %v4287, 7
    %v4289 = vsub.s32 0, %v4288
    %v4290 = vrot.slane %v4285, %v4289
    %v4308 = vunpack.c.l.b16 %v4268
    %v4309 = vunpack.c.l.b16 %v4269
    %v4310 = vunpack.c.l.b16 %v4270
    %v4311 = vunpack.c.l.b16 %v4271
    %v4312 = vunpack.c.l.b16 %v4272
    %v4313 = vunpack.c.l.b16 %v4273
    %v4314 = vunpack.c.l.b16 %v4274
    %v4315 = vunpack.c.l.b16 %v4275
    %v4316 = vunpack.c.l.b16 %v4276
    %v4317 = vunpack.c.l.b16 %v4277
    %v4318 = vunpack.c.l.b16 %v4278
    %v4319 = vunpack.c.l.b16 %v4279
    %v4320 = vunpack.c.l.b16 %v4280
    %v4321 = vunpack.c.l.b16 %v4281
    %v4322 = vunpack.c.l.b16 %v4282
    %v4323 = vunpack.c.l.b16 %v4283
    %v4324 = vpack.c.b16 %v4309, %v4308
    %v4325 = vpack.c.b16 %v4311, %v4310
    %v4326 = vpack.c.b16 %v4313, %v4312
    %v4327 = vpack.c.b16 %v4315, %v4314
    %v4328 = vpack.c.b16 %v4317, %v4316
    %v4329 = vpack.c.b16 %v4319, %v4318
    %v4330 = vpack.c.b16 %v4321, %v4320
    %v4331 = vpack.c.b16 %v4323, %v4322
    %4340 = vmatprep.subr.bf16.mxu0 0
    %4341 = vmatpush1.bf16.msra.mxu0 %v4331
    %4342 = vmatprep.subr.bf16.mxu0 0
    %4343 = vmatpush1.bf16.msra.mxu0 %v4330
    %4344 = vmatprep.subr.bf16.mxu0 0
    %4345 = vmatpush1.bf16.msra.mxu0 %v4329
    %4346 = vmatprep.subr.bf16.mxu0 0
    %4347 = vmatpush1.bf16.msra.mxu0 %v4328
    %4348 = vmatprep.subr.bf16.mxu0 0
    %4349 = vmatpush1.bf16.msra.mxu0 %v4327
    %4350 = vmatprep.subr.bf16.mxu0 0
    %4351 = vmatpush1.bf16.msra.mxu0 %v4326
    %4352 = vmatprep.subr.bf16.mxu0 0
    %4353 = vmatpush1.bf16.msra.mxu0 %v4325
    %4354 = vmatprep.subr.bf16.mxu0 0
    %4355 = vmatpush1.bf16.msra.mxu0 %v4324
    %4356 = vmatprep.subr.bf16.mxu0 0
    %4357 = vmatpush2.bf16.msra.mxu0 0
    %4358 = vmatprep.subr.bf16.mxu0 0
    %4359 = vmatpush2.bf16.msra.mxu0 0
    %4360 = vmatprep.subr.bf16.mxu0 0
    %4361 = vmatpush2.bf16.msra.mxu0 0
    %4362 = vmatprep.subr.bf16.mxu0 0
    %4363 = vmatpush2.bf16.msra.mxu0 0
    %4364 = vmatprep.subr.bf16.mxu0 0
    %4365 = vmatpush2.bf16.msra.mxu0 0
    %4366 = vmatprep.subr.bf16.mxu0 0
    %4367 = vmatpush2.bf16.msra.mxu0 0
    %4368 = vmatprep.subr.bf16.mxu0 0
    %4369 = vmatpush2.bf16.msra.mxu0 0
    %4370 = vmatprep.subr.bf16.mxu0 0
    %4371 = vmatpush2.bf16.msra.mxu0 0
    %4372 = vmatprep.mubr.bf16.mxu0 0
    %4373 = vmatmul.mubr.bf16.gmra.mxu0 %v4284
    %v4374 = vpop.f32.mrf.mxu0
    %v4375 = vadd.f32 %v4290, %v4374
    %v4376 = vpop.f32.mrf.mxu0
    %v4377 = vpop.f32.mrf.mxu0
    %v4378 = vpop.f32.mrf.mxu0
    %4379 = vdwg.mxu0
    %v4380 = vmax.f32 %v4375, 0.0
    %v4381 = vld [vmem:[#allocation31] sm:$0xf]
    %v4382 = vld [vmem:[#allocation31 + $0x4] sm:$0xf]
    %v4383 = vld [vmem:[#allocation31 + $0x8] sm:$0xf]
    %v4384 = vld [vmem:[#allocation31 + $0xc] sm:$0xf]
    %v4385 = vld [vmem:[#allocation31 + $0x10] sm:$0xf]
    %v4386 = vld [vmem:[#allocation31 + $0x14] sm:$0xf]
    %v4387 = vld [vmem:[#allocation31 + $0x18] sm:$0xf]
    %v4388 = vld [vmem:[#allocation31 + $0x1c] sm:$0xf]
    %v4389 = vld [vmem:[#allocation31 + $0x20] sm:$0xf]
    %v4390 = vld [vmem:[#allocation31 + $0x24] sm:$0xf]
    %v4391 = vld [vmem:[#allocation31 + $0x28] sm:$0xf]
    %v4392 = vld [vmem:[#allocation31 + $0x2c] sm:$0xf]
    %v4393 = vld [vmem:[#allocation31 + $0x30] sm:$0xf]
    %v4394 = vld [vmem:[#allocation31 + $0x34] sm:$0xf]
    %v4395 = vld [vmem:[#allocation31 + $0x38] sm:$0xf]
    %v4396 = vld [vmem:[#allocation31 + $0x3c] sm:$0xf]
    %v4397 = vpack.c.bf16 %v4380, %v4380
    %v4398 = vld [vmem:[#allocation32] sm:$0x1]
    %v4400 = vlaneseq
    %v4401 = vshrl.u32 %v4400, 7
    %v4402 = vsub.s32 0, %v4401
    %v4403 = vrot.slane %v4398, %v4402
    %v4421 = vunpack.c.l.b16 %v4381
    %v4422 = vunpack.c.l.b16 %v4382
    %v4423 = vunpack.c.l.b16 %v4383
    %v4424 = vunpack.c.l.b16 %v4384
    %v4425 = vunpack.c.l.b16 %v4385
    %v4426 = vunpack.c.l.b16 %v4386
    %v4427 = vunpack.c.l.b16 %v4387
    %v4428 = vunpack.c.l.b16 %v4388
    %v4429 = vunpack.c.l.b16 %v4389
    %v4430 = vunpack.c.l.b16 %v4390
    %v4431 = vunpack.c.l.b16 %v4391
    %v4432 = vunpack.c.l.b16 %v4392
    %v4433 = vunpack.c.l.b16 %v4393
    %v4434 = vunpack.c.l.b16 %v4394
    %v4435 = vunpack.c.l.b16 %v4395
    %v4436 = vunpack.c.l.b16 %v4396
    %v4437 = vpack.c.b16 %v4422, %v4421
    %v4438 = vpack.c.b16 %v4424, %v4423
    %v4439 = vpack.c.b16 %v4426, %v4425
    %v4440 = vpack.c.b16 %v4428, %v4427
    %v4441 = vpack.c.b16 %v4430, %v4429
    %v4442 = vpack.c.b16 %v4432, %v4431
    %v4443 = vpack.c.b16 %v4434, %v4433
    %v4444 = vpack.c.b16 %v4436, %v4435
    %4453 = vmatprep.subr.bf16.mxu0 0
    %4454 = vmatpush1.bf16.msra.mxu0 %v4444
    %4455 = vmatprep.subr.bf16.mxu0 0
    %4456 = vmatpush1.bf16.msra.mxu0 %v4443
    %4457 = vmatprep.subr.bf16.mxu0 0
    %4458 = vmatpush1.bf16.msra.mxu0 %v4442
    %4459 = vmatprep.subr.bf16.mxu0 0
    %4460 = vmatpush1.bf16.msra.mxu0 %v4441
    %4461 = vmatprep.subr.bf16.mxu0 0
    %4462 = vmatpush1.bf16.msra.mxu0 %v4440
    %4463 = vmatprep.subr.bf16.mxu0 0
    %4464 = vmatpush1.bf16.msra.mxu0 %v4439
    %4465 = vmatprep.subr.bf16.mxu0 0
    %4466 = vmatpush1.bf16.msra.mxu0 %v4438
    %4467 = vmatprep.subr.bf16.mxu0 0
    %4468 = vmatpush1.bf16.msra.mxu0 %v4437
    %4469 = vmatprep.subr.bf16.mxu0 0
    %4470 = vmatpush2.bf16.msra.mxu0 0
    %4471 = vmatprep.subr.bf16.mxu0 0
    %4472 = vmatpush2.bf16.msra.mxu0 0
    %4473 = vmatprep.subr.bf16.mxu0 0
    %4474 = vmatpush2.bf16.msra.mxu0 0
    %4475 = vmatprep.subr.bf16.mxu0 0
    %4476 = vmatpush2.bf16.msra.mxu0 0
    %4477 = vmatprep.subr.bf16.mxu0 0
    %4478 = vmatpush2.bf16.msra.mxu0 0
    %4479 = vmatprep.subr.bf16.mxu0 0
    %4480 = vmatpush2.bf16.msra.mxu0 0
    %4481 = vmatprep.subr.bf16.mxu0 0
    %4482 = vmatpush2.bf16.msra.mxu0 0
    %4483 = vmatprep.subr.bf16.mxu0 0
    %4484 = vmatpush2.bf16.msra.mxu0 0
    %4485 = vmatprep.mubr.bf16.mxu0 0
    %4486 = vmatmul.mubr.bf16.gmra.mxu0 %v4397
    %v4487 = vpop.f32.mrf.mxu0
    %v4488 = vadd.f32 %v4403, %v4487
    %v4489 = vpop.f32.mrf.mxu0
    %v4490 = vpop.f32.mrf.mxu0
    %v4491 = vpop.f32.mrf.mxu0
    %4492 = vdwg.mxu0
    %4493 = vst [vmem:[%s26] sm:$0x3] %v4488
    // Predicated region
    $region186: #{roberta_detector_forward.1} parent=1 // pred_check
      _
    $region187: #{roberta_detector_forward.1} parent=1 // pred_check_branch
      %4495 = sbr.rel (0) target = $region189
    $region188: #{roberta_detector_forward.1} parent=1 // pred_region
      _
    $region189: #{roberta_detector_forward.1} parent=1 // pred_fallthru
      _
    // Predicated region
    $region190: #{roberta_detector_forward.1} parent=1 // pred_check
      _
    $region191: #{roberta_detector_forward.1} parent=1 // pred_check_branch
      %4497 = sbr.rel (0) target = $region193
    $region192: #{roberta_detector_forward.1} parent=1 // pred_region
      _
    $region193: #{roberta_detector_forward.1} parent=1 // pred_fallthru
      _
    %4498 = vsyncpa [#allocation4], 1
    %4499 = vsyncpa [#allocation6], 1
    %4500 = vsyncpa [#allocation9], 1
    %4501 = vsyncpa [#allocation12], 1
    %4502 = vsyncpa [#allocation15], 1
    %4503 = vsyncpa [#allocation18], 1
    %4504 = vsyncpa [#allocation21], 1
    %4505 = vsyncpa [#allocation24], 1
    %4506 = vsyncpa [#allocation27], 1
    %4507 = vsyncpa [#allocation30], 1
    %4508 = vsyncpa [#allocation33], 1

</llo_original>
